<compile_context>
chip_gen: v7x
topology: tpu7x:2x2x1
jax: 0.10.0
libtpu: 0.0.40
codegen_flags: <defaults>
</compile_context>

<pallas_src>
import functools

import jax
import jax.numpy as jnp
from jax.experimental import pallas as pl
from jax.experimental.pallas import tpu as pltpu  # noqa: F401

_NEG_INF = -1e9     # causal / cross-sample mask value
_SELF_VAL = -5e4    # Reformer TOKEN_SELF_ATTN_VALUE (shared-QK self mask)


def _iota(shape, dim):
    return jax.lax.broadcasted_iota(jnp.int32, shape, dim)


def _layernorm(x, g, b, eps=1e-5):
    mean = jnp.mean(x, axis=-1, keepdims=True)
    var = jnp.mean((x - mean) ** 2, axis=-1, keepdims=True)
    return (x - mean) * jax.lax.rsqrt(var + eps) * g + b


# ----------------------------------------------------------------------------
# Fused kernel body
# ----------------------------------------------------------------------------
def _reformer_core(h0, wmat1_ref, wmat2_ref, vecs_ref, w4_ref, sel_ref,
                   eye_ref, fb_ref, out_ref, *, batch, seq, depth, heads):
    f32, bf16 = jnp.float32, jnp.bfloat16
    BS, D = h0.shape                     # BS = batch * seq (batch on sublanes)
    H = heads
    Dh = D // H
    S = seq
    scale = float(Dh) ** -0.5

    # ---- constants, built once and hoisted out of the depth loop -----------
    # additive attention mask [H*BS, BS]: causal within each sample, -5e4 on
    # the diagonal (shared-QK self mask), -1e9 across samples.
    r = _iota((BS, BS), 0)
    c = _iota((BS, BS), 1)
    same = jnp.zeros((BS, BS), jnp.bool_)
    for b in range(batch):
        lo, hi = b * S, (b + 1) * S
        same = same | ((r >= lo) & (r < hi) & (c >= lo) & (c < hi))
    base = jnp.where(c == r, _SELF_VAL,
                     jnp.where(same & (c < r), 0.0, _NEG_INF)).astype(f32)
    attn_mask = jnp.concatenate([base] * H, axis=0)

    # per-head lane indicator, one sublane block per head  [H*BS, D]
    dl = _iota((BS, D), 1)
    head_mask = jnp.concatenate(
        [((dl >= hd * Dh) & (dl < (hd + 1) * Dh)).astype(f32)
         for hd in range(H)], axis=0)

    # same-head block-ones [D, D]: per-head squared key norms via one matmul
    rd = _iota((D, D), 0)
    cd = _iota((D, D), 1)
    blk = jnp.zeros((D, D), jnp.bool_)
    for hd in range(H):
        lo, hi = hd * Dh, (hd + 1) * Dh
        blk = blk | ((rd >= lo) & (rd < hi) & (cd >= lo) & (cd < hi))
    block_ones = blk.astype(bf16)

    # batch-sum selector for the classifier [batch, BS]
    rb = _iota((batch, BS), 0)
    cb = _iota((batch, BS), 1)
    bsel = jnp.zeros((batch, BS), jnp.bool_)
    for b in range(batch):
        bsel = bsel | ((rb == b) & (cb >= b * S) & (cb < (b + 1) * S))
    bsel = bsel.astype(bf16)

    # ---- reversible Reformer stack ------------------------------------------
    x1 = h0
    x2 = h0
    for d in range(depth):
        wm1 = wmat1_ref[d]                          # [D, 4D | D | D | D] bf16
        w_ff1 = wm1[:, :4 * D]
        w_qkv = wm1[:, 4 * D:6 * D]                 # fused shared-QK | V
        w_o = wm1[:, 6 * D:7 * D]
        w_ff2 = wmat2_ref[d]                        # [4D, D] bf16
        vec = vecs_ref[d]                           # [8, 4D] f32

        # --- attention block: y1 = x1 + Attn(LN(x2)) -------------------------
        a_in = _layernorm(x2, vec[0:1, :D], vec[1:2, :D])
        qkv = jnp.dot(a_in.astype(bf16), w_qkv, preferred_element_type=f32)
        qk = qkv[:, :D]
        v = qkv[:, D:]

        # L2-normalized keys; per-head norms via the block-ones matmul
        sq = qk * qk
        nrm = jnp.dot(sq.astype(bf16), block_ones, preferred_element_type=f32)
        k_n = (qk * jax.lax.rsqrt(nrm + 1e-12)).astype(bf16)      # [BS, D]

        # all heads at once: head copies of Q stacked on sublanes and zeroed
        # outside each head's lanes -> one NT score matmul + one PV matmul.
        q_bd = (jnp.concatenate([qk] * H, axis=0) * head_mask
                * scale).astype(bf16)                             # [H*BS, D]
        dots = jax.lax.dot_general(
            q_bd, k_n, (((1,), (1,)), ((), ())),
            preferred_element_type=f32) + attn_mask               # [H*BS, BS]
        m = jnp.max(dots, axis=-1, keepdims=True)
        e = jnp.exp(dots - m)
        l = jnp.sum(e, axis=-1, keepdims=True)
        p = e * pl.reciprocal(l, approx=True)
        o2 = jnp.dot(p.astype(bf16), v.astype(bf16),
                     preferred_element_type=f32) * head_mask      # [H*BS, D]
        attn = o2[0:BS]
        for hd in range(1, H):                       # fold head blocks back
            attn = attn + o2[hd * BS:(hd + 1) * BS]
        attn = jnp.dot(attn.astype(bf16), w_o,
                       preferred_element_type=f32) + vec[2:3, :D]
        y1 = x1 + attn

        # --- feed-forward block: y2 = x2 + FF(LN(y1)) ------------------------
        f_in = _layernorm(y1, vec[3:4, :D], vec[4:5, :D])
        ff = jnp.dot(f_in.astype(bf16), w_ff1,
                     preferred_element_type=f32) + vec[6:7, :]
        ff = jax.nn.gelu(ff, approximate=True)
        ff = jnp.dot(ff.astype(bf16), w_ff2,
                     preferred_element_type=f32) + vec[5:6, :D]
        y2 = x2 + ff
        x1, x2 = y1, y2

    xm = (x1 + x2) * 0.5                                          # [BS, D]

    # ---- classifier: logits[b] = flatten(xm_b) @ final_w + final_b ----------
    # w4[d, s*C+c] = final_w[s*D+d, c]; select s == position(row); collapse
    # the position lane-blocks with an identity tile; batch-sum with bsel.
    y = jnp.dot(xm.astype(bf16), w4_ref[...], preferred_element_type=f32)
    z = (y * sel_ref[...].astype(f32)).astype(bf16)
    zc = jnp.dot(z, eye_ref[...], preferred_element_type=f32)     # [BS, C]
    logits = jnp.dot(bsel, zc.astype(bf16),
                     preferred_element_type=f32) + fb_ref[...]
    out_ref[...] = logits.astype(out_ref.dtype)


def _kernel_cls(ids_ref, table_ref, wmat1_ref, wmat2_ref, vecs_ref, w4_ref,
                sel_ref, eye_ref, fb_ref, out_ref, *, batch, seq, vocab,
                depth, heads):
    # one-hot over [token id | position]; a single MXU pass does both the
    # embedding lookup AND the positional-encoding add.
    BS = batch * seq
    col = _iota((BS, vocab + seq), 1)
    row = _iota((BS, vocab + seq), 0)
    oh = ids_ref[...] == col
    for b in range(batch):
        oh = oh | ((col >= vocab) & (row == col - vocab + b * seq))
    h0 = jnp.dot(oh.astype(jnp.bfloat16), table_ref[...],
                 preferred_element_type=jnp.float32)
    _reformer_core(h0, wmat1_ref, wmat2_ref, vecs_ref, w4_ref, sel_ref,
                   eye_ref, fb_ref, out_ref,
                   batch=batch, seq=seq, depth=depth, heads=heads)


def _kernel_add(x_ref, lin_w_ref, lin_b_ref, wmat1_ref, wmat2_ref, vecs_ref,
                w4_ref, sel_ref, eye_ref, fb_ref, out_ref, *, batch, seq,
                depth, heads):
    h0 = jnp.dot(x_ref[...].astype(jnp.bfloat16), lin_w_ref[...],
                 preferred_element_type=jnp.float32) + lin_b_ref[...]
    _reformer_core(h0, wmat1_ref, wmat2_ref, vecs_ref, w4_ref, sel_ref,
                   eye_ref, fb_ref, out_ref,
                   batch=batch, seq=seq, depth=depth, heads=heads)


# ----------------------------------------------------------------------------
# Wrapper: one grid-less pallas_call per forward pass
# ----------------------------------------------------------------------------
def reformer_head_forward(params, x, heads, problem):
    f32, bf16 = jnp.float32, jnp.bfloat16
    layers = params["layers"]
    depth = len(layers)
    n_vec, dim = params["posenc"].shape
    n_class = params["final_b"].shape[0]
    vocab = params["encoder"].shape[0]
    B = x.shape[0]
    BS = B * n_vec
    hid = layers[0]["ff_w1"].shape[1]          # 4 * dim

    # pack per-layer matrices into a few bf16 VMEM slabs
    wmat1 = jnp.stack(
        [jnp.concatenate([l["ff_w1"], l["w_qk"], l["w_v"], l["w_o"]], axis=1)
         for l in layers], axis=0).astype(bf16)          # [depth, D, 7D]
    wmat2 = jnp.stack([l["ff_w2"] for l in layers], axis=0).astype(bf16)

    def row(v):
        return jnp.pad(v, (0, hid - v.shape[0]))

    vecs = jnp.stack(
        [jnp.stack([row(l["attn_ln_g"]), row(l["attn_ln_b"]), row(l["b_o"]),
                    row(l["ff_ln_g"]), row(l["ff_ln_b"]), row(l["ff_b2"]),
                    row(l["ff_b1"]), jnp.zeros((hid,), f32)], axis=0)
         for l in layers], axis=0).astype(f32)           # [depth, 8, 4D] f32

    # classifier weights reorganised so no flatten happens in-kernel
    w4 = params["final_w"].reshape(n_vec, dim, n_class).transpose(1, 0, 2)
    w4 = w4.reshape(dim, n_vec * n_class).astype(bf16)   # [D, S*C]
    sel = (jnp.arange(BS)[:, None] % n_vec ==
           jnp.arange(n_vec * n_class)[None, :] // n_class).astype(bf16)
    eye_t = jnp.tile(jnp.eye(n_class, dtype=bf16), (n_vec, 1))   # [S*C, C]
    fb = params["final_b"].reshape(1, n_class).astype(f32)

    trunk = [wmat1, wmat2, vecs, w4, sel, eye_t, fb]

    if problem == "adding":
        kernel = functools.partial(_kernel_add, batch=B, seq=n_vec,
                                   depth=depth, heads=heads)
        args = [x.reshape(BS, x.shape[-1]).astype(f32),
                params["lin_w"].astype(bf16),
                params["lin_b"].reshape(1, dim).astype(f32)] + trunk
    else:
        # embedding + posenc folded into the kernel via a combined table
        table = jnp.concatenate([params["encoder"], params["posenc"]],
                                axis=0).astype(bf16)     # [vocab + S, D]
        ids = x[..., 0].reshape(BS, 1).astype(jnp.int32)
        kernel = functools.partial(_kernel_cls, batch=B, seq=n_vec,
                                   vocab=vocab, depth=depth, heads=heads)
        args = [ids, table] + trunk

    return pl.pallas_call(
        kernel,
        out_shape=jax.ShapeDtypeStruct((B, n_class), f32),
    )(*args)


# ----------------------------------------------------------------------------
# Parameter init (matches the original module's structure)
# ----------------------------------------------------------------------------
def init_params(key, vocab_size, dim, heads, depth, n_vec, n_class):
    keys = jax.random.split(key, 8 + depth)

    def w(k, shape, scale=0.02):
        return (scale * jax.random.normal(k, shape)).astype(jnp.float32)

    params = {
        "encoder": w(keys[0], (vocab_size, dim)),
        "posenc": w(keys[1], (n_vec, dim)),
        "lin_w": w(keys[2], (2, dim)),
        "lin_b": jnp.zeros((dim,), jnp.float32),
        "final_w": w(keys[3], (n_vec * dim, n_class)),
        "final_b": jnp.zeros((n_class,), jnp.float32),
        "layers": [],
    }
    for d in range(depth):
        lk = jax.random.split(keys[4 + d], 6)
        params["layers"].append({
            "attn_ln_g": jnp.ones((dim,), jnp.float32),
            "attn_ln_b": jnp.zeros((dim,), jnp.float32),
            "w_qk": w(lk[0], (dim, dim)),
            "w_v": w(lk[1], (dim, dim)),
            "w_o": w(lk[2], (dim, dim)),
            "b_o": jnp.zeros((dim,), jnp.float32),
            "ff_ln_g": jnp.ones((dim,), jnp.float32),
            "ff_ln_b": jnp.zeros((dim,), jnp.float32),
            "ff_w1": w(lk[3], (dim, 4 * dim)),
            "ff_b1": jnp.zeros((4 * dim,), jnp.float32),
            "ff_w2": w(lk[4], (4 * dim, dim)),
            "ff_b2": jnp.zeros((dim,), jnp.float32),
        })
    return params


if __name__ == "__main__":
    vocab_size, dim, heads, depth, n_vec, n_class = 32, 32, 4, 2, 16, 10
    problem = "classification"

    key = jax.random.PRNGKey(0)
    pkey, xkey = jax.random.split(key)
    params = init_params(pkey, vocab_size, dim, heads, depth, n_vec, n_class)

    # token-id input, shape [B, n_vec, 1] (matches encoder(x).squeeze(-2))
    x = jax.random.randint(xkey, (2, n_vec, 1), 0, vocab_size, dtype=jnp.int32)

    fwd = jax.jit(functools.partial(reformer_head_forward, heads=heads,
                                    problem=problem))
    out = fwd(params, x)
    jax.block_until_ready(out)
    assert out.shape == (2, n_class)
    print("KERNEL_OK")
</pallas_src>

<mosaic_0001>
module attributes {stable_mosaic.version = 11 : i64} {
  func.func @_kernel_cls(%arg0: memref<32x1xi32, #tpu.memory_space<vmem>>, %arg1: memref<48x32xbf16, #tpu.memory_space<vmem>>, %arg2: memref<2x32x224xbf16, #tpu.memory_space<vmem>>, %arg3: memref<2x128x32xbf16, #tpu.memory_space<vmem>>, %arg4: memref<2x8x128xf32, #tpu.memory_space<vmem>>, %arg5: memref<32x160xbf16, #tpu.memory_space<vmem>>, %arg6: memref<32x160xbf16, #tpu.memory_space<vmem>>, %arg7: memref<160x10xbf16, #tpu.memory_space<vmem>>, %arg8: memref<1x10xf32, #tpu.memory_space<vmem>>, %arg9: memref<2x10xf32, #tpu.memory_space<vmem>>) attributes {dimension_semantics = [], scalar_prefetch = 0 : i64, scratch_operands = 0 : i64, tpu.core_type = #tpu.core_type<tc>} {
    %0 = tpu.iota {dimensions = array<i32: 1>} : vector<32x48xi32>
    %1 = tpu.iota {dimensions = array<i32: 0>} : vector<32x48xi32>
    %c0 = arith.constant 0 : index
    %c0_0 = arith.constant 0 : index
    %2 = vector.load %arg0[%c0, %c0_0] : memref<32x1xi32, #tpu.memory_space<vmem>>, vector<32x1xi32>
    %3 = vector.broadcast %2 : vector<32x1xi32> to vector<32x48xi32>
    %4 = arith.cmpi eq, %3, %0 : vector<32x48xi32>
    %c32_i32 = arith.constant 32 : i32
    %5 = vector.broadcast %c32_i32 : i32 to vector<32x48xi32>
    %6 = arith.cmpi sge, %0, %5 : vector<32x48xi32>
    %c32_i32_1 = arith.constant 32 : i32
    %7 = vector.broadcast %c32_i32_1 : i32 to vector<32x48xi32>
    %8 = arith.subi %0, %7 : vector<32x48xi32>
    %c0_i32 = arith.constant 0 : i32
    %9 = vector.broadcast %c0_i32 : i32 to vector<32x48xi32>
    %10 = arith.addi %8, %9 : vector<32x48xi32>
    %11 = arith.cmpi eq, %1, %10 : vector<32x48xi32>
    %12 = arith.andi %6, %11 : vector<32x48xi1>
    %13 = arith.ori %4, %12 : vector<32x48xi1>
    %c32_i32_2 = arith.constant 32 : i32
    %14 = vector.broadcast %c32_i32_2 : i32 to vector<32x48xi32>
    %15 = arith.cmpi sge, %0, %14 : vector<32x48xi32>
    %c32_i32_3 = arith.constant 32 : i32
    %16 = vector.broadcast %c32_i32_3 : i32 to vector<32x48xi32>
    %17 = arith.subi %0, %16 : vector<32x48xi32>
    %c16_i32 = arith.constant 16 : i32
    %18 = vector.broadcast %c16_i32 : i32 to vector<32x48xi32>
    %19 = arith.addi %17, %18 : vector<32x48xi32>
    %20 = arith.cmpi eq, %1, %19 : vector<32x48xi32>
    %21 = arith.andi %15, %20 : vector<32x48xi1>
    %22 = arith.ori %13, %21 : vector<32x48xi1>
    %23 = arith.extui %22 : vector<32x48xi1> to vector<32x48xi32>
    %24 = arith.sitofp %23 : vector<32x48xi32> to vector<32x48xf32>
    %25 = arith.truncf %24 : vector<32x48xf32> to vector<32x48xbf16>
    %c0_4 = arith.constant 0 : index
    %c0_5 = arith.constant 0 : index
    %26 = vector.load %arg1[%c0_4, %c0_5] : memref<48x32xbf16, #tpu.memory_space<vmem>>, vector<48x32xbf16>
    %cst = arith.constant dense<0.000000e+00> : vector<32x32xf32>
    %27 = tpu.matmul %25, %26, %cst {dimension_numbers = #tpu.dot_dimension_numbers<[1], [0], [0], [1], [0, 0, 1, 1], [], []>} : vector<32x48xbf16>, vector<48x32xbf16>, vector<32x32xf32> -> vector<32x32xf32>
    %28 = tpu.iota {dimensions = array<i32: 0>} : vector<32x32xi32>
    %29 = tpu.iota {dimensions = array<i32: 1>} : vector<32x32xi32>
    %false = arith.constant false
    %30 = vector.broadcast %false : i1 to vector<32x32xi1>
    %c0_i32_6 = arith.constant 0 : i32
    %31 = vector.broadcast %c0_i32_6 : i32 to vector<32x32xi32>
    %32 = arith.cmpi sge, %28, %31 : vector<32x32xi32>
    %c16_i32_7 = arith.constant 16 : i32
    %33 = vector.broadcast %c16_i32_7 : i32 to vector<32x32xi32>
    %34 = arith.cmpi slt, %28, %33 : vector<32x32xi32>
    %35 = arith.andi %32, %34 : vector<32x32xi1>
    %c0_i32_8 = arith.constant 0 : i32
    %36 = vector.broadcast %c0_i32_8 : i32 to vector<32x32xi32>
    %37 = arith.cmpi sge, %29, %36 : vector<32x32xi32>
    %38 = arith.andi %35, %37 : vector<32x32xi1>
    %c16_i32_9 = arith.constant 16 : i32
    %39 = vector.broadcast %c16_i32_9 : i32 to vector<32x32xi32>
    %40 = arith.cmpi slt, %29, %39 : vector<32x32xi32>
    %41 = arith.andi %38, %40 : vector<32x32xi1>
    %42 = arith.ori %30, %41 : vector<32x32xi1>
    %c16_i32_10 = arith.constant 16 : i32
    %43 = vector.broadcast %c16_i32_10 : i32 to vector<32x32xi32>
    %44 = arith.cmpi sge, %28, %43 : vector<32x32xi32>
    %c32_i32_11 = arith.constant 32 : i32
    %45 = vector.broadcast %c32_i32_11 : i32 to vector<32x32xi32>
    %46 = arith.cmpi slt, %28, %45 : vector<32x32xi32>
    %47 = arith.andi %44, %46 : vector<32x32xi1>
    %c16_i32_12 = arith.constant 16 : i32
    %48 = vector.broadcast %c16_i32_12 : i32 to vector<32x32xi32>
    %49 = arith.cmpi sge, %29, %48 : vector<32x32xi32>
    %50 = arith.andi %47, %49 : vector<32x32xi1>
    %c32_i32_13 = arith.constant 32 : i32
    %51 = vector.broadcast %c32_i32_13 : i32 to vector<32x32xi32>
    %52 = arith.cmpi slt, %29, %51 : vector<32x32xi32>
    %53 = arith.andi %50, %52 : vector<32x32xi1>
    %54 = arith.ori %42, %53 : vector<32x32xi1>
    %55 = arith.cmpi eq, %29, %28 : vector<32x32xi32>
    %56 = arith.cmpi slt, %29, %28 : vector<32x32xi32>
    %57 = arith.andi %54, %56 : vector<32x32xi1>
    %cst_14 = arith.constant 0.000000e+00 : f32
    %cst_15 = arith.constant -1.000000e+09 : f32
    %58 = vector.broadcast %cst_14 : f32 to vector<32x32xf32>
    %59 = vector.broadcast %cst_15 : f32 to vector<32x32xf32>
    %60 = arith.select %57, %58, %59 : vector<32x32xi1>, vector<32x32xf32>
    %cst_16 = arith.constant -5.000000e+04 : f32
    %61 = vector.broadcast %cst_16 : f32 to vector<32x32xf32>
    %62 = arith.select %55, %61, %60 : vector<32x32xi1>, vector<32x32xf32>
    %63 = tpu.concatenate %62, %62, %62, %62 in 0 : vector<32x32xf32>, vector<32x32xf32>, vector<32x32xf32>, vector<32x32xf32> -> vector<128x32xf32>
    %64 = tpu.iota {dimensions = array<i32: 1>} : vector<32x32xi32>
    %c0_i32_17 = arith.constant 0 : i32
    %65 = vector.broadcast %c0_i32_17 : i32 to vector<32x32xi32>
    %66 = arith.cmpi sge, %64, %65 : vector<32x32xi32>
    %c8_i32 = arith.constant 8 : i32
    %67 = vector.broadcast %c8_i32 : i32 to vector<32x32xi32>
    %68 = arith.cmpi slt, %64, %67 : vector<32x32xi32>
    %69 = arith.andi %66, %68 : vector<32x32xi1>
    %70 = arith.extui %69 : vector<32x32xi1> to vector<32x32xi32>
    %71 = arith.sitofp %70 : vector<32x32xi32> to vector<32x32xf32>
    %c8_i32_18 = arith.constant 8 : i32
    %72 = vector.broadcast %c8_i32_18 : i32 to vector<32x32xi32>
    %73 = arith.cmpi sge, %64, %72 : vector<32x32xi32>
    %c16_i32_19 = arith.constant 16 : i32
    %74 = vector.broadcast %c16_i32_19 : i32 to vector<32x32xi32>
    %75 = arith.cmpi slt, %64, %74 : vector<32x32xi32>
    %76 = arith.andi %73, %75 : vector<32x32xi1>
    %77 = arith.extui %76 : vector<32x32xi1> to vector<32x32xi32>
    %78 = arith.sitofp %77 : vector<32x32xi32> to vector<32x32xf32>
    %c16_i32_20 = arith.constant 16 : i32
    %79 = vector.broadcast %c16_i32_20 : i32 to vector<32x32xi32>
    %80 = arith.cmpi sge, %64, %79 : vector<32x32xi32>
    %c24_i32 = arith.constant 24 : i32
    %81 = vector.broadcast %c24_i32 : i32 to vector<32x32xi32>
    %82 = arith.cmpi slt, %64, %81 : vector<32x32xi32>
    %83 = arith.andi %80, %82 : vector<32x32xi1>
    %84 = arith.extui %83 : vector<32x32xi1> to vector<32x32xi32>
    %85 = arith.sitofp %84 : vector<32x32xi32> to vector<32x32xf32>
    %c24_i32_21 = arith.constant 24 : i32
    %86 = vector.broadcast %c24_i32_21 : i32 to vector<32x32xi32>
    %87 = arith.cmpi sge, %64, %86 : vector<32x32xi32>
    %c32_i32_22 = arith.constant 32 : i32
    %88 = vector.broadcast %c32_i32_22 : i32 to vector<32x32xi32>
    %89 = arith.cmpi slt, %64, %88 : vector<32x32xi32>
    %90 = arith.andi %87, %89 : vector<32x32xi1>
    %91 = arith.extui %90 : vector<32x32xi1> to vector<32x32xi32>
    %92 = arith.sitofp %91 : vector<32x32xi32> to vector<32x32xf32>
    %93 = tpu.concatenate %71, %78, %85, %92 in 0 : vector<32x32xf32>, vector<32x32xf32>, vector<32x32xf32>, vector<32x32xf32> -> vector<128x32xf32>
    %94 = tpu.iota {dimensions = array<i32: 0>} : vector<32x32xi32>
    %95 = tpu.iota {dimensions = array<i32: 1>} : vector<32x32xi32>
    %false_23 = arith.constant false
    %96 = vector.broadcast %false_23 : i1 to vector<32x32xi1>
    %c0_i32_24 = arith.constant 0 : i32
    %97 = vector.broadcast %c0_i32_24 : i32 to vector<32x32xi32>
    %98 = arith.cmpi sge, %94, %97 : vector<32x32xi32>
    %c8_i32_25 = arith.constant 8 : i32
    %99 = vector.broadcast %c8_i32_25 : i32 to vector<32x32xi32>
    %100 = arith.cmpi slt, %94, %99 : vector<32x32xi32>
    %101 = arith.andi %98, %100 : vector<32x32xi1>
    %c0_i32_26 = arith.constant 0 : i32
    %102 = vector.broadcast %c0_i32_26 : i32 to vector<32x32xi32>
    %103 = arith.cmpi sge, %95, %102 : vector<32x32xi32>
    %104 = arith.andi %101, %103 : vector<32x32xi1>
    %c8_i32_27 = arith.constant 8 : i32
    %105 = vector.broadcast %c8_i32_27 : i32 to vector<32x32xi32>
    %106 = arith.cmpi slt, %95, %105 : vector<32x32xi32>
    %107 = arith.andi %104, %106 : vector<32x32xi1>
    %108 = arith.ori %96, %107 : vector<32x32xi1>
    %c8_i32_28 = arith.constant 8 : i32
    %109 = vector.broadcast %c8_i32_28 : i32 to vector<32x32xi32>
    %110 = arith.cmpi sge, %94, %109 : vector<32x32xi32>
    %c16_i32_29 = arith.constant 16 : i32
    %111 = vector.broadcast %c16_i32_29 : i32 to vector<32x32xi32>
    %112 = arith.cmpi slt, %94, %111 : vector<32x32xi32>
    %113 = arith.andi %110, %112 : vector<32x32xi1>
    %c8_i32_30 = arith.constant 8 : i32
    %114 = vector.broadcast %c8_i32_30 : i32 to vector<32x32xi32>
    %115 = arith.cmpi sge, %95, %114 : vector<32x32xi32>
    %116 = arith.andi %113, %115 : vector<32x32xi1>
    %c16_i32_31 = arith.constant 16 : i32
    %117 = vector.broadcast %c16_i32_31 : i32 to vector<32x32xi32>
    %118 = arith.cmpi slt, %95, %117 : vector<32x32xi32>
    %119 = arith.andi %116, %118 : vector<32x32xi1>
    %120 = arith.ori %108, %119 : vector<32x32xi1>
    %c16_i32_32 = arith.constant 16 : i32
    %121 = vector.broadcast %c16_i32_32 : i32 to vector<32x32xi32>
    %122 = arith.cmpi sge, %94, %121 : vector<32x32xi32>
    %c24_i32_33 = arith.constant 24 : i32
    %123 = vector.broadcast %c24_i32_33 : i32 to vector<32x32xi32>
    %124 = arith.cmpi slt, %94, %123 : vector<32x32xi32>
    %125 = arith.andi %122, %124 : vector<32x32xi1>
    %c16_i32_34 = arith.constant 16 : i32
    %126 = vector.broadcast %c16_i32_34 : i32 to vector<32x32xi32>
    %127 = arith.cmpi sge, %95, %126 : vector<32x32xi32>
    %128 = arith.andi %125, %127 : vector<32x32xi1>
    %c24_i32_35 = arith.constant 24 : i32
    %129 = vector.broadcast %c24_i32_35 : i32 to vector<32x32xi32>
    %130 = arith.cmpi slt, %95, %129 : vector<32x32xi32>
    %131 = arith.andi %128, %130 : vector<32x32xi1>
    %132 = arith.ori %120, %131 : vector<32x32xi1>
    %c24_i32_36 = arith.constant 24 : i32
    %133 = vector.broadcast %c24_i32_36 : i32 to vector<32x32xi32>
    %134 = arith.cmpi sge, %94, %133 : vector<32x32xi32>
    %c32_i32_37 = arith.constant 32 : i32
    %135 = vector.broadcast %c32_i32_37 : i32 to vector<32x32xi32>
    %136 = arith.cmpi slt, %94, %135 : vector<32x32xi32>
    %137 = arith.andi %134, %136 : vector<32x32xi1>
    %c24_i32_38 = arith.constant 24 : i32
    %138 = vector.broadcast %c24_i32_38 : i32 to vector<32x32xi32>
    %139 = arith.cmpi sge, %95, %138 : vector<32x32xi32>
    %140 = arith.andi %137, %139 : vector<32x32xi1>
    %c32_i32_39 = arith.constant 32 : i32
    %141 = vector.broadcast %c32_i32_39 : i32 to vector<32x32xi32>
    %142 = arith.cmpi slt, %95, %141 : vector<32x32xi32>
    %143 = arith.andi %140, %142 : vector<32x32xi1>
    %144 = arith.ori %132, %143 : vector<32x32xi1>
    %145 = arith.extui %144 : vector<32x32xi1> to vector<32x32xi32>
    %146 = arith.sitofp %145 : vector<32x32xi32> to vector<32x32xf32>
    %147 = arith.truncf %146 : vector<32x32xf32> to vector<32x32xbf16>
    %148 = tpu.iota {dimensions = array<i32: 0>} : vector<2x32xi32>
    %149 = tpu.iota {dimensions = array<i32: 1>} : vector<2x32xi32>
    %false_40 = arith.constant false
    %150 = vector.broadcast %false_40 : i1 to vector<2x32xi1>
    %c0_i32_41 = arith.constant 0 : i32
    %151 = vector.broadcast %c0_i32_41 : i32 to vector<2x32xi32>
    %152 = arith.cmpi eq, %148, %151 : vector<2x32xi32>
    %c0_i32_42 = arith.constant 0 : i32
    %153 = vector.broadcast %c0_i32_42 : i32 to vector<2x32xi32>
    %154 = arith.cmpi sge, %149, %153 : vector<2x32xi32>
    %155 = arith.andi %152, %154 : vector<2x32xi1>
    %c16_i32_43 = arith.constant 16 : i32
    %156 = vector.broadcast %c16_i32_43 : i32 to vector<2x32xi32>
    %157 = arith.cmpi slt, %149, %156 : vector<2x32xi32>
    %158 = arith.andi %155, %157 : vector<2x32xi1>
    %159 = arith.ori %150, %158 : vector<2x32xi1>
    %c1_i32 = arith.constant 1 : i32
    %160 = vector.broadcast %c1_i32 : i32 to vector<2x32xi32>
    %161 = arith.cmpi eq, %148, %160 : vector<2x32xi32>
    %c16_i32_44 = arith.constant 16 : i32
    %162 = vector.broadcast %c16_i32_44 : i32 to vector<2x32xi32>
    %163 = arith.cmpi sge, %149, %162 : vector<2x32xi32>
    %164 = arith.andi %161, %163 : vector<2x32xi1>
    %c32_i32_45 = arith.constant 32 : i32
    %165 = vector.broadcast %c32_i32_45 : i32 to vector<2x32xi32>
    %166 = arith.cmpi slt, %149, %165 : vector<2x32xi32>
    %167 = arith.andi %164, %166 : vector<2x32xi1>
    %168 = arith.ori %159, %167 : vector<2x32xi1>
    %169 = arith.extui %168 : vector<2x32xi1> to vector<2x32xi32>
    %170 = arith.sitofp %169 : vector<2x32xi32> to vector<2x32xf32>
    %171 = arith.truncf %170 : vector<2x32xf32> to vector<2x32xbf16>
    %c0_46 = arith.constant 0 : index
    %c0_47 = arith.constant 0 : index
    %c0_48 = arith.constant 0 : index
    %172 = vector.load %arg2[%c0_46, %c0_47, %c0_48] : memref<2x32x224xbf16, #tpu.memory_space<vmem>>, vector<1x32x224xbf16>
    %173 = vector.shape_cast %172 : vector<1x32x224xbf16> to vector<32x224xbf16>
    %174 = vector.extract_strided_slice %173 {offsets = [0, 0], sizes = [32, 128], strides = [1, 1]} : vector<32x224xbf16> to vector<32x128xbf16>
    %175 = vector.extract_strided_slice %173 {offsets = [0, 128], sizes = [32, 64], strides = [1, 1]} : vector<32x224xbf16> to vector<32x64xbf16>
    %176 = vector.extract_strided_slice %173 {offsets = [0, 192], sizes = [32, 32], strides = [1, 1]} : vector<32x224xbf16> to vector<32x32xbf16>
    %c0_49 = arith.constant 0 : index
    %c0_50 = arith.constant 0 : index
    %c0_51 = arith.constant 0 : index
    %177 = vector.load %arg3[%c0_49, %c0_50, %c0_51] : memref<2x128x32xbf16, #tpu.memory_space<vmem>>, vector<1x128x32xbf16>
    %178 = vector.shape_cast %177 : vector<1x128x32xbf16> to vector<128x32xbf16>
    %c0_52 = arith.constant 0 : index
    %c0_53 = arith.constant 0 : index
    %c0_54 = arith.constant 0 : index
    %179 = vector.load %arg4[%c0_52, %c0_53, %c0_54] : memref<2x8x128xf32, #tpu.memory_space<vmem>>, vector<1x8x128xf32>
    %180 = vector.shape_cast %179 : vector<1x8x128xf32> to vector<8x128xf32>
    %181 = vector.extract_strided_slice %180 {offsets = [0, 0], sizes = [1, 32], strides = [1, 1]} : vector<8x128xf32> to vector<1x32xf32>
    %182 = vector.extract_strided_slice %180 {offsets = [1, 0], sizes = [1, 32], strides = [1, 1]} : vector<8x128xf32> to vector<1x32xf32>
    %cst_55 = arith.constant dense<0.000000e+00> : vector<32xf32>
    %183 = vector.multi_reduction <add>, %27, %cst_55 [1] : vector<32x32xf32> to vector<32xf32>
    %184 = vector.shape_cast %183 : vector<32xf32> to vector<32x1xf32>
    %cst_56 = arith.constant 3.200000e+01 : f32
    %185 = vector.broadcast %cst_56 : f32 to vector<32x1xf32>
    %186 = arith.divf %184, %185 : vector<32x1xf32>
    %187 = vector.broadcast %186 : vector<32x1xf32> to vector<32x32xf32>
    %188 = arith.subf %27, %187 : vector<32x32xf32>
    %189 = arith.mulf %188, %188 : vector<32x32xf32>
    %cst_57 = arith.constant dense<0.000000e+00> : vector<32xf32>
    %190 = vector.multi_reduction <add>, %189, %cst_57 [1] : vector<32x32xf32> to vector<32xf32>
    %191 = vector.shape_cast %190 : vector<32xf32> to vector<32x1xf32>
    %cst_58 = arith.constant 3.200000e+01 : f32
    %192 = vector.broadcast %cst_58 : f32 to vector<32x1xf32>
    %193 = arith.divf %191, %192 : vector<32x1xf32>
    %194 = vector.broadcast %186 : vector<32x1xf32> to vector<32x32xf32>
    %195 = arith.subf %27, %194 : vector<32x32xf32>
    %cst_59 = arith.constant 9.99999974E-6 : f32
    %196 = vector.broadcast %cst_59 : f32 to vector<32x1xf32>
    %197 = arith.addf %193, %196 : vector<32x1xf32>
    %198 = math.rsqrt %197 : vector<32x1xf32>
    %199 = vector.broadcast %198 : vector<32x1xf32> to vector<32x32xf32>
    %200 = arith.mulf %195, %199 : vector<32x32xf32>
    %201 = vector.broadcast %181 : vector<1x32xf32> to vector<32x32xf32>
    %202 = arith.mulf %200, %201 : vector<32x32xf32>
    %203 = vector.broadcast %182 : vector<1x32xf32> to vector<32x32xf32>
    %204 = arith.addf %202, %203 : vector<32x32xf32>
    %205 = arith.truncf %204 : vector<32x32xf32> to vector<32x32xbf16>
    %cst_60 = arith.constant dense<0.000000e+00> : vector<32x64xf32>
    %206 = tpu.matmul %205, %175, %cst_60 {dimension_numbers = #tpu.dot_dimension_numbers<[1], [0], [0], [1], [0, 0, 1, 1], [], []>} : vector<32x32xbf16>, vector<32x64xbf16>, vector<32x64xf32> -> vector<32x64xf32>
    %207 = vector.extract_strided_slice %206 {offsets = [0, 0], sizes = [32, 32], strides = [1, 1]} : vector<32x64xf32> to vector<32x32xf32>
    %208 = vector.extract_strided_slice %206 {offsets = [0, 32], sizes = [32, 32], strides = [1, 1]} : vector<32x64xf32> to vector<32x32xf32>
    %209 = arith.mulf %207, %207 : vector<32x32xf32>
    %210 = arith.truncf %209 : vector<32x32xf32> to vector<32x32xbf16>
    %cst_61 = arith.constant dense<0.000000e+00> : vector<32x32xf32>
    %211 = tpu.matmul %210, %147, %cst_61 {dimension_numbers = #tpu.dot_dimension_numbers<[1], [0], [0], [1], [0, 0, 1, 1], [], []>} : vector<32x32xbf16>, vector<32x32xbf16>, vector<32x32xf32> -> vector<32x32xf32>
    %cst_62 = arith.constant 9.99999996E-13 : f32
    %212 = vector.broadcast %cst_62 : f32 to vector<32x32xf32>
    %213 = arith.addf %211, %212 : vector<32x32xf32>
    %214 = math.rsqrt %213 : vector<32x32xf32>
    %215 = arith.mulf %207, %214 : vector<32x32xf32>
    %216 = arith.truncf %215 : vector<32x32xf32> to vector<32x32xbf16>
    %217 = tpu.concatenate %207, %207, %207, %207 in 0 : vector<32x32xf32>, vector<32x32xf32>, vector<32x32xf32>, vector<32x32xf32> -> vector<128x32xf32>
    %218 = arith.mulf %217, %93 : vector<128x32xf32>
    %cst_63 = arith.constant 0.353553385 : f32
    %219 = vector.broadcast %cst_63 : f32 to vector<128x32xf32>
    %220 = arith.mulf %218, %219 : vector<128x32xf32>
    %221 = arith.truncf %220 : vector<128x32xf32> to vector<128x32xbf16>
    %cst_64 = arith.constant dense<0.000000e+00> : vector<128x32xf32>
    %222 = tpu.matmul %221, %216, %cst_64 {dimension_numbers = #tpu.dot_dimension_numbers<[1], [1], [0], [0], [0, 0, 1, 0], [], []>} : vector<128x32xbf16>, vector<32x32xbf16>, vector<128x32xf32> -> vector<128x32xf32>
    %223 = arith.addf %222, %63 : vector<128x32xf32>
    %cst_65 = arith.constant dense<0xFF800000> : vector<128xf32>
    %224 = vector.multi_reduction <maximumf>, %223, %cst_65 [1] : vector<128x32xf32> to vector<128xf32>
    %225 = vector.shape_cast %224 : vector<128xf32> to vector<128x1xf32>
    %226 = vector.broadcast %225 : vector<128x1xf32> to vector<128x32xf32>
    %227 = arith.subf %223, %226 : vector<128x32xf32>
    %228 = math.exp %227 : vector<128x32xf32>
    %cst_66 = arith.constant dense<0.000000e+00> : vector<128xf32>
    %229 = vector.multi_reduction <add>, %228, %cst_66 [1] : vector<128x32xf32> to vector<128xf32>
    %230 = vector.shape_cast %229 : vector<128xf32> to vector<128x1xf32>
    %231 = tpu.reciprocal %230 {approx = true} : vector<128x1xf32> -> vector<128x1xf32>
    %232 = vector.broadcast %231 : vector<128x1xf32> to vector<128x32xf32>
    %233 = arith.mulf %228, %232 : vector<128x32xf32>
    %234 = arith.truncf %233 : vector<128x32xf32> to vector<128x32xbf16>
    %235 = arith.truncf %208 : vector<32x32xf32> to vector<32x32xbf16>
    %cst_67 = arith.constant dense<0.000000e+00> : vector<128x32xf32>
    %236 = tpu.matmul %234, %235, %cst_67 {dimension_numbers = #tpu.dot_dimension_numbers<[1], [0], [0], [1], [0, 0, 1, 1], [], []>} : vector<128x32xbf16>, vector<32x32xbf16>, vector<128x32xf32> -> vector<128x32xf32>
    %237 = arith.mulf %236, %93 : vector<128x32xf32>
    %238 = vector.extract_strided_slice %237 {offsets = [0, 0], sizes = [32, 32], strides = [1, 1]} : vector<128x32xf32> to vector<32x32xf32>
    %239 = vector.extract_strided_slice %237 {offsets = [32, 0], sizes = [32, 32], strides = [1, 1]} : vector<128x32xf32> to vector<32x32xf32>
    %240 = arith.addf %238, %239 : vector<32x32xf32>
    %241 = vector.extract_strided_slice %237 {offsets = [64, 0], sizes = [32, 32], strides = [1, 1]} : vector<128x32xf32> to vector<32x32xf32>
    %242 = arith.addf %240, %241 : vector<32x32xf32>
    %243 = vector.extract_strided_slice %237 {offsets = [96, 0], sizes = [32, 32], strides = [1, 1]} : vector<128x32xf32> to vector<32x32xf32>
    %244 = arith.addf %242, %243 : vector<32x32xf32>
    %245 = arith.truncf %244 : vector<32x32xf32> to vector<32x32xbf16>
    %cst_68 = arith.constant dense<0.000000e+00> : vector<32x32xf32>
    %246 = tpu.matmul %245, %176, %cst_68 {dimension_numbers = #tpu.dot_dimension_numbers<[1], [0], [0], [1], [0, 0, 1, 1], [], []>} : vector<32x32xbf16>, vector<32x32xbf16>, vector<32x32xf32> -> vector<32x32xf32>
    %247 = vector.extract_strided_slice %180 {offsets = [2, 0], sizes = [1, 32], strides = [1, 1]} : vector<8x128xf32> to vector<1x32xf32>
    %248 = vector.broadcast %247 : vector<1x32xf32> to vector<32x32xf32>
    %249 = arith.addf %246, %248 : vector<32x32xf32>
    %250 = arith.addf %27, %249 : vector<32x32xf32>
    %251 = vector.extract_strided_slice %180 {offsets = [3, 0], sizes = [1, 32], strides = [1, 1]} : vector<8x128xf32> to vector<1x32xf32>
    %252 = vector.extract_strided_slice %180 {offsets = [4, 0], sizes = [1, 32], strides = [1, 1]} : vector<8x128xf32> to vector<1x32xf32>
    %cst_69 = arith.constant dense<0.000000e+00> : vector<32xf32>
    %253 = vector.multi_reduction <add>, %250, %cst_69 [1] : vector<32x32xf32> to vector<32xf32>
    %254 = vector.shape_cast %253 : vector<32xf32> to vector<32x1xf32>
    %cst_70 = arith.constant 3.200000e+01 : f32
    %255 = vector.broadcast %cst_70 : f32 to vector<32x1xf32>
    %256 = arith.divf %254, %255 : vector<32x1xf32>
    %257 = vector.broadcast %256 : vector<32x1xf32> to vector<32x32xf32>
    %258 = arith.subf %250, %257 : vector<32x32xf32>
    %259 = arith.mulf %258, %258 : vector<32x32xf32>
    %cst_71 = arith.constant dense<0.000000e+00> : vector<32xf32>
    %260 = vector.multi_reduction <add>, %259, %cst_71 [1] : vector<32x32xf32> to vector<32xf32>
    %261 = vector.shape_cast %260 : vector<32xf32> to vector<32x1xf32>
    %cst_72 = arith.constant 3.200000e+01 : f32
    %262 = vector.broadcast %cst_72 : f32 to vector<32x1xf32>
    %263 = arith.divf %261, %262 : vector<32x1xf32>
    %264 = vector.broadcast %256 : vector<32x1xf32> to vector<32x32xf32>
    %265 = arith.subf %250, %264 : vector<32x32xf32>
    %cst_73 = arith.constant 9.99999974E-6 : f32
    %266 = vector.broadcast %cst_73 : f32 to vector<32x1xf32>
    %267 = arith.addf %263, %266 : vector<32x1xf32>
    %268 = math.rsqrt %267 : vector<32x1xf32>
    %269 = vector.broadcast %268 : vector<32x1xf32> to vector<32x32xf32>
    %270 = arith.mulf %265, %269 : vector<32x32xf32>
    %271 = vector.broadcast %251 : vector<1x32xf32> to vector<32x32xf32>
    %272 = arith.mulf %270, %271 : vector<32x32xf32>
    %273 = vector.broadcast %252 : vector<1x32xf32> to vector<32x32xf32>
    %274 = arith.addf %272, %273 : vector<32x32xf32>
    %275 = arith.truncf %274 : vector<32x32xf32> to vector<32x32xbf16>
    %cst_74 = arith.constant dense<0.000000e+00> : vector<32x128xf32>
    %276 = tpu.matmul %275, %174, %cst_74 {dimension_numbers = #tpu.dot_dimension_numbers<[1], [0], [0], [1], [0, 0, 1, 1], [], []>} : vector<32x32xbf16>, vector<32x128xbf16>, vector<32x128xf32> -> vector<32x128xf32>
    %277 = vector.extract_strided_slice %180 {offsets = [6, 0], sizes = [1, 128], strides = [1, 1]} : vector<8x128xf32> to vector<1x128xf32>
    %278 = vector.broadcast %277 : vector<1x128xf32> to vector<32x128xf32>
    %279 = arith.addf %276, %278 : vector<32x128xf32>
    %280 = arith.mulf %279, %279 : vector<32x128xf32>
    %281 = arith.mulf %279, %280 : vector<32x128xf32>
    %cst_75 = arith.constant 4.471500e-02 : f32
    %282 = vector.broadcast %cst_75 : f32 to vector<32x128xf32>
    %283 = arith.mulf %282, %281 : vector<32x128xf32>
    %284 = arith.addf %279, %283 : vector<32x128xf32>
    %cst_76 = arith.constant 0.797884583 : f32
    %285 = vector.broadcast %cst_76 : f32 to vector<32x128xf32>
    %286 = arith.mulf %285, %284 : vector<32x128xf32>
    %287 = math.tanh %286 : vector<32x128xf32>
    %cst_77 = arith.constant 1.000000e+00 : f32
    %288 = vector.broadcast %cst_77 : f32 to vector<32x128xf32>
    %289 = arith.addf %288, %287 : vector<32x128xf32>
    %cst_78 = arith.constant 5.000000e-01 : f32
    %290 = vector.broadcast %cst_78 : f32 to vector<32x128xf32>
    %291 = arith.mulf %290, %289 : vector<32x128xf32>
    %292 = arith.mulf %279, %291 : vector<32x128xf32>
    %293 = arith.truncf %292 : vector<32x128xf32> to vector<32x128xbf16>
    %cst_79 = arith.constant dense<0.000000e+00> : vector<32x32xf32>
    %294 = tpu.matmul %293, %178, %cst_79 {dimension_numbers = #tpu.dot_dimension_numbers<[1], [0], [0], [1], [0, 0, 1, 1], [], []>} : vector<32x128xbf16>, vector<128x32xbf16>, vector<32x32xf32> -> vector<32x32xf32>
    %295 = vector.extract_strided_slice %180 {offsets = [5, 0], sizes = [1, 32], strides = [1, 1]} : vector<8x128xf32> to vector<1x32xf32>
    %296 = vector.broadcast %295 : vector<1x32xf32> to vector<32x32xf32>
    %297 = arith.addf %294, %296 : vector<32x32xf32>
    %298 = arith.addf %27, %297 : vector<32x32xf32>
    %c1 = arith.constant 1 : index
    %c0_80 = arith.constant 0 : index
    %c0_81 = arith.constant 0 : index
    %299 = vector.load %arg2[%c1, %c0_80, %c0_81] : memref<2x32x224xbf16, #tpu.memory_space<vmem>>, vector<1x32x224xbf16>
    %300 = vector.shape_cast %299 : vector<1x32x224xbf16> to vector<32x224xbf16>
    %301 = vector.extract_strided_slice %300 {offsets = [0, 0], sizes = [32, 128], strides = [1, 1]} : vector<32x224xbf16> to vector<32x128xbf16>
    %302 = vector.extract_strided_slice %300 {offsets = [0, 128], sizes = [32, 64], strides = [1, 1]} : vector<32x224xbf16> to vector<32x64xbf16>
    %303 = vector.extract_strided_slice %300 {offsets = [0, 192], sizes = [32, 32], strides = [1, 1]} : vector<32x224xbf16> to vector<32x32xbf16>
    %c1_82 = arith.constant 1 : index
    %c0_83 = arith.constant 0 : index
    %c0_84 = arith.constant 0 : index
    %304 = vector.load %arg3[%c1_82, %c0_83, %c0_84] : memref<2x128x32xbf16, #tpu.memory_space<vmem>>, vector<1x128x32xbf16>
    %305 = vector.shape_cast %304 : vector<1x128x32xbf16> to vector<128x32xbf16>
    %c1_85 = arith.constant 1 : index
    %c0_86 = arith.constant 0 : index
    %c0_87 = arith.constant 0 : index
    %306 = vector.load %arg4[%c1_85, %c0_86, %c0_87] : memref<2x8x128xf32, #tpu.memory_space<vmem>>, vector<1x8x128xf32>
    %307 = vector.shape_cast %306 : vector<1x8x128xf32> to vector<8x128xf32>
    %308 = vector.extract_strided_slice %307 {offsets = [0, 0], sizes = [1, 32], strides = [1, 1]} : vector<8x128xf32> to vector<1x32xf32>
    %309 = vector.extract_strided_slice %307 {offsets = [1, 0], sizes = [1, 32], strides = [1, 1]} : vector<8x128xf32> to vector<1x32xf32>
    %cst_88 = arith.constant dense<0.000000e+00> : vector<32xf32>
    %310 = vector.multi_reduction <add>, %298, %cst_88 [1] : vector<32x32xf32> to vector<32xf32>
    %311 = vector.shape_cast %310 : vector<32xf32> to vector<32x1xf32>
    %cst_89 = arith.constant 3.200000e+01 : f32
    %312 = vector.broadcast %cst_89 : f32 to vector<32x1xf32>
    %313 = arith.divf %311, %312 : vector<32x1xf32>
    %314 = vector.broadcast %313 : vector<32x1xf32> to vector<32x32xf32>
    %315 = arith.subf %298, %314 : vector<32x32xf32>
    %316 = arith.mulf %315, %315 : vector<32x32xf32>
    %cst_90 = arith.constant dense<0.000000e+00> : vector<32xf32>
    %317 = vector.multi_reduction <add>, %316, %cst_90 [1] : vector<32x32xf32> to vector<32xf32>
    %318 = vector.shape_cast %317 : vector<32xf32> to vector<32x1xf32>
    %cst_91 = arith.constant 3.200000e+01 : f32
    %319 = vector.broadcast %cst_91 : f32 to vector<32x1xf32>
    %320 = arith.divf %318, %319 : vector<32x1xf32>
    %321 = vector.broadcast %313 : vector<32x1xf32> to vector<32x32xf32>
    %322 = arith.subf %298, %321 : vector<32x32xf32>
    %cst_92 = arith.constant 9.99999974E-6 : f32
    %323 = vector.broadcast %cst_92 : f32 to vector<32x1xf32>
    %324 = arith.addf %320, %323 : vector<32x1xf32>
    %325 = math.rsqrt %324 : vector<32x1xf32>
    %326 = vector.broadcast %325 : vector<32x1xf32> to vector<32x32xf32>
    %327 = arith.mulf %322, %326 : vector<32x32xf32>
    %328 = vector.broadcast %308 : vector<1x32xf32> to vector<32x32xf32>
    %329 = arith.mulf %327, %328 : vector<32x32xf32>
    %330 = vector.broadcast %309 : vector<1x32xf32> to vector<32x32xf32>
    %331 = arith.addf %329, %330 : vector<32x32xf32>
    %332 = arith.truncf %331 : vector<32x32xf32> to vector<32x32xbf16>
    %cst_93 = arith.constant dense<0.000000e+00> : vector<32x64xf32>
    %333 = tpu.matmul %332, %302, %cst_93 {dimension_numbers = #tpu.dot_dimension_numbers<[1], [0], [0], [1], [0, 0, 1, 1], [], []>} : vector<32x32xbf16>, vector<32x64xbf16>, vector<32x64xf32> -> vector<32x64xf32>
    %334 = vector.extract_strided_slice %333 {offsets = [0, 0], sizes = [32, 32], strides = [1, 1]} : vector<32x64xf32> to vector<32x32xf32>
    %335 = vector.extract_strided_slice %333 {offsets = [0, 32], sizes = [32, 32], strides = [1, 1]} : vector<32x64xf32> to vector<32x32xf32>
    %336 = arith.mulf %334, %334 : vector<32x32xf32>
    %337 = arith.truncf %336 : vector<32x32xf32> to vector<32x32xbf16>
    %cst_94 = arith.constant dense<0.000000e+00> : vector<32x32xf32>
    %338 = tpu.matmul %337, %147, %cst_94 {dimension_numbers = #tpu.dot_dimension_numbers<[1], [0], [0], [1], [0, 0, 1, 1], [], []>} : vector<32x32xbf16>, vector<32x32xbf16>, vector<32x32xf32> -> vector<32x32xf32>
    %cst_95 = arith.constant 9.99999996E-13 : f32
    %339 = vector.broadcast %cst_95 : f32 to vector<32x32xf32>
    %340 = arith.addf %338, %339 : vector<32x32xf32>
    %341 = math.rsqrt %340 : vector<32x32xf32>
    %342 = arith.mulf %334, %341 : vector<32x32xf32>
    %343 = arith.truncf %342 : vector<32x32xf32> to vector<32x32xbf16>
    %344 = tpu.concatenate %334, %334, %334, %334 in 0 : vector<32x32xf32>, vector<32x32xf32>, vector<32x32xf32>, vector<32x32xf32> -> vector<128x32xf32>
    %345 = arith.mulf %344, %93 : vector<128x32xf32>
    %cst_96 = arith.constant 0.353553385 : f32
    %346 = vector.broadcast %cst_96 : f32 to vector<128x32xf32>
    %347 = arith.mulf %345, %346 : vector<128x32xf32>
    %348 = arith.truncf %347 : vector<128x32xf32> to vector<128x32xbf16>
    %cst_97 = arith.constant dense<0.000000e+00> : vector<128x32xf32>
    %349 = tpu.matmul %348, %343, %cst_97 {dimension_numbers = #tpu.dot_dimension_numbers<[1], [1], [0], [0], [0, 0, 1, 0], [], []>} : vector<128x32xbf16>, vector<32x32xbf16>, vector<128x32xf32> -> vector<128x32xf32>
    %350 = arith.addf %349, %63 : vector<128x32xf32>
    %cst_98 = arith.constant dense<0xFF800000> : vector<128xf32>
    %351 = vector.multi_reduction <maximumf>, %350, %cst_98 [1] : vector<128x32xf32> to vector<128xf32>
    %352 = vector.shape_cast %351 : vector<128xf32> to vector<128x1xf32>
    %353 = vector.broadcast %352 : vector<128x1xf32> to vector<128x32xf32>
    %354 = arith.subf %350, %353 : vector<128x32xf32>
    %355 = math.exp %354 : vector<128x32xf32>
    %cst_99 = arith.constant dense<0.000000e+00> : vector<128xf32>
    %356 = vector.multi_reduction <add>, %355, %cst_99 [1] : vector<128x32xf32> to vector<128xf32>
    %357 = vector.shape_cast %356 : vector<128xf32> to vector<128x1xf32>
    %358 = tpu.reciprocal %357 {approx = true} : vector<128x1xf32> -> vector<128x1xf32>
    %359 = vector.broadcast %358 : vector<128x1xf32> to vector<128x32xf32>
    %360 = arith.mulf %355, %359 : vector<128x32xf32>
    %361 = arith.truncf %360 : vector<128x32xf32> to vector<128x32xbf16>
    %362 = arith.truncf %335 : vector<32x32xf32> to vector<32x32xbf16>
    %cst_100 = arith.constant dense<0.000000e+00> : vector<128x32xf32>
    %363 = tpu.matmul %361, %362, %cst_100 {dimension_numbers = #tpu.dot_dimension_numbers<[1], [0], [0], [1], [0, 0, 1, 1], [], []>} : vector<128x32xbf16>, vector<32x32xbf16>, vector<128x32xf32> -> vector<128x32xf32>
    %364 = arith.mulf %363, %93 : vector<128x32xf32>
    %365 = vector.extract_strided_slice %364 {offsets = [0, 0], sizes = [32, 32], strides = [1, 1]} : vector<128x32xf32> to vector<32x32xf32>
    %366 = vector.extract_strided_slice %364 {offsets = [32, 0], sizes = [32, 32], strides = [1, 1]} : vector<128x32xf32> to vector<32x32xf32>
    %367 = arith.addf %365, %366 : vector<32x32xf32>
    %368 = vector.extract_strided_slice %364 {offsets = [64, 0], sizes = [32, 32], strides = [1, 1]} : vector<128x32xf32> to vector<32x32xf32>
    %369 = arith.addf %367, %368 : vector<32x32xf32>
    %370 = vector.extract_strided_slice %364 {offsets = [96, 0], sizes = [32, 32], strides = [1, 1]} : vector<128x32xf32> to vector<32x32xf32>
    %371 = arith.addf %369, %370 : vector<32x32xf32>
    %372 = arith.truncf %371 : vector<32x32xf32> to vector<32x32xbf16>
    %cst_101 = arith.constant dense<0.000000e+00> : vector<32x32xf32>
    %373 = tpu.matmul %372, %303, %cst_101 {dimension_numbers = #tpu.dot_dimension_numbers<[1], [0], [0], [1], [0, 0, 1, 1], [], []>} : vector<32x32xbf16>, vector<32x32xbf16>, vector<32x32xf32> -> vector<32x32xf32>
    %374 = vector.extract_strided_slice %307 {offsets = [2, 0], sizes = [1, 32], strides = [1, 1]} : vector<8x128xf32> to vector<1x32xf32>
    %375 = vector.broadcast %374 : vector<1x32xf32> to vector<32x32xf32>
    %376 = arith.addf %373, %375 : vector<32x32xf32>
    %377 = arith.addf %250, %376 : vector<32x32xf32>
    %378 = vector.extract_strided_slice %307 {offsets = [3, 0], sizes = [1, 32], strides = [1, 1]} : vector<8x128xf32> to vector<1x32xf32>
    %379 = vector.extract_strided_slice %307 {offsets = [4, 0], sizes = [1, 32], strides = [1, 1]} : vector<8x128xf32> to vector<1x32xf32>
    %cst_102 = arith.constant dense<0.000000e+00> : vector<32xf32>
    %380 = vector.multi_reduction <add>, %377, %cst_102 [1] : vector<32x32xf32> to vector<32xf32>
    %381 = vector.shape_cast %380 : vector<32xf32> to vector<32x1xf32>
    %cst_103 = arith.constant 3.200000e+01 : f32
    %382 = vector.broadcast %cst_103 : f32 to vector<32x1xf32>
    %383 = arith.divf %381, %382 : vector<32x1xf32>
    %384 = vector.broadcast %383 : vector<32x1xf32> to vector<32x32xf32>
    %385 = arith.subf %377, %384 : vector<32x32xf32>
    %386 = arith.mulf %385, %385 : vector<32x32xf32>
    %cst_104 = arith.constant dense<0.000000e+00> : vector<32xf32>
    %387 = vector.multi_reduction <add>, %386, %cst_104 [1] : vector<32x32xf32> to vector<32xf32>
    %388 = vector.shape_cast %387 : vector<32xf32> to vector<32x1xf32>
    %cst_105 = arith.constant 3.200000e+01 : f32
    %389 = vector.broadcast %cst_105 : f32 to vector<32x1xf32>
    %390 = arith.divf %388, %389 : vector<32x1xf32>
    %391 = vector.broadcast %383 : vector<32x1xf32> to vector<32x32xf32>
    %392 = arith.subf %377, %391 : vector<32x32xf32>
    %cst_106 = arith.constant 9.99999974E-6 : f32
    %393 = vector.broadcast %cst_106 : f32 to vector<32x1xf32>
    %394 = arith.addf %390, %393 : vector<32x1xf32>
    %395 = math.rsqrt %394 : vector<32x1xf32>
    %396 = vector.broadcast %395 : vector<32x1xf32> to vector<32x32xf32>
    %397 = arith.mulf %392, %396 : vector<32x32xf32>
    %398 = vector.broadcast %378 : vector<1x32xf32> to vector<32x32xf32>
    %399 = arith.mulf %397, %398 : vector<32x32xf32>
    %400 = vector.broadcast %379 : vector<1x32xf32> to vector<32x32xf32>
    %401 = arith.addf %399, %400 : vector<32x32xf32>
    %402 = arith.truncf %401 : vector<32x32xf32> to vector<32x32xbf16>
    %cst_107 = arith.constant dense<0.000000e+00> : vector<32x128xf32>
    %403 = tpu.matmul %402, %301, %cst_107 {dimension_numbers = #tpu.dot_dimension_numbers<[1], [0], [0], [1], [0, 0, 1, 1], [], []>} : vector<32x32xbf16>, vector<32x128xbf16>, vector<32x128xf32> -> vector<32x128xf32>
    %404 = vector.extract_strided_slice %307 {offsets = [6, 0], sizes = [1, 128], strides = [1, 1]} : vector<8x128xf32> to vector<1x128xf32>
    %405 = vector.broadcast %404 : vector<1x128xf32> to vector<32x128xf32>
    %406 = arith.addf %403, %405 : vector<32x128xf32>
    %407 = arith.mulf %406, %406 : vector<32x128xf32>
    %408 = arith.mulf %406, %407 : vector<32x128xf32>
    %cst_108 = arith.constant 4.471500e-02 : f32
    %409 = vector.broadcast %cst_108 : f32 to vector<32x128xf32>
    %410 = arith.mulf %409, %408 : vector<32x128xf32>
    %411 = arith.addf %406, %410 : vector<32x128xf32>
    %cst_109 = arith.constant 0.797884583 : f32
    %412 = vector.broadcast %cst_109 : f32 to vector<32x128xf32>
    %413 = arith.mulf %412, %411 : vector<32x128xf32>
    %414 = math.tanh %413 : vector<32x128xf32>
    %cst_110 = arith.constant 1.000000e+00 : f32
    %415 = vector.broadcast %cst_110 : f32 to vector<32x128xf32>
    %416 = arith.addf %415, %414 : vector<32x128xf32>
    %cst_111 = arith.constant 5.000000e-01 : f32
    %417 = vector.broadcast %cst_111 : f32 to vector<32x128xf32>
    %418 = arith.mulf %417, %416 : vector<32x128xf32>
    %419 = arith.mulf %406, %418 : vector<32x128xf32>
    %420 = arith.truncf %419 : vector<32x128xf32> to vector<32x128xbf16>
    %cst_112 = arith.constant dense<0.000000e+00> : vector<32x32xf32>
    %421 = tpu.matmul %420, %305, %cst_112 {dimension_numbers = #tpu.dot_dimension_numbers<[1], [0], [0], [1], [0, 0, 1, 1], [], []>} : vector<32x128xbf16>, vector<128x32xbf16>, vector<32x32xf32> -> vector<32x32xf32>
    %422 = vector.extract_strided_slice %307 {offsets = [5, 0], sizes = [1, 32], strides = [1, 1]} : vector<8x128xf32> to vector<1x32xf32>
    %423 = vector.broadcast %422 : vector<1x32xf32> to vector<32x32xf32>
    %424 = arith.addf %421, %423 : vector<32x32xf32>
    %425 = arith.addf %298, %424 : vector<32x32xf32>
    %426 = arith.addf %377, %425 : vector<32x32xf32>
    %cst_113 = arith.constant 5.000000e-01 : f32
    %427 = vector.broadcast %cst_113 : f32 to vector<32x32xf32>
    %428 = arith.mulf %426, %427 : vector<32x32xf32>
    %429 = arith.truncf %428 : vector<32x32xf32> to vector<32x32xbf16>
    %c0_114 = arith.constant 0 : index
    %c0_115 = arith.constant 0 : index
    %430 = vector.load %arg5[%c0_114, %c0_115] : memref<32x160xbf16, #tpu.memory_space<vmem>>, vector<32x160xbf16>
    %cst_116 = arith.constant dense<0.000000e+00> : vector<32x160xf32>
    %431 = tpu.matmul %429, %430, %cst_116 {dimension_numbers = #tpu.dot_dimension_numbers<[1], [0], [0], [1], [0, 0, 1, 1], [], []>} : vector<32x32xbf16>, vector<32x160xbf16>, vector<32x160xf32> -> vector<32x160xf32>
    %c0_117 = arith.constant 0 : index
    %c0_118 = arith.constant 0 : index
    %432 = vector.load %arg6[%c0_117, %c0_118] : memref<32x160xbf16, #tpu.memory_space<vmem>>, vector<32x160xbf16>
    %433 = arith.extf %432 : vector<32x160xbf16> to vector<32x160xf32>
    %434 = arith.mulf %431, %433 : vector<32x160xf32>
    %435 = arith.truncf %434 : vector<32x160xf32> to vector<32x160xbf16>
    %c0_119 = arith.constant 0 : index
    %c0_120 = arith.constant 0 : index
    %436 = vector.load %arg7[%c0_119, %c0_120] : memref<160x10xbf16, #tpu.memory_space<vmem>>, vector<160x10xbf16>
    %cst_121 = arith.constant dense<0.000000e+00> : vector<32x10xf32>
    %437 = tpu.matmul %435, %436, %cst_121 {dimension_numbers = #tpu.dot_dimension_numbers<[1], [0], [0], [1], [0, 0, 1, 1], [], []>} : vector<32x160xbf16>, vector<160x10xbf16>, vector<32x10xf32> -> vector<32x10xf32>
    %438 = arith.truncf %437 : vector<32x10xf32> to vector<32x10xbf16>
    %cst_122 = arith.constant dense<0.000000e+00> : vector<2x10xf32>
    %439 = tpu.matmul %171, %438, %cst_122 {dimension_numbers = #tpu.dot_dimension_numbers<[1], [0], [0], [1], [0, 0, 1, 1], [], []>} : vector<2x32xbf16>, vector<32x10xbf16>, vector<2x10xf32> -> vector<2x10xf32>
    %c0_123 = arith.constant 0 : index
    %c0_124 = arith.constant 0 : index
    %440 = vector.load %arg8[%c0_123, %c0_124] : memref<1x10xf32, #tpu.memory_space<vmem>>, vector<1x10xf32>
    %441 = vector.broadcast %440 : vector<1x10xf32> to vector<2x10xf32>
    %442 = arith.addf %439, %441 : vector<2x10xf32>
    %c0_125 = arith.constant 0 : index
    %c0_126 = arith.constant 0 : index
    %443 = vector.load %arg9[%c0_125, %c0_126] : memref<2x10xf32, #tpu.memory_space<vmem>>, vector<2x10xf32>
    tpu.vector_store %arg9[%c0_125, %c0_126], %442 {strides = array<i32>} : memref<2x10xf32, #tpu.memory_space<vmem>>, vector<2x10xf32>,
    return
  }
}

</mosaic_0001>

<llo_original>
// kernel: tile.9
$region0: #{tile.9}
  %s0 = inlined_call_operand.vmem [shape: bf16[16,10,10], index: 0, kind: input, shape index: {}]
  %s1 = inlined_call_operand.vmem [shape: bf16[160,10], index: 1, kind: output, shape index: {}]
  $region1: #{tile.9} parent=0
    #allocation0 [shape = 'u8[16384]{0}', space=vmem, size = 0x4000, scoped, tag = 'scoped mem for output reshape']
    #allocation1 [shape = 'u8[81920]{0}', space=vmem, size = 0x14000, scoped, tag = 'scoped mem for input reshape']
    %s3 = smul.u32 4, 2
    %s4 = sshllo.u32 0, %s3
    %s5 = smul.addr 4, 19
    %s6 = scalar_lea.vmem %s0, %s5
    %s7 = sshrl.u32 %s4, 1
    %s8 = sor.u32 %s4, %s7
    %s9 = sand.u32 %s8, 85
    %s10 = sshrl.u32 %s9, 1
    %s11 = sor.u32 %s9, %s10
    %s12 = sand.u32 51, %s11
    %s13 = sshrl.u32 %s12, 2
    %s14 = sor.u32 %s12, %s13
    %s15 = sand.u32 15, %s14
    %v16 = vld [vmem:[%s6] sm:%s15]
    %v17 = vunpack.c.l.bf16 %v16
    %v18 = vunpack.c.h.bf16 %v16
    %s19 = scalar_lea.vmem [#allocation1], 152
    %20 = vst [vmem:[%s19] sm:%s4] %v17
    %s21 = smul.addr 4, 18
    %s22 = scalar_lea.vmem %s0, %s21
    %s23 = sshrl.u32 %s4, 1
    %s24 = sor.u32 %s4, %s23
    %s25 = sand.u32 %s24, 85
    %s26 = sshrl.u32 %s25, 1
    %s27 = sor.u32 %s25, %s26
    %s28 = sand.u32 51, %s27
    %s29 = sshrl.u32 %s28, 2
    %s30 = sor.u32 %s28, %s29
    %s31 = sand.u32 15, %s30
    %v32 = vld [vmem:[%s22] sm:%s31]
    %v33 = vunpack.c.l.bf16 %v32
    %v34 = vunpack.c.h.bf16 %v32
    %s35 = scalar_lea.vmem [#allocation1], 144
    %36 = vst [vmem:[%s35] sm:%s4] %v33
    %s37 = smul.addr 4, 17
    %s38 = scalar_lea.vmem %s0, %s37
    %s39 = sshrl.u32 %s4, 1
    %s40 = sor.u32 %s4, %s39
    %s41 = sand.u32 %s40, 85
    %s42 = sshrl.u32 %s41, 1
    %s43 = sor.u32 %s41, %s42
    %s44 = sand.u32 51, %s43
    %s45 = sshrl.u32 %s44, 2
    %s46 = sor.u32 %s44, %s45
    %s47 = sand.u32 15, %s46
    %v48 = vld [vmem:[%s38] sm:%s47]
    %v49 = vunpack.c.l.bf16 %v48
    %v50 = vunpack.c.h.bf16 %v48
    %s51 = scalar_lea.vmem [#allocation1], 136
    %52 = vst [vmem:[%s51] sm:%s4] %v49
    %s53 = smul.addr 4, 16
    %s54 = scalar_lea.vmem %s0, %s53
    %s55 = sshrl.u32 %s4, 1
    %s56 = sor.u32 %s4, %s55
    %s57 = sand.u32 %s56, 85
    %s58 = sshrl.u32 %s57, 1
    %s59 = sor.u32 %s57, %s58
    %s60 = sand.u32 51, %s59
    %s61 = sshrl.u32 %s60, 2
    %s62 = sor.u32 %s60, %s61
    %s63 = sand.u32 15, %s62
    %v64 = vld [vmem:[%s54] sm:%s63]
    %v65 = vunpack.c.l.bf16 %v64
    %v66 = vunpack.c.h.bf16 %v64
    %s67 = scalar_lea.vmem [#allocation1], 128
    %68 = vst [vmem:[%s67] sm:%s4] %v65
    %s69 = smul.addr 4, 15
    %s70 = scalar_lea.vmem %s0, %s69
    %s71 = sshrl.u32 %s4, 1
    %s72 = sor.u32 %s4, %s71
    %s73 = sand.u32 %s72, 85
    %s74 = sshrl.u32 %s73, 1
    %s75 = sor.u32 %s73, %s74
    %s76 = sand.u32 51, %s75
    %s77 = sshrl.u32 %s76, 2
    %s78 = sor.u32 %s76, %s77
    %s79 = sand.u32 15, %s78
    %v80 = vld [vmem:[%s70] sm:%s79]
    %v81 = vunpack.c.l.bf16 %v80
    %v82 = vunpack.c.h.bf16 %v80
    %s83 = scalar_lea.vmem [#allocation1], 120
    %84 = vst [vmem:[%s83] sm:%s4] %v81
    %s85 = smul.addr 4, 14
    %s86 = scalar_lea.vmem %s0, %s85
    %s87 = sshrl.u32 %s4, 1
    %s88 = sor.u32 %s4, %s87
    %s89 = sand.u32 %s88, 85
    %s90 = sshrl.u32 %s89, 1
    %s91 = sor.u32 %s89, %s90
    %s92 = sand.u32 51, %s91
    %s93 = sshrl.u32 %s92, 2
    %s94 = sor.u32 %s92, %s93
    %s95 = sand.u32 15, %s94
    %v96 = vld [vmem:[%s86] sm:%s95]
    %v97 = vunpack.c.l.bf16 %v96
    %v98 = vunpack.c.h.bf16 %v96
    %s99 = scalar_lea.vmem [#allocation1], 112
    %100 = vst [vmem:[%s99] sm:%s4] %v97
    %s101 = smul.addr 4, 13
    %s102 = scalar_lea.vmem %s0, %s101
    %s103 = sshrl.u32 %s4, 1
    %s104 = sor.u32 %s4, %s103
    %s105 = sand.u32 %s104, 85
    %s106 = sshrl.u32 %s105, 1
    %s107 = sor.u32 %s105, %s106
    %s108 = sand.u32 51, %s107
    %s109 = sshrl.u32 %s108, 2
    %s110 = sor.u32 %s108, %s109
    %s111 = sand.u32 15, %s110
    %v112 = vld [vmem:[%s102] sm:%s111]
    %v113 = vunpack.c.l.bf16 %v112
    %v114 = vunpack.c.h.bf16 %v112
    %s115 = scalar_lea.vmem [#allocation1], 104
    %116 = vst [vmem:[%s115] sm:%s4] %v113
    %s117 = smul.addr 4, 12
    %s118 = scalar_lea.vmem %s0, %s117
    %s119 = sshrl.u32 %s4, 1
    %s120 = sor.u32 %s4, %s119
    %s121 = sand.u32 %s120, 85
    %s122 = sshrl.u32 %s121, 1
    %s123 = sor.u32 %s121, %s122
    %s124 = sand.u32 51, %s123
    %s125 = sshrl.u32 %s124, 2
    %s126 = sor.u32 %s124, %s125
    %s127 = sand.u32 15, %s126
    %v128 = vld [vmem:[%s118] sm:%s127]
    %v129 = vunpack.c.l.bf16 %v128
    %v130 = vunpack.c.h.bf16 %v128
    %s131 = scalar_lea.vmem [#allocation1], 96
    %132 = vst [vmem:[%s131] sm:%s4] %v129
    %s133 = smul.addr 4, 11
    %s134 = scalar_lea.vmem %s0, %s133
    %s135 = sshrl.u32 %s4, 1
    %s136 = sor.u32 %s4, %s135
    %s137 = sand.u32 %s136, 85
    %s138 = sshrl.u32 %s137, 1
    %s139 = sor.u32 %s137, %s138
    %s140 = sand.u32 51, %s139
    %s141 = sshrl.u32 %s140, 2
    %s142 = sor.u32 %s140, %s141
    %s143 = sand.u32 15, %s142
    %v144 = vld [vmem:[%s134] sm:%s143]
    %v145 = vunpack.c.l.bf16 %v144
    %v146 = vunpack.c.h.bf16 %v144
    %s147 = scalar_lea.vmem [#allocation1], 88
    %148 = vst [vmem:[%s147] sm:%s4] %v145
    %s149 = smul.addr 4, 10
    %s150 = scalar_lea.vmem %s0, %s149
    %s151 = sshrl.u32 %s4, 1
    %s152 = sor.u32 %s4, %s151
    %s153 = sand.u32 %s152, 85
    %s154 = sshrl.u32 %s153, 1
    %s155 = sor.u32 %s153, %s154
    %s156 = sand.u32 51, %s155
    %s157 = sshrl.u32 %s156, 2
    %s158 = sor.u32 %s156, %s157
    %s159 = sand.u32 15, %s158
    %v160 = vld [vmem:[%s150] sm:%s159]
    %v161 = vunpack.c.l.bf16 %v160
    %v162 = vunpack.c.h.bf16 %v160
    %s163 = scalar_lea.vmem [#allocation1], 80
    %164 = vst [vmem:[%s163] sm:%s4] %v161
    %s165 = smul.addr 4, 9
    %s166 = scalar_lea.vmem %s0, %s165
    %s167 = sshrl.u32 %s4, 1
    %s168 = sor.u32 %s4, %s167
    %s169 = sand.u32 %s168, 85
    %s170 = sshrl.u32 %s169, 1
    %s171 = sor.u32 %s169, %s170
    %s172 = sand.u32 51, %s171
    %s173 = sshrl.u32 %s172, 2
    %s174 = sor.u32 %s172, %s173
    %s175 = sand.u32 15, %s174
    %v176 = vld [vmem:[%s166] sm:%s175]
    %v177 = vunpack.c.l.bf16 %v176
    %v178 = vunpack.c.h.bf16 %v176
    %s179 = scalar_lea.vmem [#allocation1], 72
    %180 = vst [vmem:[%s179] sm:%s4] %v177
    %s181 = smul.addr 4, 8
    %s182 = scalar_lea.vmem %s0, %s181
    %s183 = sshrl.u32 %s4, 1
    %s184 = sor.u32 %s4, %s183
    %s185 = sand.u32 %s184, 85
    %s186 = sshrl.u32 %s185, 1
    %s187 = sor.u32 %s185, %s186
    %s188 = sand.u32 51, %s187
    %s189 = sshrl.u32 %s188, 2
    %s190 = sor.u32 %s188, %s189
    %s191 = sand.u32 15, %s190
    %v192 = vld [vmem:[%s182] sm:%s191]
    %v193 = vunpack.c.l.bf16 %v192
    %v194 = vunpack.c.h.bf16 %v192
    %s195 = scalar_lea.vmem [#allocation1], 64
    %196 = vst [vmem:[%s195] sm:%s4] %v193
    %s197 = smul.addr 4, 7
    %s198 = scalar_lea.vmem %s0, %s197
    %s199 = sshrl.u32 %s4, 1
    %s200 = sor.u32 %s4, %s199
    %s201 = sand.u32 %s200, 85
    %s202 = sshrl.u32 %s201, 1
    %s203 = sor.u32 %s201, %s202
    %s204 = sand.u32 51, %s203
    %s205 = sshrl.u32 %s204, 2
    %s206 = sor.u32 %s204, %s205
    %s207 = sand.u32 15, %s206
    %v208 = vld [vmem:[%s198] sm:%s207]
    %v209 = vunpack.c.l.bf16 %v208
    %v210 = vunpack.c.h.bf16 %v208
    %s211 = scalar_lea.vmem [#allocation1], 56
    %212 = vst [vmem:[%s211] sm:%s4] %v209
    %s213 = smul.addr 4, 6
    %s214 = scalar_lea.vmem %s0, %s213
    %s215 = sshrl.u32 %s4, 1
    %s216 = sor.u32 %s4, %s215
    %s217 = sand.u32 %s216, 85
    %s218 = sshrl.u32 %s217, 1
    %s219 = sor.u32 %s217, %s218
    %s220 = sand.u32 51, %s219
    %s221 = sshrl.u32 %s220, 2
    %s222 = sor.u32 %s220, %s221
    %s223 = sand.u32 15, %s222
    %v224 = vld [vmem:[%s214] sm:%s223]
    %v225 = vunpack.c.l.bf16 %v224
    %v226 = vunpack.c.h.bf16 %v224
    %s227 = scalar_lea.vmem [#allocation1], 48
    %228 = vst [vmem:[%s227] sm:%s4] %v225
    %s229 = smul.addr 4, 5
    %s230 = scalar_lea.vmem %s0, %s229
    %s231 = sshrl.u32 %s4, 1
    %s232 = sor.u32 %s4, %s231
    %s233 = sand.u32 %s232, 85
    %s234 = sshrl.u32 %s233, 1
    %s235 = sor.u32 %s233, %s234
    %s236 = sand.u32 51, %s235
    %s237 = sshrl.u32 %s236, 2
    %s238 = sor.u32 %s236, %s237
    %s239 = sand.u32 15, %s238
    %v240 = vld [vmem:[%s230] sm:%s239]
    %v241 = vunpack.c.l.bf16 %v240
    %v242 = vunpack.c.h.bf16 %v240
    %s243 = scalar_lea.vmem [#allocation1], 40
    %244 = vst [vmem:[%s243] sm:%s4] %v241
    %s245 = smul.addr 4, 4
    %s246 = scalar_lea.vmem %s0, %s245
    %s247 = sshrl.u32 %s4, 1
    %s248 = sor.u32 %s4, %s247
    %s249 = sand.u32 %s248, 85
    %s250 = sshrl.u32 %s249, 1
    %s251 = sor.u32 %s249, %s250
    %s252 = sand.u32 51, %s251
    %s253 = sshrl.u32 %s252, 2
    %s254 = sor.u32 %s252, %s253
    %s255 = sand.u32 15, %s254
    %v256 = vld [vmem:[%s246] sm:%s255]
    %v257 = vunpack.c.l.bf16 %v256
    %v258 = vunpack.c.h.bf16 %v256
    %s259 = scalar_lea.vmem [#allocation1], 32
    %260 = vst [vmem:[%s259] sm:%s4] %v257
    %s261 = smul.addr 4, 3
    %s262 = scalar_lea.vmem %s0, %s261
    %s263 = sshrl.u32 %s4, 1
    %s264 = sor.u32 %s4, %s263
    %s265 = sand.u32 %s264, 85
    %s266 = sshrl.u32 %s265, 1
    %s267 = sor.u32 %s265, %s266
    %s268 = sand.u32 51, %s267
    %s269 = sshrl.u32 %s268, 2
    %s270 = sor.u32 %s268, %s269
    %s271 = sand.u32 15, %s270
    %v272 = vld [vmem:[%s262] sm:%s271]
    %v273 = vunpack.c.l.bf16 %v272
    %v274 = vunpack.c.h.bf16 %v272
    %s275 = scalar_lea.vmem [#allocation1], 24
    %276 = vst [vmem:[%s275] sm:%s4] %v273
    %s277 = smul.addr 4, 2
    %s278 = scalar_lea.vmem %s0, %s277
    %s279 = sshrl.u32 %s4, 1
    %s280 = sor.u32 %s4, %s279
    %s281 = sand.u32 %s280, 85
    %s282 = sshrl.u32 %s281, 1
    %s283 = sor.u32 %s281, %s282
    %s284 = sand.u32 51, %s283
    %s285 = sshrl.u32 %s284, 2
    %s286 = sor.u32 %s284, %s285
    %s287 = sand.u32 15, %s286
    %v288 = vld [vmem:[%s278] sm:%s287]
    %v289 = vunpack.c.l.bf16 %v288
    %v290 = vunpack.c.h.bf16 %v288
    %s291 = scalar_lea.vmem [#allocation1], 16
    %292 = vst [vmem:[%s291] sm:%s4] %v289
    %s293 = scalar_lea.vmem %s0, 4
    %s294 = sshrl.u32 %s4, 1
    %s295 = sor.u32 %s4, %s294
    %s296 = sand.u32 %s295, 85
    %s297 = sshrl.u32 %s296, 1
    %s298 = sor.u32 %s296, %s297
    %s299 = sand.u32 51, %s298
    %s300 = sshrl.u32 %s299, 2
    %s301 = sor.u32 %s299, %s300
    %s302 = sand.u32 15, %s301
    %v303 = vld [vmem:[%s293] sm:%s302]
    %v304 = vunpack.c.l.bf16 %v303
    %v305 = vunpack.c.h.bf16 %v303
    %s306 = scalar_lea.vmem [#allocation1], 8
    %307 = vst [vmem:[%s306] sm:%s4] %v304
    %s308 = sshrl.u32 %s4, 1
    %s309 = sor.u32 %s4, %s308
    %s310 = sand.u32 %s309, 85
    %s311 = sshrl.u32 %s310, 1
    %s312 = sor.u32 %s310, %s311
    %s313 = sand.u32 51, %s312
    %s314 = sshrl.u32 %s313, 2
    %s315 = sor.u32 %s313, %s314
    %s316 = sand.u32 15, %s315
    %v317 = vld [vmem:[%s0] sm:%s316]
    %v318 = vunpack.c.l.bf16 %v317
    %v319 = vunpack.c.h.bf16 %v317
    %320 = vst [vmem:[#allocation1] sm:%s4] %v318
    %s321 = smov 3
    %v322 = vld [vmem:[#allocation1] ss:$16 sm:%s321]
    %s323 = smov 12
    %v324 = vld [vmem:[#allocation1] ss:$16 sm:%s323]
    %vm325 = vcmask 1043458
    %v326 = vsel %vm325, %v324, %v322
    %s327 = smov 48
    %v328 = vld [vmem:[#allocation1] ss:$16 sm:%s327]
    %vm329 = vcmask 1045508
    %v330 = vsel %vm329, %v328, %v326
    %s331 = smov 192
    %v332 = vld [vmem:[#allocation1] ss:$16 sm:%s331]
    %vm333 = vcmask 1047558
    %v334 = vsel %vm333, %v332, %v330
    %vm335 = vcmask 80896
    %336 = vst.msk [vmem:[#allocation0] sm:$0xff] %vm335, %v334
    %s337 = scalar_lea.vmem [#allocation1], 128
    %s338 = smov 3
    %v339 = vld [vmem:[%s337] ss:$16 sm:%s338]
    %vm340 = vcmask 80896
    %s341 = scalar_lea.vmem [#allocation0], 16
    %342 = vst.msk [vmem:[%s341] sm:$0x3] %vm340, %v339
    %s343 = scalar_lea.vmem [#allocation1], 12
    %s344 = smov 3
    %v345 = vld [vmem:[%s343] ss:$16 sm:%s344]
    %s346 = scalar_lea.vmem [#allocation1], 12
    %s347 = smov 12
    %v348 = vld [vmem:[%s346] ss:$16 sm:%s347]
    %vm349 = vcmask 1043458
    %v350 = vsel %vm349, %v348, %v345
    %s351 = scalar_lea.vmem [#allocation1], 12
    %s352 = smov 48
    %v353 = vld [vmem:[%s351] ss:$16 sm:%s352]
    %vm354 = vcmask 1045508
    %v355 = vsel %vm354, %v353, %v350
    %s356 = scalar_lea.vmem [#allocation1], 12
    %s357 = smov 192
    %v358 = vld [vmem:[%s356] ss:$16 sm:%s357]
    %vm359 = vcmask 1047558
    %v360 = vsel %vm359, %v358, %v355
    %s361 = scalar_lea.vmem [#allocation1], 12
    %s362 = smov 3
    %v363 = vld [vmem:[%s361] ss:$16 sm:%s362]
    %s364 = scalar_lea.vmem [#allocation1], 12
    %s365 = smov 12
    %v366 = vld [vmem:[%s364] ss:$16 sm:%s365]
    %vm367 = vcmask 1043458
    %v368 = vsel %vm367, %v366, %v363
    %s369 = scalar_lea.vmem [#allocation1], 12
    %s370 = smov 48
    %v371 = vld [vmem:[%s369] ss:$16 sm:%s370]
    %vm372 = vcmask 1045508
    %v373 = vsel %vm372, %v371, %v368
    %s374 = scalar_lea.vmem [#allocation1], 12
    %s375 = smov 192
    %v376 = vld [vmem:[%s374] ss:$16 sm:%s375]
    %vm377 = vcmask 1047558
    %v378 = vsel %vm377, %v376, %v373
    %vm379 = vcmask 64512
    %v380 = vsel %vm379, %v378, %v360
    %381 = vrot.lane.b32.xlu0 %v380, 120
    %v382 = vpop.permute.xlu0 %381
    %vm383 = vcmask 15360
    %s384 = scalar_lea.vmem [#allocation0], 8
    %385 = vst.msk [vmem:[%s384] sm:$0xff] %vm383, %v382
    %vm386 = vcmask 1048512
    %387 = vst.msk [vmem:[#allocation0] sm:$0xff] %vm386, %v382
    %s388 = scalar_lea.vmem [#allocation1], 140
    %s389 = smov 3
    %v390 = vld [vmem:[%s388] ss:$16 sm:%s389]
    %s391 = scalar_lea.vmem [#allocation1], 140
    %s392 = smov 3
    %v393 = vld [vmem:[%s391] ss:$16 sm:%s392]
    %vm394 = vcmask 64512
    %v395 = vsel %vm394, %v393, %v390
    %396 = vrot.lane.b32.xlu0 %v395, 120
    %v397 = vpop.permute.xlu0 %396
    %vm398 = vcmask 15360
    %s399 = scalar_lea.vmem [#allocation0], 24
    %400 = vst.msk [vmem:[%s399] sm:$0x3] %vm398, %v397
    %vm401 = vcmask 1048512
    %s402 = scalar_lea.vmem [#allocation0], 16
    %403 = vst.msk [vmem:[%s402] sm:$0x3] %vm401, %v397
    %s404 = scalar_lea.vmem [#allocation1], 11
    %s405 = smov 3
    %v406 = vld [vmem:[%s404] ss:$16 sm:%s405]
    %s407 = scalar_lea.vmem [#allocation1], 11
    %s408 = smov 12
    %v409 = vld [vmem:[%s407] ss:$16 sm:%s408]
    %vm410 = vcmask 1043458
    %v411 = vsel %vm410, %v409, %v406
    %s412 = scalar_lea.vmem [#allocation1], 11
    %s413 = smov 48
    %v414 = vld [vmem:[%s412] ss:$16 sm:%s413]
    %vm415 = vcmask 1045508
    %v416 = vsel %vm415, %v414, %v411
    %s417 = scalar_lea.vmem [#allocation1], 11
    %s418 = smov 192
    %v419 = vld [vmem:[%s417] ss:$16 sm:%s418]
    %vm420 = vcmask 1047558
    %v421 = vsel %vm420, %v419, %v416
    %422 = vrot.lane.b32.xlu0 %v421, 110
    %v423 = vpop.permute.xlu0 %422
    %vm424 = vcmask 982896
    %425 = vst.msk [vmem:[#allocation0] sm:$0xff] %vm424, %v423
    %s426 = scalar_lea.vmem [#allocation1], 139
    %s427 = smov 3
    %v428 = vld [vmem:[%s426] ss:$16 sm:%s427]
    %429 = vrot.lane.b32.xlu0 %v428, 110
    %v430 = vpop.permute.xlu0 %429
    %vm431 = vcmask 982896
    %s432 = scalar_lea.vmem [#allocation0], 16
    %433 = vst.msk [vmem:[%s432] sm:$0x3] %vm431, %v430
    %s434 = scalar_lea.vmem [#allocation1], 10
    %s435 = smov 3
    %v436 = vld [vmem:[%s434] ss:$16 sm:%s435]
    %s437 = scalar_lea.vmem [#allocation1], 10
    %s438 = smov 12
    %v439 = vld [vmem:[%s437] ss:$16 sm:%s438]
    %vm440 = vcmask 1043458
    %v441 = vsel %vm440, %v439, %v436
    %s442 = scalar_lea.vmem [#allocation1], 10
    %s443 = smov 48
    %v444 = vld [vmem:[%s442] ss:$16 sm:%s443]
    %vm445 = vcmask 1045508
    %v446 = vsel %vm445, %v444, %v441
    %s447 = scalar_lea.vmem [#allocation1], 10
    %s448 = smov 192
    %v449 = vld [vmem:[%s447] ss:$16 sm:%s448]
    %vm450 = vcmask 1047558
    %v451 = vsel %vm450, %v449, %v446
    %452 = vrot.lane.b32.xlu0 %v451, 100
    %v453 = vpop.permute.xlu0 %452
    %vm454 = vcmask 900896
    %455 = vst.msk [vmem:[#allocation0] sm:$0xff] %vm454, %v453
    %s456 = scalar_lea.vmem [#allocation1], 138
    %s457 = smov 3
    %v458 = vld [vmem:[%s456] ss:$16 sm:%s457]
    %459 = vrot.lane.b32.xlu0 %v458, 100
    %v460 = vpop.permute.xlu0 %459
    %vm461 = vcmask 900896
    %s462 = scalar_lea.vmem [#allocation0], 16
    %463 = vst.msk [vmem:[%s462] sm:$0x3] %vm461, %v460
    %s464 = scalar_lea.vmem [#allocation1], 9
    %s465 = smov 3
    %v466 = vld [vmem:[%s464] ss:$16 sm:%s465]
    %s467 = scalar_lea.vmem [#allocation1], 9
    %s468 = smov 12
    %v469 = vld [vmem:[%s467] ss:$16 sm:%s468]
    %vm470 = vcmask 1043458
    %v471 = vsel %vm470, %v469, %v466
    %s472 = scalar_lea.vmem [#allocation1], 9
    %s473 = smov 48
    %v474 = vld [vmem:[%s472] ss:$16 sm:%s473]
    %vm475 = vcmask 1045508
    %v476 = vsel %vm475, %v474, %v471
    %s477 = scalar_lea.vmem [#allocation1], 9
    %s478 = smov 192
    %v479 = vld [vmem:[%s477] ss:$16 sm:%s478]
    %vm480 = vcmask 1047558
    %v481 = vsel %vm480, %v479, %v476
    %482 = vrot.lane.b32.xlu0 %v481, 90
    %v483 = vpop.permute.xlu0 %482
    %vm484 = vcmask 818896
    %485 = vst.msk [vmem:[#allocation0] sm:$0xff] %vm484, %v483
    %s486 = scalar_lea.vmem [#allocation1], 137
    %s487 = smov 3
    %v488 = vld [vmem:[%s486] ss:$16 sm:%s487]
    %489 = vrot.lane.b32.xlu0 %v488, 90
    %v490 = vpop.permute.xlu0 %489
    %vm491 = vcmask 818896
    %s492 = scalar_lea.vmem [#allocation0], 16
    %493 = vst.msk [vmem:[%s492] sm:$0x3] %vm491, %v490
    %s494 = scalar_lea.vmem [#allocation1], 8
    %s495 = smov 3
    %v496 = vld [vmem:[%s494] ss:$16 sm:%s495]
    %s497 = scalar_lea.vmem [#allocation1], 8
    %s498 = smov 12
    %v499 = vld [vmem:[%s497] ss:$16 sm:%s498]
    %vm500 = vcmask 1043458
    %v501 = vsel %vm500, %v499, %v496
    %s502 = scalar_lea.vmem [#allocation1], 8
    %s503 = smov 48
    %v504 = vld [vmem:[%s502] ss:$16 sm:%s503]
    %vm505 = vcmask 1045508
    %v506 = vsel %vm505, %v504, %v501
    %s507 = scalar_lea.vmem [#allocation1], 8
    %s508 = smov 192
    %v509 = vld [vmem:[%s507] ss:$16 sm:%s508]
    %vm510 = vcmask 1047558
    %v511 = vsel %vm510, %v509, %v506
    %512 = vrot.lane.b32.xlu0 %v511, 80
    %v513 = vpop.permute.xlu0 %512
    %vm514 = vcmask 736896
    %515 = vst.msk [vmem:[#allocation0] sm:$0xff] %vm514, %v513
    %s516 = scalar_lea.vmem [#allocation1], 136
    %s517 = smov 3
    %v518 = vld [vmem:[%s516] ss:$16 sm:%s517]
    %519 = vrot.lane.b32.xlu0 %v518, 80
    %v520 = vpop.permute.xlu0 %519
    %vm521 = vcmask 736896
    %s522 = scalar_lea.vmem [#allocation0], 16
    %523 = vst.msk [vmem:[%s522] sm:$0x3] %vm521, %v520
    %s524 = scalar_lea.vmem [#allocation1], 7
    %s525 = smov 3
    %v526 = vld [vmem:[%s524] ss:$16 sm:%s525]
    %s527 = scalar_lea.vmem [#allocation1], 7
    %s528 = smov 12
    %v529 = vld [vmem:[%s527] ss:$16 sm:%s528]
    %vm530 = vcmask 1043458
    %v531 = vsel %vm530, %v529, %v526
    %s532 = scalar_lea.vmem [#allocation1], 7
    %s533 = smov 48
    %v534 = vld [vmem:[%s532] ss:$16 sm:%s533]
    %vm535 = vcmask 1045508
    %v536 = vsel %vm535, %v534, %v531
    %s537 = scalar_lea.vmem [#allocation1], 7
    %s538 = smov 192
    %v539 = vld [vmem:[%s537] ss:$16 sm:%s538]
    %vm540 = vcmask 1047558
    %v541 = vsel %vm540, %v539, %v536
    %542 = vrot.lane.b32.xlu0 %v541, 70
    %v543 = vpop.permute.xlu0 %542
    %vm544 = vcmask 654896
    %545 = vst.msk [vmem:[#allocation0] sm:$0xff] %vm544, %v543
    %s546 = scalar_lea.vmem [#allocation1], 135
    %s547 = smov 3
    %v548 = vld [vmem:[%s546] ss:$16 sm:%s547]
    %549 = vrot.lane.b32.xlu0 %v548, 70
    %v550 = vpop.permute.xlu0 %549
    %vm551 = vcmask 654896
    %s552 = scalar_lea.vmem [#allocation0], 16
    %553 = vst.msk [vmem:[%s552] sm:$0x3] %vm551, %v550
    %s554 = scalar_lea.vmem [#allocation1], 6
    %s555 = smov 3
    %v556 = vld [vmem:[%s554] ss:$16 sm:%s555]
    %s557 = scalar_lea.vmem [#allocation1], 6
    %s558 = smov 12
    %v559 = vld [vmem:[%s557] ss:$16 sm:%s558]
    %vm560 = vcmask 1043458
    %v561 = vsel %vm560, %v559, %v556
    %s562 = scalar_lea.vmem [#allocation1], 6
    %s563 = smov 48
    %v564 = vld [vmem:[%s562] ss:$16 sm:%s563]
    %vm565 = vcmask 1045508
    %v566 = vsel %vm565, %v564, %v561
    %s567 = scalar_lea.vmem [#allocation1], 6
    %s568 = smov 192
    %v569 = vld [vmem:[%s567] ss:$16 sm:%s568]
    %vm570 = vcmask 1047558
    %v571 = vsel %vm570, %v569, %v566
    %572 = vrot.lane.b32.xlu0 %v571, 60
    %v573 = vpop.permute.xlu0 %572
    %vm574 = vcmask 572896
    %575 = vst.msk [vmem:[#allocation0] sm:$0xff] %vm574, %v573
    %s576 = scalar_lea.vmem [#allocation1], 134
    %s577 = smov 3
    %v578 = vld [vmem:[%s576] ss:$16 sm:%s577]
    %579 = vrot.lane.b32.xlu0 %v578, 60
    %v580 = vpop.permute.xlu0 %579
    %vm581 = vcmask 572896
    %s582 = scalar_lea.vmem [#allocation0], 16
    %583 = vst.msk [vmem:[%s582] sm:$0x3] %vm581, %v580
    %s584 = scalar_lea.vmem [#allocation1], 5
    %s585 = smov 3
    %v586 = vld [vmem:[%s584] ss:$16 sm:%s585]
    %s587 = scalar_lea.vmem [#allocation1], 5
    %s588 = smov 12
    %v589 = vld [vmem:[%s587] ss:$16 sm:%s588]
    %vm590 = vcmask 1043458
    %v591 = vsel %vm590, %v589, %v586
    %s592 = scalar_lea.vmem [#allocation1], 5
    %s593 = smov 48
    %v594 = vld [vmem:[%s592] ss:$16 sm:%s593]
    %vm595 = vcmask 1045508
    %v596 = vsel %vm595, %v594, %v591
    %s597 = scalar_lea.vmem [#allocation1], 5
    %s598 = smov 192
    %v599 = vld [vmem:[%s597] ss:$16 sm:%s598]
    %vm600 = vcmask 1047558
    %v601 = vsel %vm600, %v599, %v596
    %602 = vrot.lane.b32.xlu0 %v601, 50
    %v603 = vpop.permute.xlu0 %602
    %vm604 = vcmask 490896
    %605 = vst.msk [vmem:[#allocation0] sm:$0xff] %vm604, %v603
    %s606 = scalar_lea.vmem [#allocation1], 133
    %s607 = smov 3
    %v608 = vld [vmem:[%s606] ss:$16 sm:%s607]
    %609 = vrot.lane.b32.xlu0 %v608, 50
    %v610 = vpop.permute.xlu0 %609
    %vm611 = vcmask 490896
    %s612 = scalar_lea.vmem [#allocation0], 16
    %613 = vst.msk [vmem:[%s612] sm:$0x3] %vm611, %v610
    %s614 = scalar_lea.vmem [#allocation1], 4
    %s615 = smov 3
    %v616 = vld [vmem:[%s614] ss:$16 sm:%s615]
    %s617 = scalar_lea.vmem [#allocation1], 4
    %s618 = smov 12
    %v619 = vld [vmem:[%s617] ss:$16 sm:%s618]
    %vm620 = vcmask 1043458
    %v621 = vsel %vm620, %v619, %v616
    %s622 = scalar_lea.vmem [#allocation1], 4
    %s623 = smov 48
    %v624 = vld [vmem:[%s622] ss:$16 sm:%s623]
    %vm625 = vcmask 1045508
    %v626 = vsel %vm625, %v624, %v621
    %s627 = scalar_lea.vmem [#allocation1], 4
    %s628 = smov 192
    %v629 = vld [vmem:[%s627] ss:$16 sm:%s628]
    %vm630 = vcmask 1047558
    %v631 = vsel %vm630, %v629, %v626
    %632 = vrot.lane.b32.xlu0 %v631, 40
    %v633 = vpop.permute.xlu0 %632
    %vm634 = vcmask 408896
    %635 = vst.msk [vmem:[#allocation0] sm:$0xff] %vm634, %v633
    %s636 = scalar_lea.vmem [#allocation1], 132
    %s637 = smov 3
    %v638 = vld [vmem:[%s636] ss:$16 sm:%s637]
    %639 = vrot.lane.b32.xlu0 %v638, 40
    %v640 = vpop.permute.xlu0 %639
    %vm641 = vcmask 408896
    %s642 = scalar_lea.vmem [#allocation0], 16
    %643 = vst.msk [vmem:[%s642] sm:$0x3] %vm641, %v640
    %s644 = scalar_lea.vmem [#allocation1], 3
    %s645 = smov 3
    %v646 = vld [vmem:[%s644] ss:$16 sm:%s645]
    %s647 = scalar_lea.vmem [#allocation1], 3
    %s648 = smov 12
    %v649 = vld [vmem:[%s647] ss:$16 sm:%s648]
    %vm650 = vcmask 1043458
    %v651 = vsel %vm650, %v649, %v646
    %s652 = scalar_lea.vmem [#allocation1], 3
    %s653 = smov 48
    %v654 = vld [vmem:[%s652] ss:$16 sm:%s653]
    %vm655 = vcmask 1045508
    %v656 = vsel %vm655, %v654, %v651
    %s657 = scalar_lea.vmem [#allocation1], 3
    %s658 = smov 192
    %v659 = vld [vmem:[%s657] ss:$16 sm:%s658]
    %vm660 = vcmask 1047558
    %v661 = vsel %vm660, %v659, %v656
    %662 = vrot.lane.b32.xlu0 %v661, 30
    %v663 = vpop.permute.xlu0 %662
    %vm664 = vcmask 326896
    %665 = vst.msk [vmem:[#allocation0] sm:$0xff] %vm664, %v663
    %s666 = scalar_lea.vmem [#allocation1], 131
    %s667 = smov 3
    %v668 = vld [vmem:[%s666] ss:$16 sm:%s667]
    %669 = vrot.lane.b32.xlu0 %v668, 30
    %v670 = vpop.permute.xlu0 %669
    %vm671 = vcmask 326896
    %s672 = scalar_lea.vmem [#allocation0], 16
    %673 = vst.msk [vmem:[%s672] sm:$0x3] %vm671, %v670
    %s674 = scalar_lea.vmem [#allocation1], 15
    %s675 = smov 3
    %v676 = vld [vmem:[%s674] ss:$16 sm:%s675]
    %s677 = scalar_lea.vmem [#allocation1], 15
    %s678 = smov 12
    %v679 = vld [vmem:[%s677] ss:$16 sm:%s678]
    %vm680 = vcmask 1043458
    %v681 = vsel %vm680, %v679, %v676
    %s682 = scalar_lea.vmem [#allocation1], 15
    %s683 = smov 48
    %v684 = vld [vmem:[%s682] ss:$16 sm:%s683]
    %vm685 = vcmask 1045508
    %v686 = vsel %vm685, %v684, %v681
    %s687 = scalar_lea.vmem [#allocation1], 15
    %s688 = smov 192
    %v689 = vld [vmem:[%s687] ss:$16 sm:%s688]
    %vm690 = vcmask 1047558
    %v691 = vsel %vm690, %v689, %v686
    %692 = vrot.lane.b32.xlu0 %v691, 22
    %v693 = vpop.permute.xlu0 %692
    %vm694 = vcmask 261296
    %s695 = scalar_lea.vmem [#allocation0], 8
    %696 = vst.msk [vmem:[%s695] sm:$0xff] %vm694, %v693
    %s697 = scalar_lea.vmem [#allocation1], 143
    %s698 = smov 3
    %v699 = vld [vmem:[%s697] ss:$16 sm:%s698]
    %700 = vrot.lane.b32.xlu0 %v699, 22
    %v701 = vpop.permute.xlu0 %700
    %vm702 = vcmask 261296
    %s703 = scalar_lea.vmem [#allocation0], 24
    %704 = vst.msk [vmem:[%s703] sm:$0x3] %vm702, %v701
    %s705 = scalar_lea.vmem [#allocation1], 2
    %s706 = smov 3
    %v707 = vld [vmem:[%s705] ss:$16 sm:%s706]
    %s708 = scalar_lea.vmem [#allocation1], 2
    %s709 = smov 12
    %v710 = vld [vmem:[%s708] ss:$16 sm:%s709]
    %vm711 = vcmask 1043458
    %v712 = vsel %vm711, %v710, %v707
    %s713 = scalar_lea.vmem [#allocation1], 2
    %s714 = smov 48
    %v715 = vld [vmem:[%s713] ss:$16 sm:%s714]
    %vm716 = vcmask 1045508
    %v717 = vsel %vm716, %v715, %v712
    %s718 = scalar_lea.vmem [#allocation1], 2
    %s719 = smov 192
    %v720 = vld [vmem:[%s718] ss:$16 sm:%s719]
    %vm721 = vcmask 1047558
    %v722 = vsel %vm721, %v720, %v717
    %723 = vrot.lane.b32.xlu0 %v722, 20
    %v724 = vpop.permute.xlu0 %723
    %vm725 = vcmask 244896
    %726 = vst.msk [vmem:[#allocation0] sm:$0xff] %vm725, %v724
    %s727 = scalar_lea.vmem [#allocation1], 130
    %s728 = smov 3
    %v729 = vld [vmem:[%s727] ss:$16 sm:%s728]
    %730 = vrot.lane.b32.xlu0 %v729, 20
    %v731 = vpop.permute.xlu0 %730
    %vm732 = vcmask 244896
    %s733 = scalar_lea.vmem [#allocation0], 16
    %734 = vst.msk [vmem:[%s733] sm:$0x3] %vm732, %v731
    %s735 = scalar_lea.vmem [#allocation1], 14
    %s736 = smov 3
    %v737 = vld [vmem:[%s735] ss:$16 sm:%s736]
    %s738 = scalar_lea.vmem [#allocation1], 14
    %s739 = smov 12
    %v740 = vld [vmem:[%s738] ss:$16 sm:%s739]
    %vm741 = vcmask 1043458
    %v742 = vsel %vm741, %v740, %v737
    %s743 = scalar_lea.vmem [#allocation1], 14
    %s744 = smov 48
    %v745 = vld [vmem:[%s743] ss:$16 sm:%s744]
    %vm746 = vcmask 1045508
    %v747 = vsel %vm746, %v745, %v742
    %s748 = scalar_lea.vmem [#allocation1], 14
    %s749 = smov 192
    %v750 = vld [vmem:[%s748] ss:$16 sm:%s749]
    %vm751 = vcmask 1047558
    %v752 = vsel %vm751, %v750, %v747
    %753 = vrot.lane.b32.xlu0 %v752, 12
    %v754 = vpop.permute.xlu0 %753
    %vm755 = vcmask 179296
    %s756 = scalar_lea.vmem [#allocation0], 8
    %757 = vst.msk [vmem:[%s756] sm:$0xff] %vm755, %v754
    %s758 = scalar_lea.vmem [#allocation1], 142
    %s759 = smov 3
    %v760 = vld [vmem:[%s758] ss:$16 sm:%s759]
    %761 = vrot.lane.b32.xlu0 %v760, 12
    %v762 = vpop.permute.xlu0 %761
    %vm763 = vcmask 179296
    %s764 = scalar_lea.vmem [#allocation0], 24
    %765 = vst.msk [vmem:[%s764] sm:$0x3] %vm763, %v762
    %s766 = scalar_lea.vmem [#allocation1], 1
    %s767 = smov 3
    %v768 = vld [vmem:[%s766] ss:$16 sm:%s767]
    %s769 = scalar_lea.vmem [#allocation1], 1
    %s770 = smov 12
    %v771 = vld [vmem:[%s769] ss:$16 sm:%s770]
    %vm772 = vcmask 1043458
    %v773 = vsel %vm772, %v771, %v768
    %s774 = scalar_lea.vmem [#allocation1], 1
    %s775 = smov 48
    %v776 = vld [vmem:[%s774] ss:$16 sm:%s775]
    %vm777 = vcmask 1045508
    %v778 = vsel %vm777, %v776, %v773
    %s779 = scalar_lea.vmem [#allocation1], 1
    %s780 = smov 192
    %v781 = vld [vmem:[%s779] ss:$16 sm:%s780]
    %vm782 = vcmask 1047558
    %v783 = vsel %vm782, %v781, %v778
    %784 = vrot.lane.b32.xlu0 %v783, 10
    %v785 = vpop.permute.xlu0 %784
    %vm786 = vcmask 162896
    %787 = vst.msk [vmem:[#allocation0] sm:$0xff] %vm786, %v785
    %s788 = scalar_lea.vmem [#allocation1], 129
    %s789 = smov 3
    %v790 = vld [vmem:[%s788] ss:$16 sm:%s789]
    %791 = vrot.lane.b32.xlu0 %v790, 10
    %v792 = vpop.permute.xlu0 %791
    %vm793 = vcmask 162896
    %s794 = scalar_lea.vmem [#allocation0], 16
    %795 = vst.msk [vmem:[%s794] sm:$0x3] %vm793, %v792
    %s796 = scalar_lea.vmem [#allocation1], 13
    %s797 = smov 3
    %v798 = vld [vmem:[%s796] ss:$16 sm:%s797]
    %s799 = scalar_lea.vmem [#allocation1], 13
    %s800 = smov 12
    %v801 = vld [vmem:[%s799] ss:$16 sm:%s800]
    %vm802 = vcmask 1043458
    %v803 = vsel %vm802, %v801, %v798
    %s804 = scalar_lea.vmem [#allocation1], 13
    %s805 = smov 48
    %v806 = vld [vmem:[%s804] ss:$16 sm:%s805]
    %vm807 = vcmask 1045508
    %v808 = vsel %vm807, %v806, %v803
    %s809 = scalar_lea.vmem [#allocation1], 13
    %s810 = smov 192
    %v811 = vld [vmem:[%s809] ss:$16 sm:%s810]
    %vm812 = vcmask 1047558
    %v813 = vsel %vm812, %v811, %v808
    %814 = vrot.lane.b32.xlu0 %v813, 2
    %v815 = vpop.permute.xlu0 %814
    %vm816 = vcmask 97296
    %s817 = scalar_lea.vmem [#allocation0], 8
    %818 = vst.msk [vmem:[%s817] sm:$0xff] %vm816, %v815
    %s819 = scalar_lea.vmem [#allocation1], 141
    %s820 = smov 3
    %v821 = vld [vmem:[%s819] ss:$16 sm:%s820]
    %822 = vrot.lane.b32.xlu0 %v821, 2
    %v823 = vpop.permute.xlu0 %822
    %vm824 = vcmask 97296
    %s825 = scalar_lea.vmem [#allocation0], 24
    %826 = vst.msk [vmem:[%s825] sm:$0x3] %vm824, %v823
    %s828 = smul.u32 4, 2
    %s829 = sshllo.u32 0, %s828
    %s830 = sshrl.u32 %s828, 1
    %v831 = vld [vmem:[#allocation0] sm:%s829]
    %v832 = vpack.c.bf16 0.0, %v831
    %s833 = sshllo.u32 0, %s830
    %834 = vst [vmem:[%s1] sm:%s833] %v832
    %s835 = scalar_lea.vmem [#allocation0], 8
    %v836 = vld [vmem:[%s835] sm:%s829]
    %v837 = vpack.c.bf16 0.0, %v836
    %s838 = sshllo.u32 0, %s830
    %s839 = scalar_lea.vmem %s1, 4
    %840 = vst [vmem:[%s839] sm:%s838] %v837
    %s841 = scalar_lea.vmem [#allocation0], 16
    %v842 = vld [vmem:[%s841] sm:%s829]
    %v843 = vpack.c.bf16 0.0, %v842
    %s844 = sshllo.u32 0, %s830
    %s845 = smul.addr 4, 2
    %s846 = scalar_lea.vmem %s1, %s845
    %847 = vst [vmem:[%s846] sm:%s844] %v843
    %s848 = scalar_lea.vmem [#allocation0], 24
    %v849 = vld [vmem:[%s848] sm:%s829]
    %v850 = vpack.c.bf16 0.0, %v849
    %s851 = sshllo.u32 0, %s830
    %s852 = smul.addr 4, 3
    %s853 = scalar_lea.vmem %s1, %s852
    %854 = vst [vmem:[%s853] sm:%s851] %v850

// kernel: squeeze.0
$region0: #{squeeze.0}
  %s0 = inlined_call_operand.vmem [shape: s32[2,16], index: 0, kind: input, shape index: {}]
  %s1 = inlined_call_operand.vmem [shape: s32[32,1], index: 1, kind: output, shape index: {}]
  $region1: #{squeeze.0} parent=0
    #allocation0 [shape = 'u8[4096]{0}', space=vmem, size = 0x1000, scoped, tag = 'scoped mem for input reshape']
    %s3 = sshllo.u32 0, 2
    %v4 = vld [vmem:[%s0] sm:%s3]
    %5 = vst [vmem:[#allocation0] sm:%s3] %v4
    %v6 = vld [vmem:[#allocation0] sm:$0x3]
    %vm7 = vcmask 7168
    %8 = vst.msk [vmem:[%s1] ss:$16 sm:$0x3] %vm7, %v6
    %v9 = vld [vmem:[#allocation0] sm:$0x3]
    %10 = vrot.lane.b32.xlu0 %v9, 127
    %v11 = vpop.permute.xlu0 %10
    %vm12 = vcmask 7168
    %s13 = scalar_lea.vmem %s1, 1
    %14 = vst.msk [vmem:[%s13] ss:$16 sm:$0x3] %vm12, %v11
    %v15 = vld [vmem:[#allocation0] sm:$0x3]
    %16 = vrot.lane.b32.xlu0 %v15, 126
    %v17 = vpop.permute.xlu0 %16
    %vm18 = vcmask 7168
    %s19 = scalar_lea.vmem %s1, 2
    %20 = vst.msk [vmem:[%s19] ss:$16 sm:$0x3] %vm18, %v17
    %v21 = vld [vmem:[#allocation0] sm:$0x3]
    %22 = vrot.lane.b32.xlu0 %v21, 125
    %v23 = vpop.permute.xlu0 %22
    %vm24 = vcmask 7168
    %s25 = scalar_lea.vmem %s1, 3
    %26 = vst.msk [vmem:[%s25] ss:$16 sm:$0x3] %vm24, %v23
    %v27 = vld [vmem:[#allocation0] sm:$0x3]
    %28 = vrot.lane.b32.xlu0 %v27, 124
    %v29 = vpop.permute.xlu0 %28
    %vm30 = vcmask 7168
    %s31 = scalar_lea.vmem %s1, 4
    %32 = vst.msk [vmem:[%s31] ss:$16 sm:$0x3] %vm30, %v29
    %v33 = vld [vmem:[#allocation0] sm:$0x3]
    %34 = vrot.lane.b32.xlu0 %v33, 123
    %v35 = vpop.permute.xlu0 %34
    %vm36 = vcmask 7168
    %s37 = scalar_lea.vmem %s1, 5
    %38 = vst.msk [vmem:[%s37] ss:$16 sm:$0x3] %vm36, %v35
    %v39 = vld [vmem:[#allocation0] sm:$0x3]
    %40 = vrot.lane.b32.xlu0 %v39, 122
    %v41 = vpop.permute.xlu0 %40
    %vm42 = vcmask 7168
    %s43 = scalar_lea.vmem %s1, 6
    %44 = vst.msk [vmem:[%s43] ss:$16 sm:$0x3] %vm42, %v41
    %v45 = vld [vmem:[#allocation0] sm:$0x3]
    %46 = vrot.lane.b32.xlu0 %v45, 121
    %v47 = vpop.permute.xlu0 %46
    %vm48 = vcmask 7168
    %s49 = scalar_lea.vmem %s1, 7
    %50 = vst.msk [vmem:[%s49] ss:$16 sm:$0x3] %vm48, %v47
    %v51 = vld [vmem:[#allocation0] sm:$0x3]
    %52 = vrot.lane.b32.xlu0 %v51, 120
    %v53 = vpop.permute.xlu0 %52
    %vm54 = vcmask 7168
    %s55 = scalar_lea.vmem %s1, 8
    %56 = vst.msk [vmem:[%s55] ss:$16 sm:$0x3] %vm54, %v53
    %v57 = vld [vmem:[#allocation0] sm:$0x3]
    %58 = vrot.lane.b32.xlu0 %v57, 119
    %v59 = vpop.permute.xlu0 %58
    %vm60 = vcmask 7168
    %s61 = scalar_lea.vmem %s1, 9
    %62 = vst.msk [vmem:[%s61] ss:$16 sm:$0x3] %vm60, %v59
    %v63 = vld [vmem:[#allocation0] sm:$0x3]
    %64 = vrot.lane.b32.xlu0 %v63, 118
    %v65 = vpop.permute.xlu0 %64
    %vm66 = vcmask 7168
    %s67 = scalar_lea.vmem %s1, 10
    %68 = vst.msk [vmem:[%s67] ss:$16 sm:$0x3] %vm66, %v65
    %v69 = vld [vmem:[#allocation0] sm:$0x3]
    %70 = vrot.lane.b32.xlu0 %v69, 117
    %v71 = vpop.permute.xlu0 %70
    %vm72 = vcmask 7168
    %s73 = scalar_lea.vmem %s1, 11
    %74 = vst.msk [vmem:[%s73] ss:$16 sm:$0x3] %vm72, %v71
    %v75 = vld [vmem:[#allocation0] sm:$0x3]
    %76 = vrot.lane.b32.xlu0 %v75, 116
    %v77 = vpop.permute.xlu0 %76
    %vm78 = vcmask 7168
    %s79 = scalar_lea.vmem %s1, 12
    %80 = vst.msk [vmem:[%s79] ss:$16 sm:$0x3] %vm78, %v77
    %v81 = vld [vmem:[#allocation0] sm:$0x3]
    %82 = vrot.lane.b32.xlu0 %v81, 115
    %v83 = vpop.permute.xlu0 %82
    %vm84 = vcmask 7168
    %s85 = scalar_lea.vmem %s1, 13
    %86 = vst.msk [vmem:[%s85] ss:$16 sm:$0x3] %vm84, %v83
    %v87 = vld [vmem:[#allocation0] sm:$0x3]
    %88 = vrot.lane.b32.xlu0 %v87, 114
    %v89 = vpop.permute.xlu0 %88
    %vm90 = vcmask 7168
    %s91 = scalar_lea.vmem %s1, 14
    %92 = vst.msk [vmem:[%s91] ss:$16 sm:$0x3] %vm90, %v89
    %v93 = vld [vmem:[#allocation0] sm:$0x3]
    %94 = vrot.lane.b32.xlu0 %v93, 113
    %v95 = vpop.permute.xlu0 %94
    %vm96 = vcmask 7168
    %s97 = scalar_lea.vmem %s1, 15
    %98 = vst.msk [vmem:[%s97] ss:$16 sm:$0x3] %vm96, %v95

// kernel: reformer_head_forward.1
$region0: #{reformer_head_forward.1}
  #allocation0 [shape = 'u32[]', space=smem, size = 0x4, offset = 0x4, fixed_abs, tag = 'smem constant byte address 0x4 - core index']
  #allocation1 [shape = 'u32[144,128]{1,0:T(1,128)}', space=vmem, size = 0x12000, scoped, tag = 'internal scratch']
  %s0 = inlined_call_operand.vmem [shape: s32[32,1], index: 0, kind: input, shape index: {}]
  %s1 = inlined_call_operand.vmem [shape: bf16[48,32], index: 1, kind: input, shape index: {}]
  %s2 = inlined_call_operand.vmem [shape: bf16[2,32,224], index: 2, kind: input, shape index: {}]
  %s3 = inlined_call_operand.vmem [shape: bf16[2,128,32], index: 3, kind: input, shape index: {}]
  %s4 = inlined_call_operand.vmem [shape: f32[2,8,128], index: 4, kind: input, shape index: {}]
  %s5 = inlined_call_operand.vmem [shape: bf16[32,160], index: 5, kind: input, shape index: {}]
  %s6 = inlined_call_operand.vmem [shape: bf16[32,160], index: 6, kind: input, shape index: {}]
  %s7 = inlined_call_operand.vmem [shape: bf16[160,10], index: 7, kind: input, shape index: {}]
  %s8 = inlined_call_operand.vmem [shape: f32[1,10], index: 8, kind: input, shape index: {}]
  %s9 = inlined_call_operand.hbm [shape: f32[2,10], index: 9, kind: output, shape index: {}]
  %s10 = sld [smem:[#allocation0]]
  $region46: #{reformer_head_forward.1} parent=0
    _
  %s12 = ssub.s32 1, %s10
  %s13 = scalar_select 0, %s12, %s10
  $region1: #{reformer_head_forward.1} parent=0
    #allocation2 [shape = 'u8[1024]{0}', space=vmem, size = 0x400, scoped, tag = 'output window, operand 0, single buffered']
    #allocation3 [shape = 's32[1]{0}', space=sflag, size = 0x4, scoped, tag = 'scoped memory for reformer_head_forward.1']
    %14 = vsyncpa [#allocation3], 0
    // Predicated region
    $region2: #{reformer_head_forward.1} parent=1 // pred_check
      _
    $region3: #{reformer_head_forward.1} parent=1 // pred_check_branch
      %16 = sbr.rel (0) target = $region5
    $region4: #{reformer_head_forward.1} parent=1 // pred_region
      _
    $region5: #{reformer_head_forward.1} parent=1 // pred_fallthru
      _
    // Predicated region
    $region6: #{reformer_head_forward.1} parent=1 // pred_check
      _
    $region7: #{reformer_head_forward.1} parent=1 // pred_check_branch
      %18 = sbr.rel (0) target = $region9
    $region8: #{reformer_head_forward.1} parent=1 // pred_region
      _
    $region9: #{reformer_head_forward.1} parent=1 // pred_fallthru
      _
    // Predicated region
    $region10: #{reformer_head_forward.1} parent=1 // pred_check
      _
    $region11: #{reformer_head_forward.1} parent=1 // pred_check_branch
      %20 = sbr.rel (0) target = $region13
    $region12: #{reformer_head_forward.1} parent=1 // pred_region
      _
    $region13: #{reformer_head_forward.1} parent=1 // pred_fallthru
      _
    // Predicated region
    $region14: #{reformer_head_forward.1} parent=1 // pred_check
      _
    $region15: #{reformer_head_forward.1} parent=1 // pred_check_branch
      %22 = sbr.rel (0) target = $region17
    $region16: #{reformer_head_forward.1} parent=1 // pred_region
      _
    $region17: #{reformer_head_forward.1} parent=1 // pred_fallthru
      _
    // Predicated region
    $region18: #{reformer_head_forward.1} parent=1 // pred_check
      _
    $region19: #{reformer_head_forward.1} parent=1 // pred_check_branch
      %24 = sbr.rel (0) target = $region21
    $region20: #{reformer_head_forward.1} parent=1 // pred_region
      _
    $region21: #{reformer_head_forward.1} parent=1 // pred_fallthru
      _
    // Predicated region
    $region22: #{reformer_head_forward.1} parent=1 // pred_check
      _
    $region23: #{reformer_head_forward.1} parent=1 // pred_check_branch
      %26 = sbr.rel (0) target = $region25
    $region24: #{reformer_head_forward.1} parent=1 // pred_region
      _
    $region25: #{reformer_head_forward.1} parent=1 // pred_fallthru
      _
    // Predicated region
    $region26: #{reformer_head_forward.1} parent=1 // pred_check
      _
    $region27: #{reformer_head_forward.1} parent=1 // pred_check_branch
      %28 = sbr.rel (0) target = $region29
    $region28: #{reformer_head_forward.1} parent=1 // pred_region
      _
    $region29: #{reformer_head_forward.1} parent=1 // pred_fallthru
      _
    // Predicated region
    $region30: #{reformer_head_forward.1} parent=1 // pred_check
      _
    $region31: #{reformer_head_forward.1} parent=1 // pred_check_branch
      %30 = sbr.rel (0) target = $region33
    $region32: #{reformer_head_forward.1} parent=1 // pred_region
      _
    $region33: #{reformer_head_forward.1} parent=1 // pred_fallthru
      _
    // Predicated region
    $region34: #{reformer_head_forward.1} parent=1 // pred_check
      _
    $region35: #{reformer_head_forward.1} parent=1 // pred_check_branch
      %32 = sbr.rel (0) target = $region37
    $region36: #{reformer_head_forward.1} parent=1 // pred_region
      _
    $region37: #{reformer_head_forward.1} parent=1 // pred_fallthru
      _
    %v34 = vlaneseq
    %v35 = vand.u32 %v34, 127
    %v36 = vlaneseq
    %v37 = vshrl.u32 %v36, 7
    %v38 = vadd.s32 %v37, 8
    %v39 = vadd.s32 %v37, 16
    %v40 = vadd.s32 %v37, 24
    %v41 = vld [vmem:[%s0] sm:$0xff]
    %v42 = vld [vmem:[%s0 + $0x8] sm:$0xff]
    %v43 = vld [vmem:[%s0 + $0x10] sm:$0xff]
    %v44 = vld [vmem:[%s0 + $0x18] sm:$0xff]
    %45 = vset.pattern.permute.xlu0 0
    %46 = vperm.xlu0 %45, %v41
    %v47 = vpop.permute.xlu0 %46
    %48 = vset.pattern.permute.xlu0 0
    %49 = vperm.xlu0 %48, %v42
    %v50 = vpop.permute.xlu0 %49
    %51 = vset.pattern.permute.xlu0 0
    %52 = vperm.xlu0 %51, %v43
    %v53 = vpop.permute.xlu0 %52
    %54 = vset.pattern.permute.xlu0 0
    %55 = vperm.xlu0 %54, %v44
    %v56 = vpop.permute.xlu0 %55
    %vm57 = vcmp.eq.s32.totalorder %v47, %v35
    %vm58 = vcmp.eq.s32.totalorder %v50, %v35
    %vm59 = vcmp.eq.s32.totalorder %v53, %v35
    %vm60 = vcmp.eq.s32.totalorder %v56, %v35
    %vm61 = vcmp.ge.s32.totalorder %v35, 32
    %v62 = vsub.s32 %v35, 32
    %vm63 = vcmp.eq.s32.totalorder %v37, %v62
    %vm64 = vcmp.eq.s32.totalorder %v38, %v62
    %vm65 = vcmp.eq.s32.totalorder %v39, %v62
    %vm66 = vcmp.eq.s32.totalorder %v40, %v62
    %vm67 = vmand %vm61, %vm63
    %vm68 = vmand %vm61, %vm64
    %vm69 = vmand %vm61, %vm65
    %vm70 = vmand %vm61, %vm66
    %vm71 = vmor %vm57, %vm67
    %vm72 = vmor %vm58, %vm68
    %vm73 = vmor %vm59, %vm69
    %vm74 = vmor %vm60, %vm70
    %v75 = vadd.s32 %v62, 16
    %vm76 = vcmp.eq.s32.totalorder %v37, %v75
    %vm77 = vcmp.eq.s32.totalorder %v38, %v75
    %vm78 = vcmp.eq.s32.totalorder %v39, %v75
    %vm79 = vcmp.eq.s32.totalorder %v40, %v75
    %vm80 = vmand %vm61, %vm76
    %vm81 = vmand %vm61, %vm77
    %vm82 = vmand %vm61, %vm78
    %vm83 = vmand %vm61, %vm79
    %vm84 = vmor %vm71, %vm80
    %vm85 = vmor %vm72, %vm81
    %vm86 = vmor %vm73, %vm82
    %vm87 = vmor %vm74, %vm83
    %v88 = vsel %vm84, 1, 0
    %v89 = vsel %vm85, 1, 0
    %v90 = vsel %vm86, 1, 0
    %v91 = vsel %vm87, 1, 0
    %v92 = vcvt.s32.f32 %v88
    %v93 = vcvt.s32.f32 %v89
    %v94 = vcvt.s32.f32 %v90
    %v95 = vcvt.s32.f32 %v91
    %v96 = vpack.c.bf16 %v93, %v92
    %v97 = vpack.c.bf16 %v95, %v94
    %v98 = vld [vmem:[%s1] sm:$0xf]
    %v99 = vld [vmem:[%s1 + $0x4] sm:$0xf]
    %v100 = vld [vmem:[%s1 + $0x8] sm:$0xf]
    %v101 = vld [vmem:[%s1 + $0xc] sm:$0xf]
    %v102 = vld [vmem:[%s1 + $0x10] sm:$0xf]
    %v103 = vld [vmem:[%s1 + $0x14] sm:$0xf]
    %v110 = vunpack.c.l.b16 %v98
    %v111 = vunpack.c.l.b16 %v99
    %v112 = vunpack.c.l.b16 %v100
    %v113 = vunpack.c.l.b16 %v101
    %v114 = vunpack.c.l.b16 %v102
    %v115 = vunpack.c.l.b16 %v103
    %v116 = vpack.c.b16 %v111, %v110
    %v117 = vpack.c.b16 %v113, %v112
    %v118 = vpack.c.b16 %v115, %v114
    %vm122 = vcmask 392192
    %v124 = vsel %vm122, %v96, 0
    %v127 = vsel %vm122, %v97, 0
    %129 = vmatprep.subr.bf16.mxu0 0
    %130 = vmatpush1.bf16.msra.mxu0 %v116
    %131 = vmatprep.subr.bf16.mxu0 0
    %132 = vmatpush1.bf16.msra.mxu0 %v117
    %133 = vmatprep.subr.bf16.mxu0 0
    %134 = vmatpush1.bf16.msra.mxu0 %v118
    %135 = vmatprep.subr.bf16.mxu0 0
    %136 = vmatpush1.bf16.msra.mxu0 0
    %137 = vmatprep.subr.bf16.mxu0 0
    %138 = vmatpush1.bf16.msra.mxu0 0
    %139 = vmatprep.subr.bf16.mxu0 0
    %140 = vmatpush1.bf16.msra.mxu0 0
    %141 = vmatprep.subr.bf16.mxu0 0
    %142 = vmatpush1.bf16.msra.mxu0 0
    %143 = vmatprep.subr.bf16.mxu0 0
    %144 = vmatpush1.bf16.msra.mxu0 0
    %145 = vmatprep.subr.bf16.mxu0 0
    %146 = vmatpush1.bf16.msra.mxu0 0
    %147 = vmatprep.subr.bf16.mxu0 0
    %148 = vmatpush1.bf16.msra.mxu0 0
    %149 = vmatprep.subr.bf16.mxu0 0
    %150 = vmatpush1.bf16.msra.mxu0 0
    %151 = vmatprep.subr.bf16.mxu0 0
    %152 = vmatpush1.bf16.msra.mxu0 0
    %153 = vmatprep.subr.bf16.mxu0 0
    %154 = vmatpush1.bf16.msra.mxu0 0
    %155 = vmatprep.subr.bf16.mxu0 0
    %156 = vmatpush1.bf16.msra.mxu0 0
    %157 = vmatprep.subr.bf16.mxu0 0
    %158 = vmatpush1.bf16.msra.mxu0 0
    %159 = vmatprep.subr.bf16.mxu0 0
    %160 = vmatpush1.bf16.msra.mxu0 0
    %161 = vmatprep.mubr.bf16.mxu0 0
    %162 = vmatmul.mubr.bf16.gmra.mrb[0].mxu0 %v124
    %v163 = vpop.f32.mrb[0].mxu0
    %v164 = vadd.f32 0.0, %v163
    %v165 = vpop.f32.mrb[0].mxu0
    %v166 = vpop.f32.mrb[0].mxu0
    %v167 = vadd.f32 0.0, %v166
    %v168 = vpop.f32.mrb[0].mxu0
    %169 = vmatprep.mubr.bf16.mxu0 0
    %170 = vmatmul.mubr.bf16.gmra.mrb[0].mxu0 %v127
    %v171 = vpop.f32.mrb[0].mxu0
    %v172 = vadd.f32 0.0, %v171
    %v173 = vpop.f32.mrb[0].mxu0
    %v174 = vpop.f32.mrb[0].mxu0
    %v175 = vadd.f32 0.0, %v174
    %v176 = vpop.f32.mrb[0].mxu0
    %177 = vdwg.mxu0
    %vm178 = vcmp.ge.s32.totalorder %v37, 0
    %vm179 = vcmp.ge.s32.totalorder %v38, 0
    %vm180 = vcmp.ge.s32.totalorder %v39, 0
    %vm181 = vcmp.ge.s32.totalorder %v40, 0
    %vm182 = vcmp.lt.s32.totalorder %v37, 16
    %vm183 = vcmp.lt.s32.totalorder %v38, 16
    %vm184 = vcmp.lt.s32.totalorder %v39, 16
    %vm185 = vcmp.lt.s32.totalorder %v40, 16
    %vm186 = vmand %vm178, %vm182
    %vm187 = vmand %vm179, %vm183
    %vm188 = vmand %vm180, %vm184
    %vm189 = vmand %vm181, %vm185
    %vm190 = vcmp.ge.s32.totalorder %v35, 0
    %vm191 = vmand %vm186, %vm190
    %vm192 = vmand %vm187, %vm190
    %vm193 = vmand %vm188, %vm190
    %vm194 = vmand %vm189, %vm190
    %vm195 = vcmp.lt.s32.totalorder %v35, 16
    %vm196 = vmand %vm191, %vm195
    %vm197 = vmand %vm192, %vm195
    %vm198 = vmand %vm193, %vm195
    %vm199 = vmand %vm194, %vm195
    %vm200 = vcmp.ge.s32.totalorder %v37, 16
    %vm201 = vcmp.ge.s32.totalorder %v38, 16
    %vm202 = vcmp.ge.s32.totalorder %v39, 16
    %vm203 = vcmp.ge.s32.totalorder %v40, 16
    %vm204 = vcmp.lt.s32.totalorder %v37, 32
    %vm205 = vcmp.lt.s32.totalorder %v38, 32
    %vm206 = vcmp.lt.s32.totalorder %v39, 32
    %vm207 = vcmp.lt.s32.totalorder %v40, 32
    %vm208 = vmand %vm200, %vm204
    %vm209 = vmand %vm201, %vm205
    %vm210 = vmand %vm202, %vm206
    %vm211 = vmand %vm203, %vm207
    %vm212 = vcmp.ge.s32.totalorder %v35, 16
    %vm213 = vmand %vm208, %vm212
    %vm214 = vmand %vm209, %vm212
    %vm215 = vmand %vm210, %vm212
    %vm216 = vmand %vm211, %vm212
    %vm217 = vcmp.lt.s32.totalorder %v35, 32
    %vm218 = vmand %vm213, %vm217
    %vm219 = vmand %vm214, %vm217
    %vm220 = vmand %vm215, %vm217
    %vm221 = vmand %vm216, %vm217
    %vm222 = vmor %vm196, %vm218
    %vm223 = vmor %vm197, %vm219
    %vm224 = vmor %vm198, %vm220
    %vm225 = vmor %vm199, %vm221
    %vm226 = vcmp.eq.s32.totalorder %v35, %v37
    %vm227 = vcmp.eq.s32.totalorder %v35, %v38
    %vm228 = vcmp.eq.s32.totalorder %v35, %v39
    %vm229 = vcmp.eq.s32.totalorder %v35, %v40
    %vm230 = vcmp.lt.s32.totalorder %v35, %v37
    %vm231 = vcmp.lt.s32.totalorder %v35, %v38
    %vm232 = vcmp.lt.s32.totalorder %v35, %v39
    %vm233 = vcmp.lt.s32.totalorder %v35, %v40
    %vm234 = vmand %vm222, %vm230
    %vm235 = vmand %vm223, %vm231
    %vm236 = vmand %vm224, %vm232
    %vm237 = vmand %vm225, %vm233
    %v238 = vsel %vm234, 0.0, -1e+09
    %v239 = vsel %vm235, 0.0, -1e+09
    %v240 = vsel %vm236, 0.0, -1e+09
    %v241 = vsel %vm237, 0.0, -1e+09
    %v242 = vsel %vm226, -50000.0, %v238
    %v243 = vsel %vm227, -50000.0, %v239
    %v244 = vsel %vm228, -50000.0, %v240
    %v245 = vsel %vm229, -50000.0, %v241
    %vm246 = vcmp.lt.s32.totalorder %v35, 8
    %vm247 = vmand %vm190, %vm246
    %v248 = vsel %vm247, 1, 0
    %v249 = vcvt.s32.f32 %v248
    %vm250 = vcmp.ge.s32.totalorder %v35, 8
    %vm251 = vmand %vm250, %vm195
    %v252 = vsel %vm251, 1, 0
    %v253 = vcvt.s32.f32 %v252
    %vm254 = vcmp.lt.s32.totalorder %v35, 24
    %vm255 = vmand %vm212, %vm254
    %v256 = vsel %vm255, 1, 0
    %v257 = vcvt.s32.f32 %v256
    %vm258 = vcmp.ge.s32.totalorder %v35, 24
    %vm259 = vmand %vm258, %vm217
    %v260 = vsel %vm259, 1, 0
    %v261 = vcvt.s32.f32 %v260
    %vm262 = vcmp.lt.s32.totalorder %v37, 8
    %vm263 = vcmp.lt.s32.totalorder %v38, 8
    %vm264 = vcmp.lt.s32.totalorder %v39, 8
    %vm265 = vcmp.lt.s32.totalorder %v40, 8
    %vm266 = vmand %vm178, %vm262
    %vm267 = vmand %vm179, %vm263
    %vm268 = vmand %vm180, %vm264
    %vm269 = vmand %vm181, %vm265
    %vm270 = vmand %vm266, %vm190
    %vm271 = vmand %vm267, %vm190
    %vm272 = vmand %vm268, %vm190
    %vm273 = vmand %vm269, %vm190
    %vm274 = vmand %vm270, %vm246
    %vm275 = vmand %vm271, %vm246
    %vm276 = vmand %vm272, %vm246
    %vm277 = vmand %vm273, %vm246
    %vm278 = vcmp.ge.s32.totalorder %v37, 8
    %vm279 = vcmp.ge.s32.totalorder %v38, 8
    %vm280 = vcmp.ge.s32.totalorder %v39, 8
    %vm281 = vcmp.ge.s32.totalorder %v40, 8
    %vm282 = vmand %vm278, %vm182
    %vm283 = vmand %vm279, %vm183
    %vm284 = vmand %vm280, %vm184
    %vm285 = vmand %vm281, %vm185
    %vm286 = vmand %vm282, %vm250
    %vm287 = vmand %vm283, %vm250
    %vm288 = vmand %vm284, %vm250
    %vm289 = vmand %vm285, %vm250
    %vm290 = vmand %vm286, %vm195
    %vm291 = vmand %vm287, %vm195
    %vm292 = vmand %vm288, %vm195
    %vm293 = vmand %vm289, %vm195
    %vm294 = vmor %vm274, %vm290
    %vm295 = vmor %vm275, %vm291
    %vm296 = vmor %vm276, %vm292
    %vm297 = vmor %vm277, %vm293
    %vm298 = vcmp.lt.s32.totalorder %v37, 24
    %vm299 = vcmp.lt.s32.totalorder %v38, 24
    %vm300 = vcmp.lt.s32.totalorder %v39, 24
    %vm301 = vcmp.lt.s32.totalorder %v40, 24
    %vm302 = vmand %vm200, %vm298
    %vm303 = vmand %vm201, %vm299
    %vm304 = vmand %vm202, %vm300
    %vm305 = vmand %vm203, %vm301
    %vm306 = vmand %vm302, %vm212
    %vm307 = vmand %vm303, %vm212
    %vm308 = vmand %vm304, %vm212
    %vm309 = vmand %vm305, %vm212
    %vm310 = vmand %vm306, %vm254
    %vm311 = vmand %vm307, %vm254
    %vm312 = vmand %vm308, %vm254
    %vm313 = vmand %vm309, %vm254
    %vm314 = vmor %vm294, %vm310
    %vm315 = vmor %vm295, %vm311
    %vm316 = vmor %vm296, %vm312
    %vm317 = vmor %vm297, %vm313
    %vm318 = vcmp.ge.s32.totalorder %v37, 24
    %vm319 = vcmp.ge.s32.totalorder %v38, 24
    %vm320 = vcmp.ge.s32.totalorder %v39, 24
    %vm321 = vcmp.ge.s32.totalorder %v40, 24
    %vm322 = vmand %vm318, %vm204
    %vm323 = vmand %vm319, %vm205
    %vm324 = vmand %vm320, %vm206
    %vm325 = vmand %vm321, %vm207
    %vm326 = vmand %vm322, %vm258
    %vm327 = vmand %vm323, %vm258
    %vm328 = vmand %vm324, %vm258
    %vm329 = vmand %vm325, %vm258
    %vm330 = vmand %vm326, %vm217
    %vm331 = vmand %vm327, %vm217
    %vm332 = vmand %vm328, %vm217
    %vm333 = vmand %vm329, %vm217
    %vm334 = vmor %vm314, %vm330
    %vm335 = vmor %vm315, %vm331
    %vm336 = vmor %vm316, %vm332
    %vm337 = vmor %vm317, %vm333
    %v338 = vsel %vm334, 1, 0
    %v339 = vsel %vm335, 1, 0
    %v340 = vsel %vm336, 1, 0
    %v341 = vsel %vm337, 1, 0
    %v342 = vcvt.s32.f32 %v338
    %v343 = vcvt.s32.f32 %v339
    %v344 = vcvt.s32.f32 %v340
    %v345 = vcvt.s32.f32 %v341
    %v346 = vpack.c.bf16 %v343, %v342
    %v347 = vpack.c.bf16 %v345, %v344
    %vm348 = vcmp.eq.s32.totalorder %v37, 0
    %vm349 = vmand %vm348, %vm190
    %vm350 = vmand %vm349, %vm195
    %vm351 = vcmp.eq.s32.totalorder %v37, 1
    %vm352 = vmand %vm351, %vm212
    %vm353 = vmand %vm352, %vm217
    %vm354 = vmor %vm350, %vm353
    %v355 = vsel %vm354, 1, 0
    %v356 = vcvt.s32.f32 %v355
    %v357 = vpack.c.bf16 %v356, %v356
    %v358 = vld [vmem:[%s2] sm:$0xff]
    %v359 = vld [vmem:[%s2 + $0x8] sm:$0xff]
    %v360 = vld [vmem:[%s2 + $0x10] sm:$0xff]
    %v361 = vld [vmem:[%s2 + $0x18] sm:$0xff]
    %v362 = vld [vmem:[%s3] sm:$0xf]
    %v363 = vld [vmem:[%s3 + $0x4] sm:$0xf]
    %v364 = vld [vmem:[%s3 + $0x8] sm:$0xf]
    %v365 = vld [vmem:[%s3 + $0xc] sm:$0xf]
    %v366 = vld [vmem:[%s3 + $0x10] sm:$0xf]
    %v367 = vld [vmem:[%s3 + $0x14] sm:$0xf]
    %v368 = vld [vmem:[%s3 + $0x18] sm:$0xf]
    %v369 = vld [vmem:[%s3 + $0x1c] sm:$0xf]
    %v370 = vld [vmem:[%s3 + $0x20] sm:$0xf]
    %v371 = vld [vmem:[%s3 + $0x24] sm:$0xf]
    %v372 = vld [vmem:[%s3 + $0x28] sm:$0xf]
    %v373 = vld [vmem:[%s3 + $0x2c] sm:$0xf]
    %v374 = vld [vmem:[%s3 + $0x30] sm:$0xf]
    %v375 = vld [vmem:[%s3 + $0x34] sm:$0xf]
    %v376 = vld [vmem:[%s3 + $0x38] sm:$0xf]
    %v377 = vld [vmem:[%s3 + $0x3c] sm:$0xf]
    %v378 = vld [vmem:[%s4] sm:$0xff]
    %vm379 = vcmask 261120
    %v380 = vsel %vm379, %v164, 0.0
    %381 = vadd.xlane.f32.xlu0 %v380
    %v382 = vpop.xlane.xlu0 %381
    %v383 = vsel %vm379, %v167, 0.0
    %384 = vadd.xlane.f32.xlu0 %v383
    %v385 = vpop.xlane.xlu0 %384
    %v386 = vsel %vm379, %v172, 0.0
    %387 = vadd.xlane.f32.xlu0 %v386
    %v388 = vpop.xlane.xlu0 %387
    %v389 = vsel %vm379, %v175, 0.0
    %390 = vadd.xlane.f32.xlu0 %v389
    %v391 = vpop.xlane.xlu0 %390
    %v392 = vrcp.pop 32.0
    %v393 = vmul.f32 %v382, %v392
    %v394 = vmul.f32 %v385, %v392
    %v395 = vmul.f32 %v388, %v392
    %v396 = vmul.f32 %v391, %v392
    %v397 = vsub.f32 %v164, %v393
    %v398 = vsub.f32 %v167, %v394
    %v399 = vsub.f32 %v172, %v395
    %v400 = vsub.f32 %v175, %v396
    %v401 = vmul.f32 %v397, %v397
    %v402 = vmul.f32 %v398, %v398
    %v403 = vmul.f32 %v399, %v399
    %v404 = vmul.f32 %v400, %v400
    %v405 = vsel %vm379, %v401, 0.0
    %406 = vadd.xlane.f32.xlu0 %v405
    %v407 = vpop.xlane.xlu0 %406
    %v408 = vsel %vm379, %v402, 0.0
    %409 = vadd.xlane.f32.xlu0 %v408
    %v410 = vpop.xlane.xlu0 %409
    %v411 = vsel %vm379, %v403, 0.0
    %412 = vadd.xlane.f32.xlu0 %v411
    %v413 = vpop.xlane.xlu0 %412
    %v414 = vsel %vm379, %v404, 0.0
    %415 = vadd.xlane.f32.xlu0 %v414
    %v416 = vpop.xlane.xlu0 %415
    %v417 = vmul.f32 %v407, %v392
    %v418 = vmul.f32 %v410, %v392
    %v419 = vmul.f32 %v413, %v392
    %v420 = vmul.f32 %v416, %v392
    %v421 = vadd.f32 %v417, 1e-05
    %v422 = vadd.f32 %v418, 1e-05
    %v423 = vadd.f32 %v419, 1e-05
    %v424 = vadd.f32 %v420, 1e-05
    %v425 = vrsqrt.pop %v421
    %v426 = vrsqrt.pop %v422
    %v427 = vrsqrt.pop %v423
    %v428 = vrsqrt.pop %v424
    %v429 = vmul.f32 %v397, %v425
    %v430 = vmul.f32 %v398, %v426
    %v431 = vmul.f32 %v399, %v427
    %v432 = vmul.f32 %v400, %v428
    %v433 = vlaneseq
    %v434 = vshrl.u32 %v433, 7
    %v435 = vsub.s32 0, %v434
    %v436 = vrot.slane %v378, %v435
    %v437 = vmul.f32 %v429, %v436
    %v438 = vmul.f32 %v430, %v436
    %v439 = vmul.f32 %v431, %v436
    %v440 = vmul.f32 %v432, %v436
    %v441 = vlaneseq
    %v442 = vshrl.u32 %v441, 7
    %v443 = vsub.s32 1, %v442
    %v444 = vrot.slane %v378, %v443
    %v445 = vadd.f32 %v437, %v444
    %v446 = vadd.f32 %v438, %v444
    %v447 = vadd.f32 %v439, %v444
    %v448 = vadd.f32 %v440, %v444
    %v449 = vpack.c.bf16 %v446, %v445
    %v450 = vpack.c.bf16 %v448, %v447
    %v455 = vunpack.c.h.b16 %v358
    %v456 = vunpack.c.h.b16 %v359
    %v457 = vunpack.c.h.b16 %v360
    %v458 = vunpack.c.h.b16 %v361
    %v459 = vpack.c.b16 %v456, %v455
    %v460 = vpack.c.b16 %v458, %v457
    %v464 = vsel %vm379, %v449, 0
    %v467 = vsel %vm379, %v450, 0
    %469 = vmatprep.subr.bf16.mxu0 0
    %470 = vmatpush1.bf16.msra.mxu0 %v459
    %471 = vmatprep.subr.bf16.mxu0 0
    %472 = vmatpush1.bf16.msra.mxu0 %v460
    %473 = vmatprep.subr.bf16.mxu0 0
    %474 = vmatpush1.bf16.msra.mxu0 0
    %475 = vmatprep.subr.bf16.mxu0 0
    %476 = vmatpush1.bf16.msra.mxu0 0
    %477 = vmatprep.subr.bf16.mxu0 0
    %478 = vmatpush1.bf16.msra.mxu0 0
    %479 = vmatprep.subr.bf16.mxu0 0
    %480 = vmatpush1.bf16.msra.mxu0 0
    %481 = vmatprep.subr.bf16.mxu0 0
    %482 = vmatpush1.bf16.msra.mxu0 0
    %483 = vmatprep.subr.bf16.mxu0 0
    %484 = vmatpush1.bf16.msra.mxu0 0
    %485 = vmatprep.subr.bf16.mxu0 0
    %486 = vmatpush1.bf16.msra.mxu0 0
    %487 = vmatprep.subr.bf16.mxu0 0
    %488 = vmatpush1.bf16.msra.mxu0 0
    %489 = vmatprep.subr.bf16.mxu0 0
    %490 = vmatpush1.bf16.msra.mxu0 0
    %491 = vmatprep.subr.bf16.mxu0 0
    %492 = vmatpush1.bf16.msra.mxu0 0
    %493 = vmatprep.subr.bf16.mxu0 0
    %494 = vmatpush1.bf16.msra.mxu0 0
    %495 = vmatprep.subr.bf16.mxu0 0
    %496 = vmatpush1.bf16.msra.mxu0 0
    %497 = vmatprep.subr.bf16.mxu0 0
    %498 = vmatpush1.bf16.msra.mxu0 0
    %499 = vmatprep.subr.bf16.mxu0 0
    %500 = vmatpush1.bf16.msra.mxu0 0
    %501 = vmatprep.mubr.bf16.mxu0 0
    %502 = vmatmul.mubr.bf16.gmra.mrb[0].mxu0 %v464
    %v503 = vpop.f32.mrb[0].mxu0
    %v504 = vadd.f32 0.0, %v503
    %v505 = vpop.f32.mrb[0].mxu0
    %v506 = vpop.f32.mrb[0].mxu0
    %v507 = vadd.f32 0.0, %v506
    %v508 = vpop.f32.mrb[0].mxu0
    %509 = vmatprep.mubr.bf16.mxu0 0
    %510 = vmatmul.mubr.bf16.gmra.mrb[0].mxu0 %v467
    %v511 = vpop.f32.mrb[0].mxu0
    %v512 = vadd.f32 0.0, %v511
    %v513 = vpop.f32.mrb[0].mxu0
    %v514 = vpop.f32.mrb[0].mxu0
    %v515 = vadd.f32 0.0, %v514
    %v516 = vpop.f32.mrb[0].mxu0
    %517 = vdwg.mxu0
    %v518 = vmul.f32 %v504, %v504
    %v519 = vmul.f32 %v507, %v507
    %v520 = vmul.f32 %v512, %v512
    %v521 = vmul.f32 %v515, %v515
    %v522 = vpack.c.bf16 %v519, %v518
    %v523 = vpack.c.bf16 %v521, %v520
    %v525 = vsel %vm379, %v522, 0
    %v528 = vsel %vm379, %v523, 0
    %530 = vmatprep.subr.bf16.mxu0 0
    %531 = vmatpush1.bf16.msra.mxu0 %v346
    %532 = vmatprep.subr.bf16.mxu0 0
    %533 = vmatpush1.bf16.msra.mxu0 %v347
    %534 = vmatprep.subr.bf16.mxu0 0
    %535 = vmatpush1.bf16.msra.mxu0 0
    %536 = vmatprep.subr.bf16.mxu0 0
    %537 = vmatpush1.bf16.msra.mxu0 0
    %538 = vmatprep.subr.bf16.mxu0 0
    %539 = vmatpush1.bf16.msra.mxu0 0
    %540 = vmatprep.subr.bf16.mxu0 0
    %541 = vmatpush1.bf16.msra.mxu0 0
    %542 = vmatprep.subr.bf16.mxu0 0
    %543 = vmatpush1.bf16.msra.mxu0 0
    %544 = vmatprep.subr.bf16.mxu0 0
    %545 = vmatpush1.bf16.msra.mxu0 0
    %546 = vmatprep.subr.bf16.mxu0 0
    %547 = vmatpush1.bf16.msra.mxu0 0
    %548 = vmatprep.subr.bf16.mxu0 0
    %549 = vmatpush1.bf16.msra.mxu0 0
    %550 = vmatprep.subr.bf16.mxu0 0
    %551 = vmatpush1.bf16.msra.mxu0 0
    %552 = vmatprep.subr.bf16.mxu0 0
    %553 = vmatpush1.bf16.msra.mxu0 0
    %554 = vmatprep.subr.bf16.mxu0 0
    %555 = vmatpush1.bf16.msra.mxu0 0
    %556 = vmatprep.subr.bf16.mxu0 0
    %557 = vmatpush1.bf16.msra.mxu0 0
    %558 = vmatprep.subr.bf16.mxu0 0
    %559 = vmatpush1.bf16.msra.mxu0 0
    %560 = vmatprep.subr.bf16.mxu0 0
    %561 = vmatpush1.bf16.msra.mxu0 0
    %562 = vmatprep.mubr.bf16.mxu0 0
    %563 = vmatmul.mubr.bf16.gmra.mrb[0].mxu0 %v525
    %v564 = vpop.f32.mrb[0].mxu0
    %v565 = vadd.f32 1e-12, %v564
    %v566 = vpop.f32.mrb[0].mxu0
    %v567 = vpop.f32.mrb[0].mxu0
    %v568 = vadd.f32 1e-12, %v567
    %v569 = vpop.f32.mrb[0].mxu0
    %570 = vmatprep.mubr.bf16.mxu0 0
    %571 = vmatmul.mubr.bf16.gmra.mrb[0].mxu0 %v528
    %v572 = vpop.f32.mrb[0].mxu0
    %v573 = vadd.f32 1e-12, %v572
    %v574 = vpop.f32.mrb[0].mxu0
    %v575 = vpop.f32.mrb[0].mxu0
    %v576 = vadd.f32 1e-12, %v575
    %v577 = vpop.f32.mrb[0].mxu0
    %578 = vdwg.mxu0
    %v579 = vrsqrt.pop %v565
    %v580 = vrsqrt.pop %v568
    %v581 = vrsqrt.pop %v573
    %v582 = vrsqrt.pop %v576
    %v583 = vmul.f32 %v504, %v579
    %v584 = vmul.f32 %v507, %v580
    %v585 = vmul.f32 %v512, %v581
    %v586 = vmul.f32 %v515, %v582
    %v587 = vpack.c.bf16 %v584, %v583
    %v588 = vpack.c.bf16 %v586, %v585
    %v589 = vmul.f32 %v504, %v249
    %v590 = vmul.f32 %v507, %v249
    %v591 = vmul.f32 %v512, %v249
    %v592 = vmul.f32 %v515, %v249
    %v593 = vmul.f32 %v504, %v253
    %v594 = vmul.f32 %v507, %v253
    %v595 = vmul.f32 %v512, %v253
    %v596 = vmul.f32 %v515, %v253
    %v597 = vmul.f32 %v504, %v257
    %v598 = vmul.f32 %v507, %v257
    %v599 = vmul.f32 %v512, %v257
    %v600 = vmul.f32 %v515, %v257
    %v601 = vmul.f32 %v504, %v261
    %v602 = vmul.f32 %v507, %v261
    %v603 = vmul.f32 %v512, %v261
    %v604 = vmul.f32 %v515, %v261
    %v605 = vmul.f32 %v589, 0.35355338
    %v606 = vmul.f32 %v590, 0.35355338
    %v607 = vmul.f32 %v591, 0.35355338
    %v608 = vmul.f32 %v592, 0.35355338
    %v609 = vmul.f32 %v593, 0.35355338
    %v610 = vmul.f32 %v594, 0.35355338
    %v611 = vmul.f32 %v595, 0.35355338
    %v612 = vmul.f32 %v596, 0.35355338
    %v613 = vmul.f32 %v597, 0.35355338
    %v614 = vmul.f32 %v598, 0.35355338
    %v615 = vmul.f32 %v599, 0.35355338
    %v616 = vmul.f32 %v600, 0.35355338
    %v617 = vmul.f32 %v601, 0.35355338
    %v618 = vmul.f32 %v602, 0.35355338
    %v619 = vmul.f32 %v603, 0.35355338
    %v620 = vmul.f32 %v604, 0.35355338
    %v621 = vpack.c.bf16 %v606, %v605
    %v622 = vpack.c.bf16 %v608, %v607
    %v623 = vpack.c.bf16 %v610, %v609
    %v624 = vpack.c.bf16 %v612, %v611
    %v625 = vpack.c.bf16 %v614, %v613
    %v626 = vpack.c.bf16 %v616, %v615
    %v627 = vpack.c.bf16 %v618, %v617
    %v628 = vpack.c.bf16 %v620, %v619
    %v630 = vsel %vm379, %v621, 0
    %v633 = vsel %vm379, %v622, 0
    %v636 = vsel %vm379, %v623, 0
    %v639 = vsel %vm379, %v624, 0
    %v642 = vsel %vm379, %v625, 0
    %v645 = vsel %vm379, %v626, 0
    %v648 = vsel %vm379, %v627, 0
    %v651 = vsel %vm379, %v628, 0
    %v654 = vsel %vm379, %v587, 0
    %v657 = vsel %vm379, %v588, 0
    %659 = vmatprep.subr.bf16.mxu0 0
    %660 = vmatpush1.bf16.xpose.msra.mxu0 %v654
    %661 = vmatprep.subr.bf16.mxu0 0
    %662 = vmatpush1.bf16.xpose.msra.mxu0 %v657
    %663 = vmatprep.subr.bf16.mxu0 0
    %664 = vmatpush1.bf16.xpose.msra.mxu0 0
    %665 = vmatprep.subr.bf16.mxu0 0
    %666 = vmatpush1.bf16.xpose.msra.mxu0 0
    %667 = vmatprep.subr.bf16.mxu0 0
    %668 = vmatpush1.bf16.xpose.msra.mxu0 0
    %669 = vmatprep.subr.bf16.mxu0 0
    %670 = vmatpush1.bf16.xpose.msra.mxu0 0
    %671 = vmatprep.subr.bf16.mxu0 0
    %672 = vmatpush1.bf16.xpose.msra.mxu0 0
    %673 = vmatprep.subr.bf16.mxu0 0
    %674 = vmatpush1.bf16.xpose.msra.mxu0 0
    %675 = vmatprep.subr.bf16.mxu0 0
    %676 = vmatpush1.bf16.xpose.msra.mxu0 0
    %677 = vmatprep.subr.bf16.mxu0 0
    %678 = vmatpush1.bf16.xpose.msra.mxu0 0
    %679 = vmatprep.subr.bf16.mxu0 0
    %680 = vmatpush1.bf16.xpose.msra.mxu0 0
    %681 = vmatprep.subr.bf16.mxu0 0
    %682 = vmatpush1.bf16.xpose.msra.mxu0 0
    %683 = vmatprep.subr.bf16.mxu0 0
    %684 = vmatpush1.bf16.xpose.msra.mxu0 0
    %685 = vmatprep.subr.bf16.mxu0 0
    %686 = vmatpush1.bf16.xpose.msra.mxu0 0
    %687 = vmatprep.subr.bf16.mxu0 0
    %688 = vmatpush1.bf16.xpose.msra.mxu0 0
    %689 = vmatprep.subr.bf16.mxu0 0
    %690 = vmatpush1.bf16.xpose.msra.mxu0 0
    %691 = vmatprep.mubr.bf16.mxu0 0
    %692 = vmatmul.mubr.bf16.gmra.mrb[0].mxu0 %v630
    %v693 = vpop.f32.mrb[0].mxu0
    %v694 = vadd.f32 %v242, %v693
    %v695 = vpop.f32.mrb[0].mxu0
    %v696 = vpop.f32.mrb[0].mxu0
    %v697 = vadd.f32 %v243, %v696
    %v698 = vpop.f32.mrb[0].mxu0
    %699 = vmatprep.mubr.bf16.mxu0 0
    %700 = vmatmul.mubr.bf16.gmra.mrb[0].mxu0 %v633
    %v701 = vpop.f32.mrb[0].mxu0
    %v702 = vadd.f32 %v244, %v701
    %v703 = vpop.f32.mrb[0].mxu0
    %v704 = vpop.f32.mrb[0].mxu0
    %v705 = vadd.f32 %v245, %v704
    %v706 = vpop.f32.mrb[0].mxu0
    %707 = vmatprep.mubr.bf16.mxu0 0
    %708 = vmatmul.mubr.bf16.gmra.mrb[0].mxu0 %v636
    %v709 = vpop.f32.mrb[0].mxu0
    %v710 = vadd.f32 %v242, %v709
    %v711 = vpop.f32.mrb[0].mxu0
    %v712 = vpop.f32.mrb[0].mxu0
    %v713 = vadd.f32 %v243, %v712
    %v714 = vpop.f32.mrb[0].mxu0
    %715 = vmatprep.mubr.bf16.mxu0 0
    %716 = vmatmul.mubr.bf16.gmra.mrb[0].mxu0 %v639
    %v717 = vpop.f32.mrb[0].mxu0
    %v718 = vadd.f32 %v244, %v717
    %v719 = vpop.f32.mrb[0].mxu0
    %v720 = vpop.f32.mrb[0].mxu0
    %v721 = vadd.f32 %v245, %v720
    %v722 = vpop.f32.mrb[0].mxu0
    %723 = vmatprep.mubr.bf16.mxu0 0
    %724 = vmatmul.mubr.bf16.gmra.mrb[0].mxu0 %v642
    %v725 = vpop.f32.mrb[0].mxu0
    %v726 = vadd.f32 %v242, %v725
    %v727 = vpop.f32.mrb[0].mxu0
    %v728 = vpop.f32.mrb[0].mxu0
    %v729 = vadd.f32 %v243, %v728
    %v730 = vpop.f32.mrb[0].mxu0
    %731 = vmatprep.mubr.bf16.mxu0 0
    %732 = vmatmul.mubr.bf16.gmra.mrb[0].mxu0 %v645
    %v733 = vpop.f32.mrb[0].mxu0
    %v734 = vadd.f32 %v244, %v733
    %v735 = vpop.f32.mrb[0].mxu0
    %v736 = vpop.f32.mrb[0].mxu0
    %v737 = vadd.f32 %v245, %v736
    %v738 = vpop.f32.mrb[0].mxu0
    %739 = vmatprep.mubr.bf16.mxu0 0
    %740 = vmatmul.mubr.bf16.gmra.mrb[0].mxu0 %v648
    %v741 = vpop.f32.mrb[0].mxu0
    %v742 = vadd.f32 %v242, %v741
    %v743 = vpop.f32.mrb[0].mxu0
    %v744 = vpop.f32.mrb[0].mxu0
    %v745 = vadd.f32 %v243, %v744
    %v746 = vpop.f32.mrb[0].mxu0
    %747 = vmatprep.mubr.bf16.mxu0 0
    %748 = vmatmul.mubr.bf16.gmra.mrb[0].mxu0 %v651
    %v749 = vpop.f32.mrb[0].mxu0
    %v750 = vadd.f32 %v244, %v749
    %v751 = vpop.f32.mrb[0].mxu0
    %v752 = vpop.f32.mrb[0].mxu0
    %v753 = vadd.f32 %v245, %v752
    %v754 = vpop.f32.mrb[0].mxu0
    %755 = vdwg.mxu0
    %v756 = vsel %vm379, %v694, -inf
    %757 = vmax.xlane.f32.xlu0 %v756
    %v758 = vpop.xlane.xlu0 %757
    %v759 = vsel %vm379, %v697, -inf
    %760 = vmax.xlane.f32.xlu0 %v759
    %v761 = vpop.xlane.xlu0 %760
    %v762 = vsel %vm379, %v702, -inf
    %763 = vmax.xlane.f32.xlu0 %v762
    %v764 = vpop.xlane.xlu0 %763
    %v765 = vsel %vm379, %v705, -inf
    %766 = vmax.xlane.f32.xlu0 %v765
    %v767 = vpop.xlane.xlu0 %766
    %v768 = vsel %vm379, %v710, -inf
    %769 = vmax.xlane.f32.xlu0 %v768
    %v770 = vpop.xlane.xlu0 %769
    %v771 = vsel %vm379, %v713, -inf
    %772 = vmax.xlane.f32.xlu0 %v771
    %v773 = vpop.xlane.xlu0 %772
    %v774 = vsel %vm379, %v718, -inf
    %775 = vmax.xlane.f32.xlu0 %v774
    %v776 = vpop.xlane.xlu0 %775
    %v777 = vsel %vm379, %v721, -inf
    %778 = vmax.xlane.f32.xlu0 %v777
    %v779 = vpop.xlane.xlu0 %778
    %v780 = vsel %vm379, %v726, -inf
    %781 = vmax.xlane.f32.xlu0 %v780
    %v782 = vpop.xlane.xlu0 %781
    %v783 = vsel %vm379, %v729, -inf
    %784 = vmax.xlane.f32.xlu0 %v783
    %v785 = vpop.xlane.xlu0 %784
    %v786 = vsel %vm379, %v734, -inf
    %787 = vmax.xlane.f32.xlu0 %v786
    %v788 = vpop.xlane.xlu0 %787
    %v789 = vsel %vm379, %v737, -inf
    %790 = vmax.xlane.f32.xlu0 %v789
    %v791 = vpop.xlane.xlu0 %790
    %v792 = vsel %vm379, %v742, -inf
    %793 = vmax.xlane.f32.xlu0 %v792
    %v794 = vpop.xlane.xlu0 %793
    %v795 = vsel %vm379, %v745, -inf
    %796 = vmax.xlane.f32.xlu0 %v795
    %v797 = vpop.xlane.xlu0 %796
    %v798 = vsel %vm379, %v750, -inf
    %799 = vmax.xlane.f32.xlu0 %v798
    %v800 = vpop.xlane.xlu0 %799
    %v801 = vsel %vm379, %v753, -inf
    %802 = vmax.xlane.f32.xlu0 %v801
    %v803 = vpop.xlane.xlu0 %802
    %v804 = vsub.f32 %v694, %v758
    %v805 = vsub.f32 %v697, %v761
    %v806 = vsub.f32 %v702, %v764
    %v807 = vsub.f32 %v705, %v767
    %v808 = vsub.f32 %v710, %v770
    %v809 = vsub.f32 %v713, %v773
    %v810 = vsub.f32 %v718, %v776
    %v811 = vsub.f32 %v721, %v779
    %v812 = vsub.f32 %v726, %v782
    %v813 = vsub.f32 %v729, %v785
    %v814 = vsub.f32 %v734, %v788
    %v815 = vsub.f32 %v737, %v791
    %v816 = vsub.f32 %v742, %v794
    %v817 = vsub.f32 %v745, %v797
    %v818 = vsub.f32 %v750, %v800
    %v819 = vsub.f32 %v753, %v803
    %v820 = vmul.f32 %v804, 1.442695
    %v821 = vpow.pop %v820
    %v822 = vmul.f32 %v805, 1.442695
    %v823 = vpow.pop %v822
    %v824 = vmul.f32 %v806, 1.442695
    %v825 = vpow.pop %v824
    %v826 = vmul.f32 %v807, 1.442695
    %v827 = vpow.pop %v826
    %v828 = vmul.f32 %v808, 1.442695
    %v829 = vpow.pop %v828
    %v830 = vmul.f32 %v809, 1.442695
    %v831 = vpow.pop %v830
    %v832 = vmul.f32 %v810, 1.442695
    %v833 = vpow.pop %v832
    %v834 = vmul.f32 %v811, 1.442695
    %v835 = vpow.pop %v834
    %v836 = vmul.f32 %v812, 1.442695
    %v837 = vpow.pop %v836
    %v838 = vmul.f32 %v813, 1.442695
    %v839 = vpow.pop %v838
    %v840 = vmul.f32 %v814, 1.442695
    %v841 = vpow.pop %v840
    %v842 = vmul.f32 %v815, 1.442695
    %v843 = vpow.pop %v842
    %v844 = vmul.f32 %v816, 1.442695
    %v845 = vpow.pop %v844
    %v846 = vmul.f32 %v817, 1.442695
    %v847 = vpow.pop %v846
    %v848 = vmul.f32 %v818, 1.442695
    %v849 = vpow.pop %v848
    %v850 = vmul.f32 %v819, 1.442695
    %v851 = vpow.pop %v850
    %v852 = vsel %vm379, %v821, 0.0
    %853 = vadd.xlane.f32.xlu0 %v852
    %v854 = vpop.xlane.xlu0 %853
    %v855 = vsel %vm379, %v823, 0.0
    %856 = vadd.xlane.f32.xlu0 %v855
    %v857 = vpop.xlane.xlu0 %856
    %v858 = vsel %vm379, %v825, 0.0
    %859 = vadd.xlane.f32.xlu0 %v858
    %v860 = vpop.xlane.xlu0 %859
    %v861 = vsel %vm379, %v827, 0.0
    %862 = vadd.xlane.f32.xlu0 %v861
    %v863 = vpop.xlane.xlu0 %862
    %v864 = vsel %vm379, %v829, 0.0
    %865 = vadd.xlane.f32.xlu0 %v864
    %v866 = vpop.xlane.xlu0 %865
    %v867 = vsel %vm379, %v831, 0.0
    %868 = vadd.xlane.f32.xlu0 %v867
    %v869 = vpop.xlane.xlu0 %868
    %v870 = vsel %vm379, %v833, 0.0
    %871 = vadd.xlane.f32.xlu0 %v870
    %v872 = vpop.xlane.xlu0 %871
    %v873 = vsel %vm379, %v835, 0.0
    %874 = vadd.xlane.f32.xlu0 %v873
    %v875 = vpop.xlane.xlu0 %874
    %v876 = vsel %vm379, %v837, 0.0
    %877 = vadd.xlane.f32.xlu0 %v876
    %v878 = vpop.xlane.xlu0 %877
    %v879 = vsel %vm379, %v839, 0.0
    %880 = vadd.xlane.f32.xlu0 %v879
    %v881 = vpop.xlane.xlu0 %880
    %v882 = vsel %vm379, %v841, 0.0
    %883 = vadd.xlane.f32.xlu0 %v882
    %v884 = vpop.xlane.xlu0 %883
    %v885 = vsel %vm379, %v843, 0.0
    %886 = vadd.xlane.f32.xlu0 %v885
    %v887 = vpop.xlane.xlu0 %886
    %v888 = vsel %vm379, %v845, 0.0
    %889 = vadd.xlane.f32.xlu0 %v888
    %v890 = vpop.xlane.xlu0 %889
    %v891 = vsel %vm379, %v847, 0.0
    %892 = vadd.xlane.f32.xlu0 %v891
    %v893 = vpop.xlane.xlu0 %892
    %v894 = vsel %vm379, %v849, 0.0
    %895 = vadd.xlane.f32.xlu0 %v894
    %v896 = vpop.xlane.xlu0 %895
    %v897 = vsel %vm379, %v851, 0.0
    %898 = vadd.xlane.f32.xlu0 %v897
    %v899 = vpop.xlane.xlu0 %898
    %v900 = vrcp.pop %v854
    %v901 = vrcp.pop %v857
    %v902 = vrcp.pop %v860
    %v903 = vrcp.pop %v863
    %v904 = vrcp.pop %v866
    %v905 = vrcp.pop %v869
    %v906 = vrcp.pop %v872
    %v907 = vrcp.pop %v875
    %v908 = vrcp.pop %v878
    %v909 = vrcp.pop %v881
    %v910 = vrcp.pop %v884
    %v911 = vrcp.pop %v887
    %v912 = vrcp.pop %v890
    %v913 = vrcp.pop %v893
    %v914 = vrcp.pop %v896
    %v915 = vrcp.pop %v899
    %v916 = vmul.f32 %v821, %v900
    %v917 = vmul.f32 %v823, %v901
    %v918 = vmul.f32 %v825, %v902
    %v919 = vmul.f32 %v827, %v903
    %v920 = vmul.f32 %v829, %v904
    %v921 = vmul.f32 %v831, %v905
    %v922 = vmul.f32 %v833, %v906
    %v923 = vmul.f32 %v835, %v907
    %v924 = vmul.f32 %v837, %v908
    %v925 = vmul.f32 %v839, %v909
    %v926 = vmul.f32 %v841, %v910
    %v927 = vmul.f32 %v843, %v911
    %v928 = vmul.f32 %v845, %v912
    %v929 = vmul.f32 %v847, %v913
    %v930 = vmul.f32 %v849, %v914
    %v931 = vmul.f32 %v851, %v915
    %v932 = vpack.c.bf16 %v917, %v916
    %v933 = vpack.c.bf16 %v919, %v918
    %v934 = vpack.c.bf16 %v921, %v920
    %v935 = vpack.c.bf16 %v923, %v922
    %v936 = vpack.c.bf16 %v925, %v924
    %v937 = vpack.c.bf16 %v927, %v926
    %v938 = vpack.c.bf16 %v929, %v928
    %v939 = vpack.c.bf16 %v931, %v930
    %v940 = vpack.c.bf16 %v507, %v504
    %v941 = vpack.c.bf16 %v515, %v512
    %944 = vrot.lane.b32.xlu0 %v940, 96
    %v945 = vpop.permute.xlu0 %944
    %946 = vrot.lane.b32.xlu0 %v941, 96
    %v947 = vpop.permute.xlu0 %946
    %v951 = vsel %vm379, %v932, 0
    %v954 = vsel %vm379, %v933, 0
    %v957 = vsel %vm379, %v934, 0
    %v960 = vsel %vm379, %v935, 0
    %v963 = vsel %vm379, %v936, 0
    %v966 = vsel %vm379, %v937, 0
    %v969 = vsel %vm379, %v938, 0
    %v972 = vsel %vm379, %v939, 0
    %974 = vmatprep.subr.bf16.mxu0 0
    %975 = vmatpush1.bf16.msra.mxu0 %v945
    %976 = vmatprep.subr.bf16.mxu0 0
    %977 = vmatpush1.bf16.msra.mxu0 %v947
    %978 = vmatprep.subr.bf16.mxu0 0
    %979 = vmatpush1.bf16.msra.mxu0 0
    %980 = vmatprep.subr.bf16.mxu0 0
    %981 = vmatpush1.bf16.msra.mxu0 0
    %982 = vmatprep.subr.bf16.mxu0 0
    %983 = vmatpush1.bf16.msra.mxu0 0
    %984 = vmatprep.subr.bf16.mxu0 0
    %985 = vmatpush1.bf16.msra.mxu0 0
    %986 = vmatprep.subr.bf16.mxu0 0
    %987 = vmatpush1.bf16.msra.mxu0 0
    %988 = vmatprep.subr.bf16.mxu0 0
    %989 = vmatpush1.bf16.msra.mxu0 0
    %990 = vmatprep.subr.bf16.mxu0 0
    %991 = vmatpush1.bf16.msra.mxu0 0
    %992 = vmatprep.subr.bf16.mxu0 0
    %993 = vmatpush1.bf16.msra.mxu0 0
    %994 = vmatprep.subr.bf16.mxu0 0
    %995 = vmatpush1.bf16.msra.mxu0 0
    %996 = vmatprep.subr.bf16.mxu0 0
    %997 = vmatpush1.bf16.msra.mxu0 0
    %998 = vmatprep.subr.bf16.mxu0 0
    %999 = vmatpush1.bf16.msra.mxu0 0
    %1000 = vmatprep.subr.bf16.mxu0 0
    %1001 = vmatpush1.bf16.msra.mxu0 0
    %1002 = vmatprep.subr.bf16.mxu0 0
    %1003 = vmatpush1.bf16.msra.mxu0 0
    %1004 = vmatprep.subr.bf16.mxu0 0
    %1005 = vmatpush1.bf16.msra.mxu0 0
    %1006 = vmatprep.mubr.bf16.mxu0 0
    %1007 = vmatmul.mubr.bf16.gmra.mrb[0].mxu0 %v951
    %v1008 = vpop.f32.mrb[0].mxu0
    %v1009 = vadd.f32 0.0, %v1008
    %v1010 = vpop.f32.mrb[0].mxu0
    %v1011 = vpop.f32.mrb[0].mxu0
    %v1012 = vadd.f32 0.0, %v1011
    %v1013 = vpop.f32.mrb[0].mxu0
    %1014 = vmatprep.mubr.bf16.mxu0 0
    %1015 = vmatmul.mubr.bf16.gmra.mrb[0].mxu0 %v954
    %v1016 = vpop.f32.mrb[0].mxu0
    %v1017 = vadd.f32 0.0, %v1016
    %v1018 = vpop.f32.mrb[0].mxu0
    %v1019 = vpop.f32.mrb[0].mxu0
    %v1020 = vadd.f32 0.0, %v1019
    %v1021 = vpop.f32.mrb[0].mxu0
    %1022 = vmatprep.mubr.bf16.mxu0 0
    %1023 = vmatmul.mubr.bf16.gmra.mrb[0].mxu0 %v957
    %v1024 = vpop.f32.mrb[0].mxu0
    %v1025 = vadd.f32 0.0, %v1024
    %v1026 = vpop.f32.mrb[0].mxu0
    %v1027 = vpop.f32.mrb[0].mxu0
    %v1028 = vadd.f32 0.0, %v1027
    %v1029 = vpop.f32.mrb[0].mxu0
    %1030 = vmatprep.mubr.bf16.mxu0 0
    %1031 = vmatmul.mubr.bf16.gmra.mrb[0].mxu0 %v960
    %v1032 = vpop.f32.mrb[0].mxu0
    %v1033 = vadd.f32 0.0, %v1032
    %v1034 = vpop.f32.mrb[0].mxu0
    %v1035 = vpop.f32.mrb[0].mxu0
    %v1036 = vadd.f32 0.0, %v1035
    %v1037 = vpop.f32.mrb[0].mxu0
    %1038 = vmatprep.mubr.bf16.mxu0 0
    %1039 = vmatmul.mubr.bf16.gmra.mrb[0].mxu0 %v963
    %v1040 = vpop.f32.mrb[0].mxu0
    %v1041 = vadd.f32 0.0, %v1040
    %v1042 = vpop.f32.mrb[0].mxu0
    %v1043 = vpop.f32.mrb[0].mxu0
    %v1044 = vadd.f32 0.0, %v1043
    %v1045 = vpop.f32.mrb[0].mxu0
    %1046 = vmatprep.mubr.bf16.mxu0 0
    %1047 = vmatmul.mubr.bf16.gmra.mrb[0].mxu0 %v966
    %v1048 = vpop.f32.mrb[0].mxu0
    %v1049 = vadd.f32 0.0, %v1048
    %v1050 = vpop.f32.mrb[0].mxu0
    %v1051 = vpop.f32.mrb[0].mxu0
    %v1052 = vadd.f32 0.0, %v1051
    %v1053 = vpop.f32.mrb[0].mxu0
    %1054 = vmatprep.mubr.bf16.mxu0 0
    %1055 = vmatmul.mubr.bf16.gmra.mrb[0].mxu0 %v969
    %v1056 = vpop.f32.mrb[0].mxu0
    %v1057 = vadd.f32 0.0, %v1056
    %v1058 = vpop.f32.mrb[0].mxu0
    %v1059 = vpop.f32.mrb[0].mxu0
    %v1060 = vadd.f32 0.0, %v1059
    %v1061 = vpop.f32.mrb[0].mxu0
    %1062 = vmatprep.mubr.bf16.mxu0 0
    %1063 = vmatmul.mubr.bf16.gmra.mrb[0].mxu0 %v972
    %v1064 = vpop.f32.mrb[0].mxu0
    %v1065 = vadd.f32 0.0, %v1064
    %v1066 = vpop.f32.mrb[0].mxu0
    %v1067 = vpop.f32.mrb[0].mxu0
    %v1068 = vadd.f32 0.0, %v1067
    %v1069 = vpop.f32.mrb[0].mxu0
    %1070 = vdwg.mxu0
    %v1071 = vmul.f32 %v1009, %v249
    %v1072 = vmul.f32 %v1012, %v249
    %v1073 = vmul.f32 %v1017, %v249
    %v1074 = vmul.f32 %v1020, %v249
    %v1075 = vmul.f32 %v1025, %v253
    %v1076 = vmul.f32 %v1028, %v253
    %v1077 = vmul.f32 %v1033, %v253
    %v1078 = vmul.f32 %v1036, %v253
    %v1079 = vmul.f32 %v1041, %v257
    %v1080 = vmul.f32 %v1044, %v257
    %v1081 = vmul.f32 %v1049, %v257
    %v1082 = vmul.f32 %v1052, %v257
    %v1083 = vmul.f32 %v1057, %v261
    %v1084 = vmul.f32 %v1060, %v261
    %v1085 = vmul.f32 %v1065, %v261
    %v1086 = vmul.f32 %v1068, %v261
    %v1087 = vadd.f32 %v1071, %v1075
    %v1088 = vadd.f32 %v1072, %v1076
    %v1089 = vadd.f32 %v1073, %v1077
    %v1090 = vadd.f32 %v1074, %v1078
    %v1091 = vadd.f32 %v1087, %v1079
    %v1092 = vadd.f32 %v1088, %v1080
    %v1093 = vadd.f32 %v1089, %v1081
    %v1094 = vadd.f32 %v1090, %v1082
    %v1095 = vadd.f32 %v1091, %v1083
    %v1096 = vadd.f32 %v1092, %v1084
    %v1097 = vadd.f32 %v1093, %v1085
    %v1098 = vadd.f32 %v1094, %v1086
    %v1099 = vpack.c.bf16 %v1096, %v1095
    %v1100 = vpack.c.bf16 %v1098, %v1097
    %v1101 = vlaneseq
    %v1102 = vshrl.u32 %v1101, 7
    %v1103 = vsub.s32 2, %v1102
    %v1104 = vrot.slane %v378, %v1103
    %1105 = vrot.lane.b32.xlu0 %v459, 64
    %v1106 = vpop.permute.xlu0 %1105
    %1107 = vrot.lane.b32.xlu0 %v460, 64
    %v1108 = vpop.permute.xlu0 %1107
    %v1112 = vsel %vm379, %v1099, 0
    %v1115 = vsel %vm379, %v1100, 0
    %1117 = vmatprep.subr.bf16.mxu0 0
    %1118 = vmatpush1.bf16.msra.mxu0 %v1106
    %1119 = vmatprep.subr.bf16.mxu0 0
    %1120 = vmatpush1.bf16.msra.mxu0 %v1108
    %1121 = vmatprep.subr.bf16.mxu0 0
    %1122 = vmatpush1.bf16.msra.mxu0 0
    %1123 = vmatprep.subr.bf16.mxu0 0
    %1124 = vmatpush1.bf16.msra.mxu0 0
    %1125 = vmatprep.subr.bf16.mxu0 0
    %1126 = vmatpush1.bf16.msra.mxu0 0
    %1127 = vmatprep.subr.bf16.mxu0 0
    %1128 = vmatpush1.bf16.msra.mxu0 0
    %1129 = vmatprep.subr.bf16.mxu0 0
    %1130 = vmatpush1.bf16.msra.mxu0 0
    %1131 = vmatprep.subr.bf16.mxu0 0
    %1132 = vmatpush1.bf16.msra.mxu0 0
    %1133 = vmatprep.subr.bf16.mxu0 0
    %1134 = vmatpush1.bf16.msra.mxu0 0
    %1135 = vmatprep.subr.bf16.mxu0 0
    %1136 = vmatpush1.bf16.msra.mxu0 0
    %1137 = vmatprep.subr.bf16.mxu0 0
    %1138 = vmatpush1.bf16.msra.mxu0 0
    %1139 = vmatprep.subr.bf16.mxu0 0
    %1140 = vmatpush1.bf16.msra.mxu0 0
    %1141 = vmatprep.subr.bf16.mxu0 0
    %1142 = vmatpush1.bf16.msra.mxu0 0
    %1143 = vmatprep.subr.bf16.mxu0 0
    %1144 = vmatpush1.bf16.msra.mxu0 0
    %1145 = vmatprep.subr.bf16.mxu0 0
    %1146 = vmatpush1.bf16.msra.mxu0 0
    %1147 = vmatprep.subr.bf16.mxu0 0
    %1148 = vmatpush1.bf16.msra.mxu0 0
    %1149 = vmatprep.mubr.bf16.mxu0 0
    %1150 = vmatmul.mubr.bf16.gmra.mrb[0].mxu0 %v1112
    %v1151 = vpop.f32.mrb[0].mxu0
    %v1152 = vadd.f32 %v1104, %v1151
    %v1153 = vpop.f32.mrb[0].mxu0
    %v1154 = vpop.f32.mrb[0].mxu0
    %v1155 = vadd.f32 %v1104, %v1154
    %v1156 = vpop.f32.mrb[0].mxu0
    %1157 = vmatprep.mubr.bf16.mxu0 0
    %1158 = vmatmul.mubr.bf16.gmra.mrb[0].mxu0 %v1115
    %v1159 = vpop.f32.mrb[0].mxu0
    %v1160 = vadd.f32 %v1104, %v1159
    %v1161 = vpop.f32.mrb[0].mxu0
    %v1162 = vpop.f32.mrb[0].mxu0
    %v1163 = vadd.f32 %v1104, %v1162
    %v1164 = vpop.f32.mrb[0].mxu0
    %1165 = vdwg.mxu0
    %v1166 = vadd.f32 %v164, %v1152
    %v1167 = vadd.f32 %v167, %v1155
    %v1168 = vadd.f32 %v172, %v1160
    %v1169 = vadd.f32 %v175, %v1163
    %v1170 = vsel %vm379, %v1166, 0.0
    %1171 = vadd.xlane.f32.xlu0 %v1170
    %v1172 = vpop.xlane.xlu0 %1171
    %v1173 = vsel %vm379, %v1167, 0.0
    %1174 = vadd.xlane.f32.xlu0 %v1173
    %v1175 = vpop.xlane.xlu0 %1174
    %v1176 = vsel %vm379, %v1168, 0.0
    %1177 = vadd.xlane.f32.xlu0 %v1176
    %v1178 = vpop.xlane.xlu0 %1177
    %v1179 = vsel %vm379, %v1169, 0.0
    %1180 = vadd.xlane.f32.xlu0 %v1179
    %v1181 = vpop.xlane.xlu0 %1180
    %v1182 = vmul.f32 %v1172, %v392
    %v1183 = vmul.f32 %v1175, %v392
    %v1184 = vmul.f32 %v1178, %v392
    %v1185 = vmul.f32 %v1181, %v392
    %v1186 = vsub.f32 %v1166, %v1182
    %v1187 = vsub.f32 %v1167, %v1183
    %v1188 = vsub.f32 %v1168, %v1184
    %v1189 = vsub.f32 %v1169, %v1185
    %v1190 = vmul.f32 %v1186, %v1186
    %v1191 = vmul.f32 %v1187, %v1187
    %v1192 = vmul.f32 %v1188, %v1188
    %v1193 = vmul.f32 %v1189, %v1189
    %v1194 = vsel %vm379, %v1190, 0.0
    %1195 = vadd.xlane.f32.xlu0 %v1194
    %v1196 = vpop.xlane.xlu0 %1195
    %v1197 = vsel %vm379, %v1191, 0.0
    %1198 = vadd.xlane.f32.xlu0 %v1197
    %v1199 = vpop.xlane.xlu0 %1198
    %v1200 = vsel %vm379, %v1192, 0.0
    %1201 = vadd.xlane.f32.xlu0 %v1200
    %v1202 = vpop.xlane.xlu0 %1201
    %v1203 = vsel %vm379, %v1193, 0.0
    %1204 = vadd.xlane.f32.xlu0 %v1203
    %v1205 = vpop.xlane.xlu0 %1204
    %v1206 = vmul.f32 %v1196, %v392
    %v1207 = vmul.f32 %v1199, %v392
    %v1208 = vmul.f32 %v1202, %v392
    %v1209 = vmul.f32 %v1205, %v392
    %v1210 = vadd.f32 %v1206, 1e-05
    %v1211 = vadd.f32 %v1207, 1e-05
    %v1212 = vadd.f32 %v1208, 1e-05
    %v1213 = vadd.f32 %v1209, 1e-05
    %v1214 = vrsqrt.pop %v1210
    %v1215 = vrsqrt.pop %v1211
    %v1216 = vrsqrt.pop %v1212
    %v1217 = vrsqrt.pop %v1213
    %v1218 = vmul.f32 %v1186, %v1214
    %v1219 = vmul.f32 %v1187, %v1215
    %v1220 = vmul.f32 %v1188, %v1216
    %v1221 = vmul.f32 %v1189, %v1217
    %v1222 = vlaneseq
    %v1223 = vshrl.u32 %v1222, 7
    %v1224 = vsub.s32 3, %v1223
    %v1225 = vrot.slane %v378, %v1224
    %v1226 = vmul.f32 %v1218, %v1225
    %v1227 = vmul.f32 %v1219, %v1225
    %v1228 = vmul.f32 %v1220, %v1225
    %v1229 = vmul.f32 %v1221, %v1225
    %v1230 = vlaneseq
    %v1231 = vshrl.u32 %v1230, 7
    %v1232 = vsub.s32 4, %v1231
    %v1233 = vrot.slane %v378, %v1232
    %v1234 = vadd.f32 %v1226, %v1233
    %v1235 = vadd.f32 %v1227, %v1233
    %v1236 = vadd.f32 %v1228, %v1233
    %v1237 = vadd.f32 %v1229, %v1233
    %v1238 = vpack.c.bf16 %v1235, %v1234
    %v1239 = vpack.c.bf16 %v1237, %v1236
    %v1240 = vlaneseq
    %v1241 = vshrl.u32 %v1240, 7
    %v1242 = vsub.s32 6, %v1241
    %v1243 = vrot.slane %v378, %v1242
    %v1244 = vunpack.c.l.b16 %v358
    %v1245 = vunpack.c.l.b16 %v359
    %v1246 = vunpack.c.l.b16 %v360
    %v1247 = vunpack.c.l.b16 %v361
    %v1248 = vpack.c.b16 %v1245, %v1244
    %v1249 = vpack.c.b16 %v1247, %v1246
    %v1253 = vsel %vm379, %v1238, 0
    %v1256 = vsel %vm379, %v1239, 0
    %1258 = vmatprep.subr.bf16.mxu0 0
    %1259 = vmatpush1.bf16.msra.mxu0 %v1248
    %1260 = vmatprep.subr.bf16.mxu0 0
    %1261 = vmatpush1.bf16.msra.mxu0 %v1249
    %1262 = vmatprep.subr.bf16.mxu0 0
    %1263 = vmatpush1.bf16.msra.mxu0 0
    %1264 = vmatprep.subr.bf16.mxu0 0
    %1265 = vmatpush1.bf16.msra.mxu0 0
    %1266 = vmatprep.subr.bf16.mxu0 0
    %1267 = vmatpush1.bf16.msra.mxu0 0
    %1268 = vmatprep.subr.bf16.mxu0 0
    %1269 = vmatpush1.bf16.msra.mxu0 0
    %1270 = vmatprep.subr.bf16.mxu0 0
    %1271 = vmatpush1.bf16.msra.mxu0 0
    %1272 = vmatprep.subr.bf16.mxu0 0
    %1273 = vmatpush1.bf16.msra.mxu0 0
    %1274 = vmatprep.subr.bf16.mxu0 0
    %1275 = vmatpush1.bf16.msra.mxu0 0
    %1276 = vmatprep.subr.bf16.mxu0 0
    %1277 = vmatpush1.bf16.msra.mxu0 0
    %1278 = vmatprep.subr.bf16.mxu0 0
    %1279 = vmatpush1.bf16.msra.mxu0 0
    %1280 = vmatprep.subr.bf16.mxu0 0
    %1281 = vmatpush1.bf16.msra.mxu0 0
    %1282 = vmatprep.subr.bf16.mxu0 0
    %1283 = vmatpush1.bf16.msra.mxu0 0
    %1284 = vmatprep.subr.bf16.mxu0 0
    %1285 = vmatpush1.bf16.msra.mxu0 0
    %1286 = vmatprep.subr.bf16.mxu0 0
    %1287 = vmatpush1.bf16.msra.mxu0 0
    %1288 = vmatprep.subr.bf16.mxu0 0
    %1289 = vmatpush1.bf16.msra.mxu0 0
    %1290 = vmatprep.mubr.bf16.mxu0 0
    %1291 = vmatmul.mubr.bf16.gmra.mrb[0].mxu0 %v1253
    %v1292 = vpop.f32.mrb[0].mxu0
    %v1293 = vadd.f32 %v1243, %v1292
    %v1294 = vpop.f32.mrb[0].mxu0
    %v1295 = vpop.f32.mrb[0].mxu0
    %v1296 = vadd.f32 %v1243, %v1295
    %v1297 = vpop.f32.mrb[0].mxu0
    %1298 = vmatprep.mubr.bf16.mxu0 0
    %1299 = vmatmul.mubr.bf16.gmra.mrb[0].mxu0 %v1256
    %v1300 = vpop.f32.mrb[0].mxu0
    %v1301 = vadd.f32 %v1243, %v1300
    %v1302 = vpop.f32.mrb[0].mxu0
    %v1303 = vpop.f32.mrb[0].mxu0
    %v1304 = vadd.f32 %v1243, %v1303
    %v1305 = vpop.f32.mrb[0].mxu0
    %1306 = vdwg.mxu0
    %v1307 = vmul.f32 %v1293, %v1293
    %v1308 = vmul.f32 %v1296, %v1296
    %v1309 = vmul.f32 %v1301, %v1301
    %v1310 = vmul.f32 %v1304, %v1304
    %v1311 = vmul.f32 %v1293, %v1307
    %v1312 = vmul.f32 %v1296, %v1308
    %v1313 = vmul.f32 %v1301, %v1309
    %v1314 = vmul.f32 %v1304, %v1310
    %v1315 = vmul.f32 %v1311, 0.044715
    %v1316 = vmul.f32 %v1312, 0.044715
    %v1317 = vmul.f32 %v1313, 0.044715
    %v1318 = vmul.f32 %v1314, 0.044715
    %v1319 = vadd.f32 %v1293, %v1315
    %v1320 = vadd.f32 %v1296, %v1316
    %v1321 = vadd.f32 %v1301, %v1317
    %v1322 = vadd.f32 %v1304, %v1318
    %v1323 = vmul.f32 %v1319, 0.7978846
    %v1324 = vmul.f32 %v1320, 0.7978846
    %v1325 = vmul.f32 %v1321, 0.7978846
    %v1326 = vmul.f32 %v1322, 0.7978846
    %v1327 = vtanh.pop %v1323
    %v1328 = vtanh.pop %v1324
    %v1329 = vtanh.pop %v1325
    %v1330 = vtanh.pop %v1326
    %v1331 = vadd.f32 %v1327, 1.0
    %v1332 = vadd.f32 %v1328, 1.0
    %v1333 = vadd.f32 %v1329, 1.0
    %v1334 = vadd.f32 %v1330, 1.0
    %v1335 = vmul.f32 %v1331, 0.5
    %v1336 = vmul.f32 %v1332, 0.5
    %v1337 = vmul.f32 %v1333, 0.5
    %v1338 = vmul.f32 %v1334, 0.5
    %v1339 = vmul.f32 %v1293, %v1335
    %v1340 = vmul.f32 %v1296, %v1336
    %v1341 = vmul.f32 %v1301, %v1337
    %v1342 = vmul.f32 %v1304, %v1338
    %v1343 = vpack.c.bf16 %v1340, %v1339
    %v1344 = vpack.c.bf16 %v1342, %v1341
    %v1345 = vlaneseq
    %v1346 = vshrl.u32 %v1345, 7
    %v1347 = vsub.s32 5, %v1346
    %v1348 = vrot.slane %v378, %v1347
    %v1365 = vunpack.c.l.b16 %v362
    %v1366 = vunpack.c.l.b16 %v363
    %v1367 = vunpack.c.l.b16 %v364
    %v1368 = vunpack.c.l.b16 %v365
    %v1369 = vunpack.c.l.b16 %v366
    %v1370 = vunpack.c.l.b16 %v367
    %v1371 = vunpack.c.l.b16 %v368
    %v1372 = vunpack.c.l.b16 %v369
    %v1373 = vunpack.c.l.b16 %v370
    %v1374 = vunpack.c.l.b16 %v371
    %v1375 = vunpack.c.l.b16 %v372
    %v1376 = vunpack.c.l.b16 %v373
    %v1377 = vunpack.c.l.b16 %v374
    %v1378 = vunpack.c.l.b16 %v375
    %v1379 = vunpack.c.l.b16 %v376
    %v1380 = vunpack.c.l.b16 %v377
    %v1381 = vpack.c.b16 %v1366, %v1365
    %v1382 = vpack.c.b16 %v1368, %v1367
    %v1383 = vpack.c.b16 %v1370, %v1369
    %v1384 = vpack.c.b16 %v1372, %v1371
    %v1385 = vpack.c.b16 %v1374, %v1373
    %v1386 = vpack.c.b16 %v1376, %v1375
    %v1387 = vpack.c.b16 %v1378, %v1377
    %v1388 = vpack.c.b16 %v1380, %v1379
    %1397 = vmatprep.subr.bf16.mxu0 0
    %1398 = vmatpush1.bf16.msra.mxu0 %v1381
    %1399 = vmatprep.subr.bf16.mxu0 0
    %1400 = vmatpush1.bf16.msra.mxu0 %v1382
    %1401 = vmatprep.subr.bf16.mxu0 0
    %1402 = vmatpush1.bf16.msra.mxu0 %v1383
    %1403 = vmatprep.subr.bf16.mxu0 0
    %1404 = vmatpush1.bf16.msra.mxu0 %v1384
    %1405 = vmatprep.subr.bf16.mxu0 0
    %1406 = vmatpush1.bf16.msra.mxu0 %v1385
    %1407 = vmatprep.subr.bf16.mxu0 0
    %1408 = vmatpush1.bf16.msra.mxu0 %v1386
    %1409 = vmatprep.subr.bf16.mxu0 0
    %1410 = vmatpush1.bf16.msra.mxu0 %v1387
    %1411 = vmatprep.subr.bf16.mxu0 0
    %1412 = vmatpush1.bf16.msra.mxu0 %v1388
    %1413 = vmatprep.subr.bf16.mxu0 0
    %1414 = vmatpush1.bf16.msra.mxu0 0
    %1415 = vmatprep.subr.bf16.mxu0 0
    %1416 = vmatpush1.bf16.msra.mxu0 0
    %1417 = vmatprep.subr.bf16.mxu0 0
    %1418 = vmatpush1.bf16.msra.mxu0 0
    %1419 = vmatprep.subr.bf16.mxu0 0
    %1420 = vmatpush1.bf16.msra.mxu0 0
    %1421 = vmatprep.subr.bf16.mxu0 0
    %1422 = vmatpush1.bf16.msra.mxu0 0
    %1423 = vmatprep.subr.bf16.mxu0 0
    %1424 = vmatpush1.bf16.msra.mxu0 0
    %1425 = vmatprep.subr.bf16.mxu0 0
    %1426 = vmatpush1.bf16.msra.mxu0 0
    %1427 = vmatprep.subr.bf16.mxu0 0
    %1428 = vmatpush1.bf16.msra.mxu0 0
    %1429 = vmatprep.mubr.bf16.mxu0 0
    %1430 = vmatmul.mubr.bf16.gmra.mrb[0].mxu0 %v1343
    %v1431 = vpop.f32.mrb[0].mxu0
    %v1432 = vadd.f32 %v1348, %v1431
    %v1433 = vpop.f32.mrb[0].mxu0
    %v1434 = vpop.f32.mrb[0].mxu0
    %v1435 = vadd.f32 %v1348, %v1434
    %v1436 = vpop.f32.mrb[0].mxu0
    %1437 = vmatprep.mubr.bf16.mxu0 0
    %1438 = vmatmul.mubr.bf16.gmra.mrb[0].mxu0 %v1344
    %v1439 = vpop.f32.mrb[0].mxu0
    %v1440 = vadd.f32 %v1348, %v1439
    %v1441 = vpop.f32.mrb[0].mxu0
    %v1442 = vpop.f32.mrb[0].mxu0
    %v1443 = vadd.f32 %v1348, %v1442
    %v1444 = vpop.f32.mrb[0].mxu0
    %1445 = vdwg.mxu0
    %v1446 = vadd.f32 %v164, %v1432
    %v1447 = vadd.f32 %v167, %v1435
    %v1448 = vadd.f32 %v172, %v1440
    %v1449 = vadd.f32 %v175, %v1443
    %s1450 = scalar_lea.vmem %s2, 32
    %v1451 = vld [vmem:[%s1450] sm:$0xff]
    %v1452 = vld [vmem:[%s1450 + $0x8] sm:$0xff]
    %v1453 = vld [vmem:[%s1450 + $0x10] sm:$0xff]
    %v1454 = vld [vmem:[%s1450 + $0x18] sm:$0xff]
    %s1455 = scalar_lea.vmem %s3, 64
    %v1456 = vld [vmem:[%s1455] sm:$0xf]
    %v1457 = vld [vmem:[%s1455 + $0x4] sm:$0xf]
    %v1458 = vld [vmem:[%s1455 + $0x8] sm:$0xf]
    %v1459 = vld [vmem:[%s1455 + $0xc] sm:$0xf]
    %v1460 = vld [vmem:[%s1455 + $0x10] sm:$0xf]
    %v1461 = vld [vmem:[%s1455 + $0x14] sm:$0xf]
    %v1462 = vld [vmem:[%s1455 + $0x18] sm:$0xf]
    %v1463 = vld [vmem:[%s1455 + $0x1c] sm:$0xf]
    %v1464 = vld [vmem:[%s1455 + $0x20] sm:$0xf]
    %v1465 = vld [vmem:[%s1455 + $0x24] sm:$0xf]
    %v1466 = vld [vmem:[%s1455 + $0x28] sm:$0xf]
    %v1467 = vld [vmem:[%s1455 + $0x2c] sm:$0xf]
    %v1468 = vld [vmem:[%s1455 + $0x30] sm:$0xf]
    %v1469 = vld [vmem:[%s1455 + $0x34] sm:$0xf]
    %v1470 = vld [vmem:[%s1455 + $0x38] sm:$0xf]
    %v1471 = vld [vmem:[%s1455 + $0x3c] sm:$0xf]
    %s1472 = scalar_lea.vmem %s4, 8
    %v1473 = vld [vmem:[%s1472] sm:$0xff]
    %v1474 = vsel %vm379, %v1446, 0.0
    %1475 = vadd.xlane.f32.xlu0 %v1474
    %v1476 = vpop.xlane.xlu0 %1475
    %v1477 = vsel %vm379, %v1447, 0.0
    %1478 = vadd.xlane.f32.xlu0 %v1477
    %v1479 = vpop.xlane.xlu0 %1478
    %v1480 = vsel %vm379, %v1448, 0.0
    %1481 = vadd.xlane.f32.xlu0 %v1480
    %v1482 = vpop.xlane.xlu0 %1481
    %v1483 = vsel %vm379, %v1449, 0.0
    %1484 = vadd.xlane.f32.xlu0 %v1483
    %v1485 = vpop.xlane.xlu0 %1484
    %v1486 = vmul.f32 %v1476, %v392
    %v1487 = vmul.f32 %v1479, %v392
    %v1488 = vmul.f32 %v1482, %v392
    %v1489 = vmul.f32 %v1485, %v392
    %v1490 = vsub.f32 %v1446, %v1486
    %v1491 = vsub.f32 %v1447, %v1487
    %v1492 = vsub.f32 %v1448, %v1488
    %v1493 = vsub.f32 %v1449, %v1489
    %v1494 = vmul.f32 %v1490, %v1490
    %v1495 = vmul.f32 %v1491, %v1491
    %v1496 = vmul.f32 %v1492, %v1492
    %v1497 = vmul.f32 %v1493, %v1493
    %v1498 = vsel %vm379, %v1494, 0.0
    %1499 = vadd.xlane.f32.xlu0 %v1498
    %v1500 = vpop.xlane.xlu0 %1499
    %v1501 = vsel %vm379, %v1495, 0.0
    %1502 = vadd.xlane.f32.xlu0 %v1501
    %v1503 = vpop.xlane.xlu0 %1502
    %v1504 = vsel %vm379, %v1496, 0.0
    %1505 = vadd.xlane.f32.xlu0 %v1504
    %v1506 = vpop.xlane.xlu0 %1505
    %v1507 = vsel %vm379, %v1497, 0.0
    %1508 = vadd.xlane.f32.xlu0 %v1507
    %v1509 = vpop.xlane.xlu0 %1508
    %v1510 = vmul.f32 %v1500, %v392
    %v1511 = vmul.f32 %v1503, %v392
    %v1512 = vmul.f32 %v1506, %v392
    %v1513 = vmul.f32 %v1509, %v392
    %v1514 = vadd.f32 %v1510, 1e-05
    %v1515 = vadd.f32 %v1511, 1e-05
    %v1516 = vadd.f32 %v1512, 1e-05
    %v1517 = vadd.f32 %v1513, 1e-05
    %v1518 = vrsqrt.pop %v1514
    %v1519 = vrsqrt.pop %v1515
    %v1520 = vrsqrt.pop %v1516
    %v1521 = vrsqrt.pop %v1517
    %v1522 = vmul.f32 %v1490, %v1518
    %v1523 = vmul.f32 %v1491, %v1519
    %v1524 = vmul.f32 %v1492, %v1520
    %v1525 = vmul.f32 %v1493, %v1521
    %v1526 = vlaneseq
    %v1527 = vshrl.u32 %v1526, 7
    %v1528 = vsub.s32 0, %v1527
    %v1529 = vrot.slane %v1473, %v1528
    %v1530 = vmul.f32 %v1522, %v1529
    %v1531 = vmul.f32 %v1523, %v1529
    %v1532 = vmul.f32 %v1524, %v1529
    %v1533 = vmul.f32 %v1525, %v1529
    %v1534 = vlaneseq
    %v1535 = vshrl.u32 %v1534, 7
    %v1536 = vsub.s32 1, %v1535
    %v1537 = vrot.slane %v1473, %v1536
    %v1538 = vadd.f32 %v1530, %v1537
    %v1539 = vadd.f32 %v1531, %v1537
    %v1540 = vadd.f32 %v1532, %v1537
    %v1541 = vadd.f32 %v1533, %v1537
    %v1542 = vpack.c.bf16 %v1539, %v1538
    %v1543 = vpack.c.bf16 %v1541, %v1540
    %v1548 = vunpack.c.h.b16 %v1451
    %v1549 = vunpack.c.h.b16 %v1452
    %v1550 = vunpack.c.h.b16 %v1453
    %v1551 = vunpack.c.h.b16 %v1454
    %v1552 = vpack.c.b16 %v1549, %v1548
    %v1553 = vpack.c.b16 %v1551, %v1550
    %v1557 = vsel %vm379, %v1542, 0
    %v1560 = vsel %vm379, %v1543, 0
    %1562 = vmatprep.subr.bf16.mxu0 0
    %1563 = vmatpush1.bf16.msra.mxu0 %v1552
    %1564 = vmatprep.subr.bf16.mxu0 0
    %1565 = vmatpush1.bf16.msra.mxu0 %v1553
    %1566 = vmatprep.subr.bf16.mxu0 0
    %1567 = vmatpush1.bf16.msra.mxu0 0
    %1568 = vmatprep.subr.bf16.mxu0 0
    %1569 = vmatpush1.bf16.msra.mxu0 0
    %1570 = vmatprep.subr.bf16.mxu0 0
    %1571 = vmatpush1.bf16.msra.mxu0 0
    %1572 = vmatprep.subr.bf16.mxu0 0
    %1573 = vmatpush1.bf16.msra.mxu0 0
    %1574 = vmatprep.subr.bf16.mxu0 0
    %1575 = vmatpush1.bf16.msra.mxu0 0
    %1576 = vmatprep.subr.bf16.mxu0 0
    %1577 = vmatpush1.bf16.msra.mxu0 0
    %1578 = vmatprep.subr.bf16.mxu0 0
    %1579 = vmatpush1.bf16.msra.mxu0 0
    %1580 = vmatprep.subr.bf16.mxu0 0
    %1581 = vmatpush1.bf16.msra.mxu0 0
    %1582 = vmatprep.subr.bf16.mxu0 0
    %1583 = vmatpush1.bf16.msra.mxu0 0
    %1584 = vmatprep.subr.bf16.mxu0 0
    %1585 = vmatpush1.bf16.msra.mxu0 0
    %1586 = vmatprep.subr.bf16.mxu0 0
    %1587 = vmatpush1.bf16.msra.mxu0 0
    %1588 = vmatprep.subr.bf16.mxu0 0
    %1589 = vmatpush1.bf16.msra.mxu0 0
    %1590 = vmatprep.subr.bf16.mxu0 0
    %1591 = vmatpush1.bf16.msra.mxu0 0
    %1592 = vmatprep.subr.bf16.mxu0 0
    %1593 = vmatpush1.bf16.msra.mxu0 0
    %1594 = vmatprep.mubr.bf16.mxu0 0
    %1595 = vmatmul.mubr.bf16.gmra.mrb[0].mxu0 %v1557
    %v1596 = vpop.f32.mrb[0].mxu0
    %v1597 = vadd.f32 0.0, %v1596
    %v1598 = vpop.f32.mrb[0].mxu0
    %v1599 = vpop.f32.mrb[0].mxu0
    %v1600 = vadd.f32 0.0, %v1599
    %v1601 = vpop.f32.mrb[0].mxu0
    %1602 = vmatprep.mubr.bf16.mxu0 0
    %1603 = vmatmul.mubr.bf16.gmra.mrb[0].mxu0 %v1560
    %v1604 = vpop.f32.mrb[0].mxu0
    %v1605 = vadd.f32 0.0, %v1604
    %v1606 = vpop.f32.mrb[0].mxu0
    %v1607 = vpop.f32.mrb[0].mxu0
    %v1608 = vadd.f32 0.0, %v1607
    %v1609 = vpop.f32.mrb[0].mxu0
    %1610 = vdwg.mxu0
    %v1611 = vmul.f32 %v1597, %v1597
    %v1612 = vmul.f32 %v1600, %v1600
    %v1613 = vmul.f32 %v1605, %v1605
    %v1614 = vmul.f32 %v1608, %v1608
    %v1615 = vpack.c.bf16 %v1612, %v1611
    %v1616 = vpack.c.bf16 %v1614, %v1613
    %v1618 = vsel %vm379, %v1615, 0
    %v1621 = vsel %vm379, %v1616, 0
    %1623 = vmatprep.subr.bf16.mxu0 0
    %1624 = vmatpush1.bf16.msra.mxu0 %v346
    %1625 = vmatprep.subr.bf16.mxu0 0
    %1626 = vmatpush1.bf16.msra.mxu0 %v347
    %1627 = vmatprep.subr.bf16.mxu0 0
    %1628 = vmatpush1.bf16.msra.mxu0 0
    %1629 = vmatprep.subr.bf16.mxu0 0
    %1630 = vmatpush1.bf16.msra.mxu0 0
    %1631 = vmatprep.subr.bf16.mxu0 0
    %1632 = vmatpush1.bf16.msra.mxu0 0
    %1633 = vmatprep.subr.bf16.mxu0 0
    %1634 = vmatpush1.bf16.msra.mxu0 0
    %1635 = vmatprep.subr.bf16.mxu0 0
    %1636 = vmatpush1.bf16.msra.mxu0 0
    %1637 = vmatprep.subr.bf16.mxu0 0
    %1638 = vmatpush1.bf16.msra.mxu0 0
    %1639 = vmatprep.subr.bf16.mxu0 0
    %1640 = vmatpush1.bf16.msra.mxu0 0
    %1641 = vmatprep.subr.bf16.mxu0 0
    %1642 = vmatpush1.bf16.msra.mxu0 0
    %1643 = vmatprep.subr.bf16.mxu0 0
    %1644 = vmatpush1.bf16.msra.mxu0 0
    %1645 = vmatprep.subr.bf16.mxu0 0
    %1646 = vmatpush1.bf16.msra.mxu0 0
    %1647 = vmatprep.subr.bf16.mxu0 0
    %1648 = vmatpush1.bf16.msra.mxu0 0
    %1649 = vmatprep.subr.bf16.mxu0 0
    %1650 = vmatpush1.bf16.msra.mxu0 0
    %1651 = vmatprep.subr.bf16.mxu0 0
    %1652 = vmatpush1.bf16.msra.mxu0 0
    %1653 = vmatprep.subr.bf16.mxu0 0
    %1654 = vmatpush1.bf16.msra.mxu0 0
    %1655 = vmatprep.mubr.bf16.mxu0 0
    %1656 = vmatmul.mubr.bf16.gmra.mrb[0].mxu0 %v1618
    %v1657 = vpop.f32.mrb[0].mxu0
    %v1658 = vadd.f32 1e-12, %v1657
    %v1659 = vpop.f32.mrb[0].mxu0
    %v1660 = vpop.f32.mrb[0].mxu0
    %v1661 = vadd.f32 1e-12, %v1660
    %v1662 = vpop.f32.mrb[0].mxu0
    %1663 = vmatprep.mubr.bf16.mxu0 0
    %1664 = vmatmul.mubr.bf16.gmra.mrb[0].mxu0 %v1621
    %v1665 = vpop.f32.mrb[0].mxu0
    %v1666 = vadd.f32 1e-12, %v1665
    %v1667 = vpop.f32.mrb[0].mxu0
    %v1668 = vpop.f32.mrb[0].mxu0
    %v1669 = vadd.f32 1e-12, %v1668
    %v1670 = vpop.f32.mrb[0].mxu0
    %1671 = vdwg.mxu0
    %v1672 = vrsqrt.pop %v1658
    %v1673 = vrsqrt.pop %v1661
    %v1674 = vrsqrt.pop %v1666
    %v1675 = vrsqrt.pop %v1669
    %v1676 = vmul.f32 %v1597, %v1672
    %v1677 = vmul.f32 %v1600, %v1673
    %v1678 = vmul.f32 %v1605, %v1674
    %v1679 = vmul.f32 %v1608, %v1675
    %v1680 = vpack.c.bf16 %v1677, %v1676
    %v1681 = vpack.c.bf16 %v1679, %v1678
    %v1682 = vmul.f32 %v1597, %v249
    %v1683 = vmul.f32 %v1600, %v249
    %v1684 = vmul.f32 %v1605, %v249
    %v1685 = vmul.f32 %v1608, %v249
    %v1686 = vmul.f32 %v1597, %v253
    %v1687 = vmul.f32 %v1600, %v253
    %v1688 = vmul.f32 %v1605, %v253
    %v1689 = vmul.f32 %v1608, %v253
    %v1690 = vmul.f32 %v1597, %v257
    %v1691 = vmul.f32 %v1600, %v257
    %v1692 = vmul.f32 %v1605, %v257
    %v1693 = vmul.f32 %v1608, %v257
    %v1694 = vmul.f32 %v1597, %v261
    %v1695 = vmul.f32 %v1600, %v261
    %v1696 = vmul.f32 %v1605, %v261
    %v1697 = vmul.f32 %v1608, %v261
    %v1698 = vmul.f32 %v1682, 0.35355338
    %v1699 = vmul.f32 %v1683, 0.35355338
    %v1700 = vmul.f32 %v1684, 0.35355338
    %v1701 = vmul.f32 %v1685, 0.35355338
    %v1702 = vmul.f32 %v1686, 0.35355338
    %v1703 = vmul.f32 %v1687, 0.35355338
    %v1704 = vmul.f32 %v1688, 0.35355338
    %v1705 = vmul.f32 %v1689, 0.35355338
    %v1706 = vmul.f32 %v1690, 0.35355338
    %v1707 = vmul.f32 %v1691, 0.35355338
    %v1708 = vmul.f32 %v1692, 0.35355338
    %v1709 = vmul.f32 %v1693, 0.35355338
    %v1710 = vmul.f32 %v1694, 0.35355338
    %v1711 = vmul.f32 %v1695, 0.35355338
    %v1712 = vmul.f32 %v1696, 0.35355338
    %v1713 = vmul.f32 %v1697, 0.35355338
    %v1714 = vpack.c.bf16 %v1699, %v1698
    %v1715 = vpack.c.bf16 %v1701, %v1700
    %v1716 = vpack.c.bf16 %v1703, %v1702
    %v1717 = vpack.c.bf16 %v1705, %v1704
    %v1718 = vpack.c.bf16 %v1707, %v1706
    %v1719 = vpack.c.bf16 %v1709, %v1708
    %v1720 = vpack.c.bf16 %v1711, %v1710
    %v1721 = vpack.c.bf16 %v1713, %v1712
    %v1723 = vsel %vm379, %v1714, 0
    %v1726 = vsel %vm379, %v1715, 0
    %v1729 = vsel %vm379, %v1716, 0
    %v1732 = vsel %vm379, %v1717, 0
    %v1735 = vsel %vm379, %v1718, 0
    %v1738 = vsel %vm379, %v1719, 0
    %v1741 = vsel %vm379, %v1720, 0
    %v1744 = vsel %vm379, %v1721, 0
    %v1747 = vsel %vm379, %v1680, 0
    %v1750 = vsel %vm379, %v1681, 0
    %1752 = vmatprep.subr.bf16.mxu0 0
    %1753 = vmatpush1.bf16.xpose.msra.mxu0 %v1747
    %1754 = vmatprep.subr.bf16.mxu0 0
    %1755 = vmatpush1.bf16.xpose.msra.mxu0 %v1750
    %1756 = vmatprep.subr.bf16.mxu0 0
    %1757 = vmatpush1.bf16.xpose.msra.mxu0 0
    %1758 = vmatprep.subr.bf16.mxu0 0
    %1759 = vmatpush1.bf16.xpose.msra.mxu0 0
    %1760 = vmatprep.subr.bf16.mxu0 0
    %1761 = vmatpush1.bf16.xpose.msra.mxu0 0
    %1762 = vmatprep.subr.bf16.mxu0 0
    %1763 = vmatpush1.bf16.xpose.msra.mxu0 0
    %1764 = vmatprep.subr.bf16.mxu0 0
    %1765 = vmatpush1.bf16.xpose.msra.mxu0 0
    %1766 = vmatprep.subr.bf16.mxu0 0
    %1767 = vmatpush1.bf16.xpose.msra.mxu0 0
    %1768 = vmatprep.subr.bf16.mxu0 0
    %1769 = vmatpush1.bf16.xpose.msra.mxu0 0
    %1770 = vmatprep.subr.bf16.mxu0 0
    %1771 = vmatpush1.bf16.xpose.msra.mxu0 0
    %1772 = vmatprep.subr.bf16.mxu0 0
    %1773 = vmatpush1.bf16.xpose.msra.mxu0 0
    %1774 = vmatprep.subr.bf16.mxu0 0
    %1775 = vmatpush1.bf16.xpose.msra.mxu0 0
    %1776 = vmatprep.subr.bf16.mxu0 0
    %1777 = vmatpush1.bf16.xpose.msra.mxu0 0
    %1778 = vmatprep.subr.bf16.mxu0 0
    %1779 = vmatpush1.bf16.xpose.msra.mxu0 0
    %1780 = vmatprep.subr.bf16.mxu0 0
    %1781 = vmatpush1.bf16.xpose.msra.mxu0 0
    %1782 = vmatprep.subr.bf16.mxu0 0
    %1783 = vmatpush1.bf16.xpose.msra.mxu0 0
    %1784 = vmatprep.mubr.bf16.mxu0 0
    %1785 = vmatmul.mubr.bf16.gmra.mrb[0].mxu0 %v1723
    %v1786 = vpop.f32.mrb[0].mxu0
    %v1787 = vadd.f32 %v242, %v1786
    %v1788 = vpop.f32.mrb[0].mxu0
    %v1789 = vpop.f32.mrb[0].mxu0
    %v1790 = vadd.f32 %v243, %v1789
    %v1791 = vpop.f32.mrb[0].mxu0
    %1792 = vmatprep.mubr.bf16.mxu0 0
    %1793 = vmatmul.mubr.bf16.gmra.mrb[0].mxu0 %v1726
    %v1794 = vpop.f32.mrb[0].mxu0
    %v1795 = vadd.f32 %v244, %v1794
    %v1796 = vpop.f32.mrb[0].mxu0
    %v1797 = vpop.f32.mrb[0].mxu0
    %v1798 = vadd.f32 %v245, %v1797
    %v1799 = vpop.f32.mrb[0].mxu0
    %1800 = vmatprep.mubr.bf16.mxu0 0
    %1801 = vmatmul.mubr.bf16.gmra.mrb[0].mxu0 %v1729
    %v1802 = vpop.f32.mrb[0].mxu0
    %v1803 = vadd.f32 %v242, %v1802
    %v1804 = vpop.f32.mrb[0].mxu0
    %v1805 = vpop.f32.mrb[0].mxu0
    %v1806 = vadd.f32 %v243, %v1805
    %v1807 = vpop.f32.mrb[0].mxu0
    %1808 = vmatprep.mubr.bf16.mxu0 0
    %1809 = vmatmul.mubr.bf16.gmra.mrb[0].mxu0 %v1732
    %v1810 = vpop.f32.mrb[0].mxu0
    %v1811 = vadd.f32 %v244, %v1810
    %v1812 = vpop.f32.mrb[0].mxu0
    %v1813 = vpop.f32.mrb[0].mxu0
    %v1814 = vadd.f32 %v245, %v1813
    %v1815 = vpop.f32.mrb[0].mxu0
    %1816 = vmatprep.mubr.bf16.mxu0 0
    %1817 = vmatmul.mubr.bf16.gmra.mrb[0].mxu0 %v1735
    %v1818 = vpop.f32.mrb[0].mxu0
    %v1819 = vadd.f32 %v242, %v1818
    %v1820 = vpop.f32.mrb[0].mxu0
    %v1821 = vpop.f32.mrb[0].mxu0
    %v1822 = vadd.f32 %v243, %v1821
    %v1823 = vpop.f32.mrb[0].mxu0
    %1824 = vmatprep.mubr.bf16.mxu0 0
    %1825 = vmatmul.mubr.bf16.gmra.mrb[0].mxu0 %v1738
    %v1826 = vpop.f32.mrb[0].mxu0
    %v1827 = vadd.f32 %v244, %v1826
    %v1828 = vpop.f32.mrb[0].mxu0
    %v1829 = vpop.f32.mrb[0].mxu0
    %v1830 = vadd.f32 %v245, %v1829
    %v1831 = vpop.f32.mrb[0].mxu0
    %1832 = vmatprep.mubr.bf16.mxu0 0
    %1833 = vmatmul.mubr.bf16.gmra.mrb[0].mxu0 %v1741
    %v1834 = vpop.f32.mrb[0].mxu0
    %v1835 = vadd.f32 %v242, %v1834
    %v1836 = vpop.f32.mrb[0].mxu0
    %v1837 = vpop.f32.mrb[0].mxu0
    %v1838 = vadd.f32 %v243, %v1837
    %v1839 = vpop.f32.mrb[0].mxu0
    %1840 = vmatprep.mubr.bf16.mxu0 0
    %1841 = vmatmul.mubr.bf16.gmra.mrb[0].mxu0 %v1744
    %v1842 = vpop.f32.mrb[0].mxu0
    %v1843 = vadd.f32 %v244, %v1842
    %v1844 = vpop.f32.mrb[0].mxu0
    %v1845 = vpop.f32.mrb[0].mxu0
    %v1846 = vadd.f32 %v245, %v1845
    %v1847 = vpop.f32.mrb[0].mxu0
    %1848 = vdwg.mxu0
    %v1849 = vsel %vm379, %v1787, -inf
    %1850 = vmax.xlane.f32.xlu0 %v1849
    %v1851 = vpop.xlane.xlu0 %1850
    %v1852 = vsel %vm379, %v1790, -inf
    %1853 = vmax.xlane.f32.xlu0 %v1852
    %v1854 = vpop.xlane.xlu0 %1853
    %v1855 = vsel %vm379, %v1795, -inf
    %1856 = vmax.xlane.f32.xlu0 %v1855
    %v1857 = vpop.xlane.xlu0 %1856
    %v1858 = vsel %vm379, %v1798, -inf
    %1859 = vmax.xlane.f32.xlu0 %v1858
    %v1860 = vpop.xlane.xlu0 %1859
    %v1861 = vsel %vm379, %v1803, -inf
    %1862 = vmax.xlane.f32.xlu0 %v1861
    %v1863 = vpop.xlane.xlu0 %1862
    %v1864 = vsel %vm379, %v1806, -inf
    %1865 = vmax.xlane.f32.xlu0 %v1864
    %v1866 = vpop.xlane.xlu0 %1865
    %v1867 = vsel %vm379, %v1811, -inf
    %1868 = vmax.xlane.f32.xlu0 %v1867
    %v1869 = vpop.xlane.xlu0 %1868
    %v1870 = vsel %vm379, %v1814, -inf
    %1871 = vmax.xlane.f32.xlu0 %v1870
    %v1872 = vpop.xlane.xlu0 %1871
    %v1873 = vsel %vm379, %v1819, -inf
    %1874 = vmax.xlane.f32.xlu0 %v1873
    %v1875 = vpop.xlane.xlu0 %1874
    %v1876 = vsel %vm379, %v1822, -inf
    %1877 = vmax.xlane.f32.xlu0 %v1876
    %v1878 = vpop.xlane.xlu0 %1877
    %v1879 = vsel %vm379, %v1827, -inf
    %1880 = vmax.xlane.f32.xlu0 %v1879
    %v1881 = vpop.xlane.xlu0 %1880
    %v1882 = vsel %vm379, %v1830, -inf
    %1883 = vmax.xlane.f32.xlu0 %v1882
    %v1884 = vpop.xlane.xlu0 %1883
    %v1885 = vsel %vm379, %v1835, -inf
    %1886 = vmax.xlane.f32.xlu0 %v1885
    %v1887 = vpop.xlane.xlu0 %1886
    %v1888 = vsel %vm379, %v1838, -inf
    %1889 = vmax.xlane.f32.xlu0 %v1888
    %v1890 = vpop.xlane.xlu0 %1889
    %v1891 = vsel %vm379, %v1843, -inf
    %1892 = vmax.xlane.f32.xlu0 %v1891
    %v1893 = vpop.xlane.xlu0 %1892
    %v1894 = vsel %vm379, %v1846, -inf
    %1895 = vmax.xlane.f32.xlu0 %v1894
    %v1896 = vpop.xlane.xlu0 %1895
    %v1897 = vsub.f32 %v1787, %v1851
    %v1898 = vsub.f32 %v1790, %v1854
    %v1899 = vsub.f32 %v1795, %v1857
    %v1900 = vsub.f32 %v1798, %v1860
    %v1901 = vsub.f32 %v1803, %v1863
    %v1902 = vsub.f32 %v1806, %v1866
    %v1903 = vsub.f32 %v1811, %v1869
    %v1904 = vsub.f32 %v1814, %v1872
    %v1905 = vsub.f32 %v1819, %v1875
    %v1906 = vsub.f32 %v1822, %v1878
    %v1907 = vsub.f32 %v1827, %v1881
    %v1908 = vsub.f32 %v1830, %v1884
    %v1909 = vsub.f32 %v1835, %v1887
    %v1910 = vsub.f32 %v1838, %v1890
    %v1911 = vsub.f32 %v1843, %v1893
    %v1912 = vsub.f32 %v1846, %v1896
    %v1913 = vmul.f32 %v1897, 1.442695
    %v1914 = vpow.pop %v1913
    %v1915 = vmul.f32 %v1898, 1.442695
    %v1916 = vpow.pop %v1915
    %v1917 = vmul.f32 %v1899, 1.442695
    %v1918 = vpow.pop %v1917
    %v1919 = vmul.f32 %v1900, 1.442695
    %v1920 = vpow.pop %v1919
    %v1921 = vmul.f32 %v1901, 1.442695
    %v1922 = vpow.pop %v1921
    %v1923 = vmul.f32 %v1902, 1.442695
    %v1924 = vpow.pop %v1923
    %v1925 = vmul.f32 %v1903, 1.442695
    %v1926 = vpow.pop %v1925
    %v1927 = vmul.f32 %v1904, 1.442695
    %v1928 = vpow.pop %v1927
    %v1929 = vmul.f32 %v1905, 1.442695
    %v1930 = vpow.pop %v1929
    %v1931 = vmul.f32 %v1906, 1.442695
    %v1932 = vpow.pop %v1931
    %v1933 = vmul.f32 %v1907, 1.442695
    %v1934 = vpow.pop %v1933
    %v1935 = vmul.f32 %v1908, 1.442695
    %v1936 = vpow.pop %v1935
    %v1937 = vmul.f32 %v1909, 1.442695
    %v1938 = vpow.pop %v1937
    %v1939 = vmul.f32 %v1910, 1.442695
    %v1940 = vpow.pop %v1939
    %v1941 = vmul.f32 %v1911, 1.442695
    %v1942 = vpow.pop %v1941
    %v1943 = vmul.f32 %v1912, 1.442695
    %v1944 = vpow.pop %v1943
    %v1945 = vsel %vm379, %v1914, 0.0
    %1946 = vadd.xlane.f32.xlu0 %v1945
    %v1947 = vpop.xlane.xlu0 %1946
    %v1948 = vsel %vm379, %v1916, 0.0
    %1949 = vadd.xlane.f32.xlu0 %v1948
    %v1950 = vpop.xlane.xlu0 %1949
    %v1951 = vsel %vm379, %v1918, 0.0
    %1952 = vadd.xlane.f32.xlu0 %v1951
    %v1953 = vpop.xlane.xlu0 %1952
    %v1954 = vsel %vm379, %v1920, 0.0
    %1955 = vadd.xlane.f32.xlu0 %v1954
    %v1956 = vpop.xlane.xlu0 %1955
    %v1957 = vsel %vm379, %v1922, 0.0
    %1958 = vadd.xlane.f32.xlu0 %v1957
    %v1959 = vpop.xlane.xlu0 %1958
    %v1960 = vsel %vm379, %v1924, 0.0
    %1961 = vadd.xlane.f32.xlu0 %v1960
    %v1962 = vpop.xlane.xlu0 %1961
    %v1963 = vsel %vm379, %v1926, 0.0
    %1964 = vadd.xlane.f32.xlu0 %v1963
    %v1965 = vpop.xlane.xlu0 %1964
    %v1966 = vsel %vm379, %v1928, 0.0
    %1967 = vadd.xlane.f32.xlu0 %v1966
    %v1968 = vpop.xlane.xlu0 %1967
    %v1969 = vsel %vm379, %v1930, 0.0
    %1970 = vadd.xlane.f32.xlu0 %v1969
    %v1971 = vpop.xlane.xlu0 %1970
    %v1972 = vsel %vm379, %v1932, 0.0
    %1973 = vadd.xlane.f32.xlu0 %v1972
    %v1974 = vpop.xlane.xlu0 %1973
    %v1975 = vsel %vm379, %v1934, 0.0
    %1976 = vadd.xlane.f32.xlu0 %v1975
    %v1977 = vpop.xlane.xlu0 %1976
    %v1978 = vsel %vm379, %v1936, 0.0
    %1979 = vadd.xlane.f32.xlu0 %v1978
    %v1980 = vpop.xlane.xlu0 %1979
    %v1981 = vsel %vm379, %v1938, 0.0
    %1982 = vadd.xlane.f32.xlu0 %v1981
    %v1983 = vpop.xlane.xlu0 %1982
    %v1984 = vsel %vm379, %v1940, 0.0
    %1985 = vadd.xlane.f32.xlu0 %v1984
    %v1986 = vpop.xlane.xlu0 %1985
    %v1987 = vsel %vm379, %v1942, 0.0
    %1988 = vadd.xlane.f32.xlu0 %v1987
    %v1989 = vpop.xlane.xlu0 %1988
    %v1990 = vsel %vm379, %v1944, 0.0
    %1991 = vadd.xlane.f32.xlu0 %v1990
    %v1992 = vpop.xlane.xlu0 %1991
    %v1993 = vrcp.pop %v1947
    %v1994 = vrcp.pop %v1950
    %v1995 = vrcp.pop %v1953
    %v1996 = vrcp.pop %v1956
    %v1997 = vrcp.pop %v1959
    %v1998 = vrcp.pop %v1962
    %v1999 = vrcp.pop %v1965
    %v2000 = vrcp.pop %v1968
    %v2001 = vrcp.pop %v1971
    %v2002 = vrcp.pop %v1974
    %v2003 = vrcp.pop %v1977
    %v2004 = vrcp.pop %v1980
    %v2005 = vrcp.pop %v1983
    %v2006 = vrcp.pop %v1986
    %v2007 = vrcp.pop %v1989
    %v2008 = vrcp.pop %v1992
    %v2009 = vmul.f32 %v1914, %v1993
    %v2010 = vmul.f32 %v1916, %v1994
    %v2011 = vmul.f32 %v1918, %v1995
    %v2012 = vmul.f32 %v1920, %v1996
    %v2013 = vmul.f32 %v1922, %v1997
    %v2014 = vmul.f32 %v1924, %v1998
    %v2015 = vmul.f32 %v1926, %v1999
    %v2016 = vmul.f32 %v1928, %v2000
    %v2017 = vmul.f32 %v1930, %v2001
    %v2018 = vmul.f32 %v1932, %v2002
    %v2019 = vmul.f32 %v1934, %v2003
    %v2020 = vmul.f32 %v1936, %v2004
    %v2021 = vmul.f32 %v1938, %v2005
    %v2022 = vmul.f32 %v1940, %v2006
    %v2023 = vmul.f32 %v1942, %v2007
    %v2024 = vmul.f32 %v1944, %v2008
    %v2025 = vpack.c.bf16 %v2010, %v2009
    %v2026 = vpack.c.bf16 %v2012, %v2011
    %v2027 = vpack.c.bf16 %v2014, %v2013
    %v2028 = vpack.c.bf16 %v2016, %v2015
    %v2029 = vpack.c.bf16 %v2018, %v2017
    %v2030 = vpack.c.bf16 %v2020, %v2019
    %v2031 = vpack.c.bf16 %v2022, %v2021
    %v2032 = vpack.c.bf16 %v2024, %v2023
    %v2033 = vpack.c.bf16 %v1600, %v1597
    %v2034 = vpack.c.bf16 %v1608, %v1605
    %2037 = vrot.lane.b32.xlu0 %v2033, 96
    %v2038 = vpop.permute.xlu0 %2037
    %2039 = vrot.lane.b32.xlu0 %v2034, 96
    %v2040 = vpop.permute.xlu0 %2039
    %v2044 = vsel %vm379, %v2025, 0
    %v2047 = vsel %vm379, %v2026, 0
    %v2050 = vsel %vm379, %v2027, 0
    %v2053 = vsel %vm379, %v2028, 0
    %v2056 = vsel %vm379, %v2029, 0
    %v2059 = vsel %vm379, %v2030, 0
    %v2062 = vsel %vm379, %v2031, 0
    %v2065 = vsel %vm379, %v2032, 0
    %2067 = vmatprep.subr.bf16.mxu0 0
    %2068 = vmatpush1.bf16.msra.mxu0 %v2038
    %2069 = vmatprep.subr.bf16.mxu0 0
    %2070 = vmatpush1.bf16.msra.mxu0 %v2040
    %2071 = vmatprep.subr.bf16.mxu0 0
    %2072 = vmatpush1.bf16.msra.mxu0 0
    %2073 = vmatprep.subr.bf16.mxu0 0
    %2074 = vmatpush1.bf16.msra.mxu0 0
    %2075 = vmatprep.subr.bf16.mxu0 0
    %2076 = vmatpush1.bf16.msra.mxu0 0
    %2077 = vmatprep.subr.bf16.mxu0 0
    %2078 = vmatpush1.bf16.msra.mxu0 0
    %2079 = vmatprep.subr.bf16.mxu0 0
    %2080 = vmatpush1.bf16.msra.mxu0 0
    %2081 = vmatprep.subr.bf16.mxu0 0
    %2082 = vmatpush1.bf16.msra.mxu0 0
    %2083 = vmatprep.subr.bf16.mxu0 0
    %2084 = vmatpush1.bf16.msra.mxu0 0
    %2085 = vmatprep.subr.bf16.mxu0 0
    %2086 = vmatpush1.bf16.msra.mxu0 0
    %2087 = vmatprep.subr.bf16.mxu0 0
    %2088 = vmatpush1.bf16.msra.mxu0 0
    %2089 = vmatprep.subr.bf16.mxu0 0
    %2090 = vmatpush1.bf16.msra.mxu0 0
    %2091 = vmatprep.subr.bf16.mxu0 0
    %2092 = vmatpush1.bf16.msra.mxu0 0
    %2093 = vmatprep.subr.bf16.mxu0 0
    %2094 = vmatpush1.bf16.msra.mxu0 0
    %2095 = vmatprep.subr.bf16.mxu0 0
    %2096 = vmatpush1.bf16.msra.mxu0 0
    %2097 = vmatprep.subr.bf16.mxu0 0
    %2098 = vmatpush1.bf16.msra.mxu0 0
    %2099 = vmatprep.mubr.bf16.mxu0 0
    %2100 = vmatmul.mubr.bf16.gmra.mrb[0].mxu0 %v2044
    %v2101 = vpop.f32.mrb[0].mxu0
    %v2102 = vadd.f32 0.0, %v2101
    %v2103 = vpop.f32.mrb[0].mxu0
    %v2104 = vpop.f32.mrb[0].mxu0
    %v2105 = vadd.f32 0.0, %v2104
    %v2106 = vpop.f32.mrb[0].mxu0
    %2107 = vmatprep.mubr.bf16.mxu0 0
    %2108 = vmatmul.mubr.bf16.gmra.mrb[0].mxu0 %v2047
    %v2109 = vpop.f32.mrb[0].mxu0
    %v2110 = vadd.f32 0.0, %v2109
    %v2111 = vpop.f32.mrb[0].mxu0
    %v2112 = vpop.f32.mrb[0].mxu0
    %v2113 = vadd.f32 0.0, %v2112
    %v2114 = vpop.f32.mrb[0].mxu0
    %2115 = vmatprep.mubr.bf16.mxu0 0
    %2116 = vmatmul.mubr.bf16.gmra.mrb[0].mxu0 %v2050
    %v2117 = vpop.f32.mrb[0].mxu0
    %v2118 = vadd.f32 0.0, %v2117
    %v2119 = vpop.f32.mrb[0].mxu0
    %v2120 = vpop.f32.mrb[0].mxu0
    %v2121 = vadd.f32 0.0, %v2120
    %v2122 = vpop.f32.mrb[0].mxu0
    %2123 = vmatprep.mubr.bf16.mxu0 0
    %2124 = vmatmul.mubr.bf16.gmra.mrb[0].mxu0 %v2053
    %v2125 = vpop.f32.mrb[0].mxu0
    %v2126 = vadd.f32 0.0, %v2125
    %v2127 = vpop.f32.mrb[0].mxu0
    %v2128 = vpop.f32.mrb[0].mxu0
    %v2129 = vadd.f32 0.0, %v2128
    %v2130 = vpop.f32.mrb[0].mxu0
    %2131 = vmatprep.mubr.bf16.mxu0 0
    %2132 = vmatmul.mubr.bf16.gmra.mrb[0].mxu0 %v2056
    %v2133 = vpop.f32.mrb[0].mxu0
    %v2134 = vadd.f32 0.0, %v2133
    %v2135 = vpop.f32.mrb[0].mxu0
    %v2136 = vpop.f32.mrb[0].mxu0
    %v2137 = vadd.f32 0.0, %v2136
    %v2138 = vpop.f32.mrb[0].mxu0
    %2139 = vmatprep.mubr.bf16.mxu0 0
    %2140 = vmatmul.mubr.bf16.gmra.mrb[0].mxu0 %v2059
    %v2141 = vpop.f32.mrb[0].mxu0
    %v2142 = vadd.f32 0.0, %v2141
    %v2143 = vpop.f32.mrb[0].mxu0
    %v2144 = vpop.f32.mrb[0].mxu0
    %v2145 = vadd.f32 0.0, %v2144
    %v2146 = vpop.f32.mrb[0].mxu0
    %2147 = vmatprep.mubr.bf16.mxu0 0
    %2148 = vmatmul.mubr.bf16.gmra.mrb[0].mxu0 %v2062
    %v2149 = vpop.f32.mrb[0].mxu0
    %v2150 = vadd.f32 0.0, %v2149
    %v2151 = vpop.f32.mrb[0].mxu0
    %v2152 = vpop.f32.mrb[0].mxu0
    %v2153 = vadd.f32 0.0, %v2152
    %v2154 = vpop.f32.mrb[0].mxu0
    %2155 = vmatprep.mubr.bf16.mxu0 0
    %2156 = vmatmul.mubr.bf16.gmra.mrb[0].mxu0 %v2065
    %v2157 = vpop.f32.mrb[0].mxu0
    %v2158 = vadd.f32 0.0, %v2157
    %v2159 = vpop.f32.mrb[0].mxu0
    %v2160 = vpop.f32.mrb[0].mxu0
    %v2161 = vadd.f32 0.0, %v2160
    %v2162 = vpop.f32.mrb[0].mxu0
    %2163 = vdwg.mxu0
    %v2164 = vmul.f32 %v2102, %v249
    %v2165 = vmul.f32 %v2105, %v249
    %v2166 = vmul.f32 %v2110, %v249
    %v2167 = vmul.f32 %v2113, %v249
    %v2168 = vmul.f32 %v2118, %v253
    %v2169 = vmul.f32 %v2121, %v253
    %v2170 = vmul.f32 %v2126, %v253
    %v2171 = vmul.f32 %v2129, %v253
    %v2172 = vmul.f32 %v2134, %v257
    %v2173 = vmul.f32 %v2137, %v257
    %v2174 = vmul.f32 %v2142, %v257
    %v2175 = vmul.f32 %v2145, %v257
    %v2176 = vmul.f32 %v2150, %v261
    %v2177 = vmul.f32 %v2153, %v261
    %v2178 = vmul.f32 %v2158, %v261
    %v2179 = vmul.f32 %v2161, %v261
    %v2180 = vadd.f32 %v2164, %v2168
    %v2181 = vadd.f32 %v2165, %v2169
    %v2182 = vadd.f32 %v2166, %v2170
    %v2183 = vadd.f32 %v2167, %v2171
    %v2184 = vadd.f32 %v2180, %v2172
    %v2185 = vadd.f32 %v2181, %v2173
    %v2186 = vadd.f32 %v2182, %v2174
    %v2187 = vadd.f32 %v2183, %v2175
    %v2188 = vadd.f32 %v2184, %v2176
    %v2189 = vadd.f32 %v2185, %v2177
    %v2190 = vadd.f32 %v2186, %v2178
    %v2191 = vadd.f32 %v2187, %v2179
    %v2192 = vpack.c.bf16 %v2189, %v2188
    %v2193 = vpack.c.bf16 %v2191, %v2190
    %v2194 = vlaneseq
    %v2195 = vshrl.u32 %v2194, 7
    %v2196 = vsub.s32 2, %v2195
    %v2197 = vrot.slane %v1473, %v2196
    %2198 = vrot.lane.b32.xlu0 %v1552, 64
    %v2199 = vpop.permute.xlu0 %2198
    %2200 = vrot.lane.b32.xlu0 %v1553, 64
    %v2201 = vpop.permute.xlu0 %2200
    %v2205 = vsel %vm379, %v2192, 0
    %v2208 = vsel %vm379, %v2193, 0
    %2210 = vmatprep.subr.bf16.mxu0 0
    %2211 = vmatpush1.bf16.msra.mxu0 %v2199
    %2212 = vmatprep.subr.bf16.mxu0 0
    %2213 = vmatpush1.bf16.msra.mxu0 %v2201
    %2214 = vmatprep.subr.bf16.mxu0 0
    %2215 = vmatpush1.bf16.msra.mxu0 0
    %2216 = vmatprep.subr.bf16.mxu0 0
    %2217 = vmatpush1.bf16.msra.mxu0 0
    %2218 = vmatprep.subr.bf16.mxu0 0
    %2219 = vmatpush1.bf16.msra.mxu0 0
    %2220 = vmatprep.subr.bf16.mxu0 0
    %2221 = vmatpush1.bf16.msra.mxu0 0
    %2222 = vmatprep.subr.bf16.mxu0 0
    %2223 = vmatpush1.bf16.msra.mxu0 0
    %2224 = vmatprep.subr.bf16.mxu0 0
    %2225 = vmatpush1.bf16.msra.mxu0 0
    %2226 = vmatprep.subr.bf16.mxu0 0
    %2227 = vmatpush1.bf16.msra.mxu0 0
    %2228 = vmatprep.subr.bf16.mxu0 0
    %2229 = vmatpush1.bf16.msra.mxu0 0
    %2230 = vmatprep.subr.bf16.mxu0 0
    %2231 = vmatpush1.bf16.msra.mxu0 0
    %2232 = vmatprep.subr.bf16.mxu0 0
    %2233 = vmatpush1.bf16.msra.mxu0 0
    %2234 = vmatprep.subr.bf16.mxu0 0
    %2235 = vmatpush1.bf16.msra.mxu0 0
    %2236 = vmatprep.subr.bf16.mxu0 0
    %2237 = vmatpush1.bf16.msra.mxu0 0
    %2238 = vmatprep.subr.bf16.mxu0 0
    %2239 = vmatpush1.bf16.msra.mxu0 0
    %2240 = vmatprep.subr.bf16.mxu0 0
    %2241 = vmatpush1.bf16.msra.mxu0 0
    %2242 = vmatprep.mubr.bf16.mxu0 0
    %2243 = vmatmul.mubr.bf16.gmra.mrb[0].mxu0 %v2205
    %v2244 = vpop.f32.mrb[0].mxu0
    %v2245 = vadd.f32 %v2197, %v2244
    %v2246 = vpop.f32.mrb[0].mxu0
    %v2247 = vpop.f32.mrb[0].mxu0
    %v2248 = vadd.f32 %v2197, %v2247
    %v2249 = vpop.f32.mrb[0].mxu0
    %2250 = vmatprep.mubr.bf16.mxu0 0
    %2251 = vmatmul.mubr.bf16.gmra.mrb[0].mxu0 %v2208
    %v2252 = vpop.f32.mrb[0].mxu0
    %v2253 = vadd.f32 %v2197, %v2252
    %v2254 = vpop.f32.mrb[0].mxu0
    %v2255 = vpop.f32.mrb[0].mxu0
    %v2256 = vadd.f32 %v2197, %v2255
    %v2257 = vpop.f32.mrb[0].mxu0
    %2258 = vdwg.mxu0
    %v2259 = vadd.f32 %v1166, %v2245
    %v2260 = vadd.f32 %v1167, %v2248
    %v2261 = vadd.f32 %v1168, %v2253
    %v2262 = vadd.f32 %v1169, %v2256
    %v2263 = vsel %vm379, %v2259, 0.0
    %2264 = vadd.xlane.f32.xlu0 %v2263
    %v2265 = vpop.xlane.xlu0 %2264
    %v2266 = vsel %vm379, %v2260, 0.0
    %2267 = vadd.xlane.f32.xlu0 %v2266
    %v2268 = vpop.xlane.xlu0 %2267
    %v2269 = vsel %vm379, %v2261, 0.0
    %2270 = vadd.xlane.f32.xlu0 %v2269
    %v2271 = vpop.xlane.xlu0 %2270
    %v2272 = vsel %vm379, %v2262, 0.0
    %2273 = vadd.xlane.f32.xlu0 %v2272
    %v2274 = vpop.xlane.xlu0 %2273
    %v2275 = vmul.f32 %v2265, %v392
    %v2276 = vmul.f32 %v2268, %v392
    %v2277 = vmul.f32 %v2271, %v392
    %v2278 = vmul.f32 %v2274, %v392
    %v2279 = vsub.f32 %v2259, %v2275
    %v2280 = vsub.f32 %v2260, %v2276
    %v2281 = vsub.f32 %v2261, %v2277
    %v2282 = vsub.f32 %v2262, %v2278
    %v2283 = vmul.f32 %v2279, %v2279
    %v2284 = vmul.f32 %v2280, %v2280
    %v2285 = vmul.f32 %v2281, %v2281
    %v2286 = vmul.f32 %v2282, %v2282
    %v2287 = vsel %vm379, %v2283, 0.0
    %2288 = vadd.xlane.f32.xlu0 %v2287
    %v2289 = vpop.xlane.xlu0 %2288
    %v2290 = vsel %vm379, %v2284, 0.0
    %2291 = vadd.xlane.f32.xlu0 %v2290
    %v2292 = vpop.xlane.xlu0 %2291
    %v2293 = vsel %vm379, %v2285, 0.0
    %2294 = vadd.xlane.f32.xlu0 %v2293
    %v2295 = vpop.xlane.xlu0 %2294
    %v2296 = vsel %vm379, %v2286, 0.0
    %2297 = vadd.xlane.f32.xlu0 %v2296
    %v2298 = vpop.xlane.xlu0 %2297
    %v2299 = vmul.f32 %v2289, %v392
    %v2300 = vmul.f32 %v2292, %v392
    %v2301 = vmul.f32 %v2295, %v392
    %v2302 = vmul.f32 %v2298, %v392
    %v2303 = vadd.f32 %v2299, 1e-05
    %v2304 = vadd.f32 %v2300, 1e-05
    %v2305 = vadd.f32 %v2301, 1e-05
    %v2306 = vadd.f32 %v2302, 1e-05
    %v2307 = vrsqrt.pop %v2303
    %v2308 = vrsqrt.pop %v2304
    %v2309 = vrsqrt.pop %v2305
    %v2310 = vrsqrt.pop %v2306
    %v2311 = vmul.f32 %v2279, %v2307
    %v2312 = vmul.f32 %v2280, %v2308
    %v2313 = vmul.f32 %v2281, %v2309
    %v2314 = vmul.f32 %v2282, %v2310
    %v2315 = vlaneseq
    %v2316 = vshrl.u32 %v2315, 7
    %v2317 = vsub.s32 3, %v2316
    %v2318 = vrot.slane %v1473, %v2317
    %v2319 = vmul.f32 %v2311, %v2318
    %v2320 = vmul.f32 %v2312, %v2318
    %v2321 = vmul.f32 %v2313, %v2318
    %v2322 = vmul.f32 %v2314, %v2318
    %v2323 = vlaneseq
    %v2324 = vshrl.u32 %v2323, 7
    %v2325 = vsub.s32 4, %v2324
    %v2326 = vrot.slane %v1473, %v2325
    %v2327 = vadd.f32 %v2319, %v2326
    %v2328 = vadd.f32 %v2320, %v2326
    %v2329 = vadd.f32 %v2321, %v2326
    %v2330 = vadd.f32 %v2322, %v2326
    %v2331 = vpack.c.bf16 %v2328, %v2327
    %v2332 = vpack.c.bf16 %v2330, %v2329
    %v2333 = vlaneseq
    %v2334 = vshrl.u32 %v2333, 7
    %v2335 = vsub.s32 6, %v2334
    %v2336 = vrot.slane %v1473, %v2335
    %v2337 = vunpack.c.l.b16 %v1451
    %v2338 = vunpack.c.l.b16 %v1452
    %v2339 = vunpack.c.l.b16 %v1453
    %v2340 = vunpack.c.l.b16 %v1454
    %v2341 = vpack.c.b16 %v2338, %v2337
    %v2342 = vpack.c.b16 %v2340, %v2339
    %v2346 = vsel %vm379, %v2331, 0
    %v2349 = vsel %vm379, %v2332, 0
    %2351 = vmatprep.subr.bf16.mxu0 0
    %2352 = vmatpush1.bf16.msra.mxu0 %v2341
    %2353 = vmatprep.subr.bf16.mxu0 0
    %2354 = vmatpush1.bf16.msra.mxu0 %v2342
    %2355 = vmatprep.subr.bf16.mxu0 0
    %2356 = vmatpush1.bf16.msra.mxu0 0
    %2357 = vmatprep.subr.bf16.mxu0 0
    %2358 = vmatpush1.bf16.msra.mxu0 0
    %2359 = vmatprep.subr.bf16.mxu0 0
    %2360 = vmatpush1.bf16.msra.mxu0 0
    %2361 = vmatprep.subr.bf16.mxu0 0
    %2362 = vmatpush1.bf16.msra.mxu0 0
    %2363 = vmatprep.subr.bf16.mxu0 0
    %2364 = vmatpush1.bf16.msra.mxu0 0
    %2365 = vmatprep.subr.bf16.mxu0 0
    %2366 = vmatpush1.bf16.msra.mxu0 0
    %2367 = vmatprep.subr.bf16.mxu0 0
    %2368 = vmatpush1.bf16.msra.mxu0 0
    %2369 = vmatprep.subr.bf16.mxu0 0
    %2370 = vmatpush1.bf16.msra.mxu0 0
    %2371 = vmatprep.subr.bf16.mxu0 0
    %2372 = vmatpush1.bf16.msra.mxu0 0
    %2373 = vmatprep.subr.bf16.mxu0 0
    %2374 = vmatpush1.bf16.msra.mxu0 0
    %2375 = vmatprep.subr.bf16.mxu0 0
    %2376 = vmatpush1.bf16.msra.mxu0 0
    %2377 = vmatprep.subr.bf16.mxu0 0
    %2378 = vmatpush1.bf16.msra.mxu0 0
    %2379 = vmatprep.subr.bf16.mxu0 0
    %2380 = vmatpush1.bf16.msra.mxu0 0
    %2381 = vmatprep.subr.bf16.mxu0 0
    %2382 = vmatpush1.bf16.msra.mxu0 0
    %2383 = vmatprep.mubr.bf16.mxu0 0
    %2384 = vmatmul.mubr.bf16.gmra.mrb[0].mxu0 %v2346
    %v2385 = vpop.f32.mrb[0].mxu0
    %v2386 = vadd.f32 %v2336, %v2385
    %v2387 = vpop.f32.mrb[0].mxu0
    %v2388 = vpop.f32.mrb[0].mxu0
    %v2389 = vadd.f32 %v2336, %v2388
    %v2390 = vpop.f32.mrb[0].mxu0
    %2391 = vmatprep.mubr.bf16.mxu0 0
    %2392 = vmatmul.mubr.bf16.gmra.mrb[0].mxu0 %v2349
    %v2393 = vpop.f32.mrb[0].mxu0
    %v2394 = vadd.f32 %v2336, %v2393
    %v2395 = vpop.f32.mrb[0].mxu0
    %v2396 = vpop.f32.mrb[0].mxu0
    %v2397 = vadd.f32 %v2336, %v2396
    %v2398 = vpop.f32.mrb[0].mxu0
    %2399 = vdwg.mxu0
    %v2400 = vmul.f32 %v2386, %v2386
    %v2401 = vmul.f32 %v2389, %v2389
    %v2402 = vmul.f32 %v2394, %v2394
    %v2403 = vmul.f32 %v2397, %v2397
    %v2404 = vmul.f32 %v2386, %v2400
    %v2405 = vmul.f32 %v2389, %v2401
    %v2406 = vmul.f32 %v2394, %v2402
    %v2407 = vmul.f32 %v2397, %v2403
    %v2408 = vmul.f32 %v2404, 0.044715
    %v2409 = vmul.f32 %v2405, 0.044715
    %v2410 = vmul.f32 %v2406, 0.044715
    %v2411 = vmul.f32 %v2407, 0.044715
    %v2412 = vadd.f32 %v2386, %v2408
    %v2413 = vadd.f32 %v2389, %v2409
    %v2414 = vadd.f32 %v2394, %v2410
    %v2415 = vadd.f32 %v2397, %v2411
    %v2416 = vmul.f32 %v2412, 0.7978846
    %v2417 = vmul.f32 %v2413, 0.7978846
    %v2418 = vmul.f32 %v2414, 0.7978846
    %v2419 = vmul.f32 %v2415, 0.7978846
    %v2420 = vtanh.pop %v2416
    %v2421 = vtanh.pop %v2417
    %v2422 = vtanh.pop %v2418
    %v2423 = vtanh.pop %v2419
    %v2424 = vadd.f32 %v2420, 1.0
    %v2425 = vadd.f32 %v2421, 1.0
    %v2426 = vadd.f32 %v2422, 1.0
    %v2427 = vadd.f32 %v2423, 1.0
    %v2428 = vmul.f32 %v2424, 0.5
    %v2429 = vmul.f32 %v2425, 0.5
    %v2430 = vmul.f32 %v2426, 0.5
    %v2431 = vmul.f32 %v2427, 0.5
    %v2432 = vmul.f32 %v2386, %v2428
    %v2433 = vmul.f32 %v2389, %v2429
    %v2434 = vmul.f32 %v2394, %v2430
    %v2435 = vmul.f32 %v2397, %v2431
    %v2436 = vpack.c.bf16 %v2433, %v2432
    %v2437 = vpack.c.bf16 %v2435, %v2434
    %v2438 = vlaneseq
    %v2439 = vshrl.u32 %v2438, 7
    %v2440 = vsub.s32 5, %v2439
    %v2441 = vrot.slane %v1473, %v2440
    %v2458 = vunpack.c.l.b16 %v1456
    %v2459 = vunpack.c.l.b16 %v1457
    %v2460 = vunpack.c.l.b16 %v1458
    %v2461 = vunpack.c.l.b16 %v1459
    %v2462 = vunpack.c.l.b16 %v1460
    %v2463 = vunpack.c.l.b16 %v1461
    %v2464 = vunpack.c.l.b16 %v1462
    %v2465 = vunpack.c.l.b16 %v1463
    %v2466 = vunpack.c.l.b16 %v1464
    %v2467 = vunpack.c.l.b16 %v1465
    %v2468 = vunpack.c.l.b16 %v1466
    %v2469 = vunpack.c.l.b16 %v1467
    %v2470 = vunpack.c.l.b16 %v1468
    %v2471 = vunpack.c.l.b16 %v1469
    %v2472 = vunpack.c.l.b16 %v1470
    %v2473 = vunpack.c.l.b16 %v1471
    %v2474 = vpack.c.b16 %v2459, %v2458
    %v2475 = vpack.c.b16 %v2461, %v2460
    %v2476 = vpack.c.b16 %v2463, %v2462
    %v2477 = vpack.c.b16 %v2465, %v2464
    %v2478 = vpack.c.b16 %v2467, %v2466
    %v2479 = vpack.c.b16 %v2469, %v2468
    %v2480 = vpack.c.b16 %v2471, %v2470
    %v2481 = vpack.c.b16 %v2473, %v2472
    %2490 = vmatprep.subr.bf16.mxu0 0
    %2491 = vmatpush1.bf16.msra.mxu0 %v2474
    %2492 = vmatprep.subr.bf16.mxu0 0
    %2493 = vmatpush1.bf16.msra.mxu0 %v2475
    %2494 = vmatprep.subr.bf16.mxu0 0
    %2495 = vmatpush1.bf16.msra.mxu0 %v2476
    %2496 = vmatprep.subr.bf16.mxu0 0
    %2497 = vmatpush1.bf16.msra.mxu0 %v2477
    %2498 = vmatprep.subr.bf16.mxu0 0
    %2499 = vmatpush1.bf16.msra.mxu0 %v2478
    %2500 = vmatprep.subr.bf16.mxu0 0
    %2501 = vmatpush1.bf16.msra.mxu0 %v2479
    %2502 = vmatprep.subr.bf16.mxu0 0
    %2503 = vmatpush1.bf16.msra.mxu0 %v2480
    %2504 = vmatprep.subr.bf16.mxu0 0
    %2505 = vmatpush1.bf16.msra.mxu0 %v2481
    %2506 = vmatprep.subr.bf16.mxu0 0
    %2507 = vmatpush1.bf16.msra.mxu0 0
    %2508 = vmatprep.subr.bf16.mxu0 0
    %2509 = vmatpush1.bf16.msra.mxu0 0
    %2510 = vmatprep.subr.bf16.mxu0 0
    %2511 = vmatpush1.bf16.msra.mxu0 0
    %2512 = vmatprep.subr.bf16.mxu0 0
    %2513 = vmatpush1.bf16.msra.mxu0 0
    %2514 = vmatprep.subr.bf16.mxu0 0
    %2515 = vmatpush1.bf16.msra.mxu0 0
    %2516 = vmatprep.subr.bf16.mxu0 0
    %2517 = vmatpush1.bf16.msra.mxu0 0
    %2518 = vmatprep.subr.bf16.mxu0 0
    %2519 = vmatpush1.bf16.msra.mxu0 0
    %2520 = vmatprep.subr.bf16.mxu0 0
    %2521 = vmatpush1.bf16.msra.mxu0 0
    %2522 = vmatprep.mubr.bf16.mxu0 0
    %2523 = vmatmul.mubr.bf16.gmra.mrb[0].mxu0 %v2436
    %v2524 = vpop.f32.mrb[0].mxu0
    %v2525 = vadd.f32 %v2441, %v2524
    %v2526 = vpop.f32.mrb[0].mxu0
    %v2527 = vpop.f32.mrb[0].mxu0
    %v2528 = vadd.f32 %v2441, %v2527
    %v2529 = vpop.f32.mrb[0].mxu0
    %2530 = vmatprep.mubr.bf16.mxu0 0
    %2531 = vmatmul.mubr.bf16.gmra.mrb[0].mxu0 %v2437
    %v2532 = vpop.f32.mrb[0].mxu0
    %v2533 = vadd.f32 %v2441, %v2532
    %v2534 = vpop.f32.mrb[0].mxu0
    %v2535 = vpop.f32.mrb[0].mxu0
    %v2536 = vadd.f32 %v2441, %v2535
    %v2537 = vpop.f32.mrb[0].mxu0
    %2538 = vdwg.mxu0
    %v2539 = vadd.f32 %v1446, %v2525
    %v2540 = vadd.f32 %v1447, %v2528
    %v2541 = vadd.f32 %v1448, %v2533
    %v2542 = vadd.f32 %v1449, %v2536
    %v2543 = vadd.f32 %v2259, %v2539
    %v2544 = vadd.f32 %v2260, %v2540
    %v2545 = vadd.f32 %v2261, %v2541
    %v2546 = vadd.f32 %v2262, %v2542
    %v2547 = vmul.f32 %v2543, 0.5
    %v2548 = vmul.f32 %v2544, 0.5
    %v2549 = vmul.f32 %v2545, 0.5
    %v2550 = vmul.f32 %v2546, 0.5
    %v2551 = vpack.c.bf16 %v2548, %v2547
    %v2552 = vpack.c.bf16 %v2550, %v2549
    %v2553 = vld [vmem:[%s5] sm:$0xff]
    %v2554 = vld [vmem:[%s5 + $0x8] sm:$0xff]
    %v2555 = vld [vmem:[%s5 + $0x10] sm:$0xff]
    %v2556 = vld [vmem:[%s5 + $0x18] sm:$0xff]
    %v2561 = vunpack.c.l.b16 %v2553
    %v2562 = vunpack.c.h.b16 %v2553
    %v2563 = vunpack.c.l.b16 %v2554
    %v2564 = vunpack.c.h.b16 %v2554
    %v2565 = vunpack.c.l.b16 %v2555
    %v2566 = vunpack.c.h.b16 %v2555
    %v2567 = vunpack.c.l.b16 %v2556
    %v2568 = vunpack.c.h.b16 %v2556
    %v2569 = vpack.c.b16 %v2563, %v2561
    %v2570 = vpack.c.b16 %v2564, %v2562
    %v2571 = vpack.c.b16 %v2567, %v2565
    %v2572 = vpack.c.b16 %v2568, %v2566
    %v2578 = vsel %vm379, %v2551, 0
    %v2581 = vsel %vm379, %v2552, 0
    %2583 = vmatprep.subr.bf16.mxu0 %v2570
    %2584 = vmatpush1.bf16.msra.mxu0 %v2569
    %2585 = vmatprep.subr.bf16.mxu0 %v2572
    %2586 = vmatpush1.bf16.msra.mxu0 %v2571
    %2587 = vmatprep.subr.bf16.mxu0 0
    %2588 = vmatpush1.bf16.msra.mxu0 0
    %2589 = vmatprep.subr.bf16.mxu0 0
    %2590 = vmatpush1.bf16.msra.mxu0 0
    %2591 = vmatprep.subr.bf16.mxu0 0
    %2592 = vmatpush1.bf16.msra.mxu0 0
    %2593 = vmatprep.subr.bf16.mxu0 0
    %2594 = vmatpush1.bf16.msra.mxu0 0
    %2595 = vmatprep.subr.bf16.mxu0 0
    %2596 = vmatpush1.bf16.msra.mxu0 0
    %2597 = vmatprep.subr.bf16.mxu0 0
    %2598 = vmatpush1.bf16.msra.mxu0 0
    %2599 = vmatprep.subr.bf16.mxu0 0
    %2600 = vmatpush1.bf16.msra.mxu0 0
    %2601 = vmatprep.subr.bf16.mxu0 0
    %2602 = vmatpush1.bf16.msra.mxu0 0
    %2603 = vmatprep.subr.bf16.mxu0 0
    %2604 = vmatpush1.bf16.msra.mxu0 0
    %2605 = vmatprep.subr.bf16.mxu0 0
    %2606 = vmatpush1.bf16.msra.mxu0 0
    %2607 = vmatprep.subr.bf16.mxu0 0
    %2608 = vmatpush1.bf16.msra.mxu0 0
    %2609 = vmatprep.subr.bf16.mxu0 0
    %2610 = vmatpush1.bf16.msra.mxu0 0
    %2611 = vmatprep.subr.bf16.mxu0 0
    %2612 = vmatpush1.bf16.msra.mxu0 0
    %2613 = vmatprep.subr.bf16.mxu0 0
    %2614 = vmatpush1.bf16.msra.mxu0 0
    %2615 = vmatprep.mubr.bf16.mxu0 0
    %2616 = vmatmul.mubr.bf16.gmra.mrb[0].mxu0 %v2578
    %v2617 = vpop.f32.mrb[0].mxu0
    %v2618 = vadd.f32 0.0, %v2617
    %v2619 = vpop.f32.mrb[0].mxu0
    %v2620 = vadd.f32 0.0, %v2619
    %v2621 = vpop.f32.mrb[0].mxu0
    %v2622 = vadd.f32 0.0, %v2621
    %v2623 = vpop.f32.mrb[0].mxu0
    %v2624 = vadd.f32 0.0, %v2623
    %2625 = vmatprep.mubr.bf16.mxu0 0
    %2626 = vmatmul.mubr.bf16.gmra.mrb[0].mxu0 %v2581
    %v2627 = vpop.f32.mrb[0].mxu0
    %v2628 = vadd.f32 0.0, %v2627
    %v2629 = vpop.f32.mrb[0].mxu0
    %v2630 = vadd.f32 0.0, %v2629
    %v2631 = vpop.f32.mrb[0].mxu0
    %v2632 = vadd.f32 0.0, %v2631
    %v2633 = vpop.f32.mrb[0].mxu0
    %v2634 = vadd.f32 0.0, %v2633
    %2635 = vdwg.mxu0
    %v2636 = vld [vmem:[%s6] sm:$0xff]
    %v2637 = vld [vmem:[%s6 + $0x8] sm:$0xff]
    %v2638 = vld [vmem:[%s6 + $0x10] sm:$0xff]
    %v2639 = vld [vmem:[%s6 + $0x18] sm:$0xff]
    %v2640 = vunpack.c.l.bf16 %v2636
    %v2641 = vunpack.c.h.bf16 %v2636
    %v2642 = vunpack.c.l.bf16 %v2637
    %v2643 = vunpack.c.h.bf16 %v2637
    %v2644 = vunpack.c.l.bf16 %v2638
    %v2645 = vunpack.c.h.bf16 %v2638
    %v2646 = vunpack.c.l.bf16 %v2639
    %v2647 = vunpack.c.h.bf16 %v2639
    %v2648 = vmul.f32 %v2618, %v2640
    %v2649 = vmul.f32 %v2620, %v2641
    %v2650 = vmul.f32 %v2622, %v2642
    %v2651 = vmul.f32 %v2624, %v2643
    %v2652 = vmul.f32 %v2628, %v2644
    %v2653 = vmul.f32 %v2630, %v2645
    %v2654 = vmul.f32 %v2632, %v2646
    %v2655 = vmul.f32 %v2634, %v2647
    %v2656 = vpack.c.bf16 %v2650, %v2648
    %v2657 = vpack.c.bf16 %v2651, %v2649
    %v2658 = vpack.c.bf16 %v2654, %v2652
    %v2659 = vpack.c.bf16 %v2655, %v2653
    %v2660 = vld [vmem:[%s7] sm:$0xf]
    %v2661 = vld [vmem:[%s7 + $0x4] sm:$0xf]
    %v2662 = vld [vmem:[%s7 + $0x8] sm:$0xf]
    %v2663 = vld [vmem:[%s7 + $0xc] sm:$0xf]
    %v2664 = vld [vmem:[%s7 + $0x10] sm:$0xf]
    %v2665 = vld [vmem:[%s7 + $0x14] sm:$0xf]
    %v2666 = vld [vmem:[%s7 + $0x18] sm:$0xf]
    %v2667 = vld [vmem:[%s7 + $0x1c] sm:$0xf]
    %v2668 = vld [vmem:[%s7 + $0x20] sm:$0xf]
    %v2669 = vld [vmem:[%s7 + $0x24] sm:$0xf]
    %v2670 = vld [vmem:[%s7 + $0x28] sm:$0xf]
    %v2671 = vld [vmem:[%s7 + $0x2c] sm:$0xf]
    %v2672 = vld [vmem:[%s7 + $0x30] sm:$0xf]
    %v2673 = vld [vmem:[%s7 + $0x34] sm:$0xf]
    %v2674 = vld [vmem:[%s7 + $0x38] sm:$0xf]
    %v2675 = vld [vmem:[%s7 + $0x3c] sm:$0xf]
    %v2676 = vld [vmem:[%s7 + $0x40] sm:$0xf]
    %v2677 = vld [vmem:[%s7 + $0x44] sm:$0xf]
    %v2678 = vld [vmem:[%s7 + $0x48] sm:$0xf]
    %v2679 = vld [vmem:[%s7 + $0x4c] sm:$0xf]
    %v2700 = vunpack.c.l.b16 %v2660
    %v2701 = vunpack.c.l.b16 %v2661
    %v2702 = vunpack.c.l.b16 %v2662
    %v2703 = vunpack.c.l.b16 %v2663
    %v2704 = vunpack.c.l.b16 %v2664
    %v2705 = vunpack.c.l.b16 %v2665
    %v2706 = vunpack.c.l.b16 %v2666
    %v2707 = vunpack.c.l.b16 %v2667
    %v2708 = vunpack.c.l.b16 %v2668
    %v2709 = vunpack.c.l.b16 %v2669
    %v2710 = vunpack.c.l.b16 %v2670
    %v2711 = vunpack.c.l.b16 %v2671
    %v2712 = vunpack.c.l.b16 %v2672
    %v2713 = vunpack.c.l.b16 %v2673
    %v2714 = vunpack.c.l.b16 %v2674
    %v2715 = vunpack.c.l.b16 %v2675
    %v2716 = vunpack.c.l.b16 %v2676
    %v2717 = vunpack.c.l.b16 %v2677
    %v2718 = vunpack.c.l.b16 %v2678
    %v2719 = vunpack.c.l.b16 %v2679
    %v2720 = vpack.c.b16 %v2701, %v2700
    %v2721 = vpack.c.b16 %v2703, %v2702
    %v2722 = vpack.c.b16 %v2705, %v2704
    %v2723 = vpack.c.b16 %v2707, %v2706
    %v2724 = vpack.c.b16 %v2709, %v2708
    %v2725 = vpack.c.b16 %v2711, %v2710
    %v2726 = vpack.c.b16 %v2713, %v2712
    %v2727 = vpack.c.b16 %v2715, %v2714
    %v2728 = vpack.c.b16 %v2717, %v2716
    %v2729 = vpack.c.b16 %v2719, %v2718
    %v2741 = vsel %vm379, %v2657, 0
    %v2744 = vsel %vm379, %v2659, 0
    %2746 = vmatprep.subr.bf16.mxu0 0
    %2747 = vmatpush1.bf16.msra.mxu0 %v2720
    %2748 = vmatprep.subr.bf16.mxu0 0
    %2749 = vmatpush1.bf16.msra.mxu0 %v2721
    %2750 = vmatprep.subr.bf16.mxu0 0
    %2751 = vmatpush1.bf16.msra.mxu0 %v2722
    %2752 = vmatprep.subr.bf16.mxu0 0
    %2753 = vmatpush1.bf16.msra.mxu0 %v2723
    %2754 = vmatprep.subr.bf16.mxu0 0
    %2755 = vmatpush1.bf16.msra.mxu0 %v2724
    %2756 = vmatprep.subr.bf16.mxu0 0
    %2757 = vmatpush1.bf16.msra.mxu0 %v2725
    %2758 = vmatprep.subr.bf16.mxu0 0
    %2759 = vmatpush1.bf16.msra.mxu0 %v2726
    %2760 = vmatprep.subr.bf16.mxu0 0
    %2761 = vmatpush1.bf16.msra.mxu0 %v2727
    %2762 = vmatprep.subr.bf16.mxu0 0
    %2763 = vmatpush1.bf16.msra.mxu0 %v2728
    %2764 = vmatprep.subr.bf16.mxu0 0
    %2765 = vmatpush1.bf16.msra.mxu0 %v2729
    %2766 = vmatprep.subr.bf16.mxu0 0
    %2767 = vmatpush1.bf16.msra.mxu0 0
    %2768 = vmatprep.subr.bf16.mxu0 0
    %2769 = vmatpush1.bf16.msra.mxu0 0
    %2770 = vmatprep.subr.bf16.mxu0 0
    %2771 = vmatpush1.bf16.msra.mxu0 0
    %2772 = vmatprep.subr.bf16.mxu0 0
    %2773 = vmatpush1.bf16.msra.mxu0 0
    %2774 = vmatprep.subr.bf16.mxu0 0
    %2775 = vmatpush1.bf16.msra.mxu0 0
    %2776 = vmatprep.subr.bf16.mxu0 0
    %2777 = vmatpush1.bf16.msra.mxu0 0
    %2778 = vmatprep.mubr.bf16.mxu0 %v2741
    %2779 = vmatmul.mubr.bf16.gmra.mrb[0].mxu0 %v2656
    %v2780 = vpop.f32.mrb[0].mxu0
    %v2781 = vadd.f32 0.0, %v2780
    %v2782 = vpop.f32.mrb[0].mxu0
    %v2783 = vpop.f32.mrb[0].mxu0
    %v2784 = vadd.f32 0.0, %v2783
    %v2785 = vpop.f32.mrb[0].mxu0
    %2786 = vmatprep.mubr.bf16.mxu0 %v2744
    %2787 = vmatmul.mubr.bf16.gmra.mrb[0].mxu0 %v2658
    %v2788 = vpop.f32.mrb[0].mxu0
    %v2789 = vadd.f32 0.0, %v2788
    %v2790 = vpop.f32.mrb[0].mxu0
    %v2791 = vpop.f32.mrb[0].mxu0
    %v2792 = vadd.f32 0.0, %v2791
    %v2793 = vpop.f32.mrb[0].mxu0
    %2794 = vdwg.mxu0
    %v2795 = vpack.c.bf16 %v2784, %v2781
    %v2796 = vpack.c.bf16 %v2792, %v2789
    %v2797 = vld [vmem:[%s8] sm:$0x1]
    %v2799 = vlaneseq
    %v2800 = vshrl.u32 %v2799, 7
    %v2801 = vsub.s32 0, %v2800
    %v2802 = vrot.slane %v2797, %v2801
    %v2805 = vsel %vm379, %v357, 0
    %2807 = vmatprep.subr.bf16.mxu0 0
    %2808 = vmatpush1.bf16.msra.mxu0 %v2795
    %2809 = vmatprep.subr.bf16.mxu0 0
    %2810 = vmatpush1.bf16.msra.mxu0 %v2796
    %2811 = vmatprep.subr.bf16.mxu0 0
    %2812 = vmatpush1.bf16.msra.mxu0 0
    %2813 = vmatprep.subr.bf16.mxu0 0
    %2814 = vmatpush1.bf16.msra.mxu0 0
    %2815 = vmatprep.subr.bf16.mxu0 0
    %2816 = vmatpush1.bf16.msra.mxu0 0
    %2817 = vmatprep.subr.bf16.mxu0 0
    %2818 = vmatpush1.bf16.msra.mxu0 0
    %2819 = vmatprep.subr.bf16.mxu0 0
    %2820 = vmatpush1.bf16.msra.mxu0 0
    %2821 = vmatprep.subr.bf16.mxu0 0
    %2822 = vmatpush1.bf16.msra.mxu0 0
    %2823 = vmatprep.subr.bf16.mxu0 0
    %2824 = vmatpush1.bf16.msra.mxu0 0
    %2825 = vmatprep.subr.bf16.mxu0 0
    %2826 = vmatpush1.bf16.msra.mxu0 0
    %2827 = vmatprep.subr.bf16.mxu0 0
    %2828 = vmatpush1.bf16.msra.mxu0 0
    %2829 = vmatprep.subr.bf16.mxu0 0
    %2830 = vmatpush1.bf16.msra.mxu0 0
    %2831 = vmatprep.subr.bf16.mxu0 0
    %2832 = vmatpush1.bf16.msra.mxu0 0
    %2833 = vmatprep.subr.bf16.mxu0 0
    %2834 = vmatpush1.bf16.msra.mxu0 0
    %2835 = vmatprep.subr.bf16.mxu0 0
    %2836 = vmatpush1.bf16.msra.mxu0 0
    %2837 = vmatprep.subr.bf16.mxu0 0
    %2838 = vmatpush1.bf16.msra.mxu0 0
    %2839 = vmatprep.mubr.bf16.mxu0 0
    %2840 = vmatmul.mubr.bf16.gmra.mrb[0].mxu0 %v2805
    %v2841 = vpop.f32.mrb[0].mxu0
    %v2842 = vadd.f32 %v2802, %v2841
    %v2843 = vpop.f32.mrb[0].mxu0
    %v2844 = vpop.f32.mrb[0].mxu0
    %v2845 = vpop.f32.mrb[0].mxu0
    %2846 = vdwg.mxu0
    %vm2847 = vcmask 74752
    %2848 = vst.msk [vmem:[#allocation2] sm:$0x3] %vm2847, %v2842
    // Predicated region
    $region38: #{reformer_head_forward.1} parent=1 // pred_check
      _
    $region39: #{reformer_head_forward.1} parent=1 // pred_check_branch
      %2850 = sbr.rel (0) target = $region41
    $region40: #{reformer_head_forward.1} parent=1 // pred_region
      %s2852 = ssub.s32 32, 32
      %2853 = vsyncadd [#allocation3], %s2852
      %s2855 = sshll.u32 [#allocation2], 4
      %s2856 = int_to_ptr.vmem [resolvable:$true] %s2855
      %2858 = dma.vmem_to_hbm [thread:$0]  %s2856, 32, %s9, [#allocation3]
    $region41: #{reformer_head_forward.1} parent=1 // pred_fallthru
      _
    // Predicated region
    $region42: #{reformer_head_forward.1} parent=1 // pred_check
      _
    $region43: #{reformer_head_forward.1} parent=1 // pred_check_branch
      %2860 = sbr.rel (0) target = $region45
    $region44: #{reformer_head_forward.1} parent=1 // pred_region
      %2861 = dma.done [#allocation3], 32
    $region45: #{reformer_head_forward.1} parent=1 // pred_fallthru
      _
    %2862 = vsyncpa [#allocation3], 1

</llo_original>
